<compile_context>
chip_gen: v6e
topology: v6e:2x2x1
jax: 0.10.0
libtpu: 0.0.40
codegen_flags: <defaults>
</compile_context>

<pallas_src>
import numpy as np

import jax
import jax.numpy as jnp
from jax.experimental import pallas as pl
from jax.experimental.pallas import tpu as pltpu


# ---------------------------------------------------------------------------
# Fused ConvBlock kernel
# ---------------------------------------------------------------------------
def _conv_block_kernel(x_ref, w1_ref, b1_ref, w2_ref, b2_ref, o_ref, hpad_ref):
    # x_ref   : (1, H+2, W+2, Cin)   zero-padded input image (one batch element), f32
    # w1_ref  : (9*Cin,  Cout) bf16      b1_ref: (1, Cout) f32
    # w2_ref  : (9*Cout, Cout) bf16      b2_ref: (1, Cout) f32
    # o_ref   : (1, H*W, Cout) f32       output slab (reshaped / transposed by wrapper)
    # hpad_ref: (H+2, W+2, Cout) f32     VMEM scratch: zero-padded intermediate
    H = x_ref.shape[1] - 2
    W = x_ref.shape[2] - 2
    cin = x_ref.shape[3]
    cout = o_ref.shape[2]

    def conv3x3_relu(read_tap, c_in, w_ref, b_ref):
        # One MXU matmul per conv: (H*W, 9*c_in) @ (9*c_in, cout), f32 accumulation.
        taps = [read_tap(dy, dx).reshape(H * W, c_in)
                for dy in range(3) for dx in range(3)]
        patches = jnp.concatenate(taps, axis=-1).astype(jnp.bfloat16)
        acc = jnp.dot(patches, w_ref[...], preferred_element_type=jnp.float32)
        return jnp.maximum(acc + b_ref[...], 0.0)

    # conv1 + ReLU -> zero-padded intermediate, kept on-chip in VMEM.
    hpad_ref[...] = jnp.zeros_like(hpad_ref)
    h1 = conv3x3_relu(lambda dy, dx: x_ref[0, dy:dy + H, dx:dx + W, :],
                      cin, w1_ref, b1_ref)
    hpad_ref[1:H + 1, 1:W + 1, :] = h1.reshape(H, W, cout)

    # conv2 + ReLU -> output slab.
    o_ref[0] = conv3x3_relu(lambda dy, dx: hpad_ref[dy:dy + H, dx:dx + W, :],
                            cout, w2_ref, b2_ref)


# ---------------------------------------------------------------------------
# Wrapper: PyTorch-layout ConvBlock forward (NCHW in / NCHW out, OIHW weights)
# ---------------------------------------------------------------------------
def conv_block(x_nchw, w1, b1, w2, b2):
    """ConvBlock.forward: x (B, Cin, H, W), weights (Cout, Cin, 3, 3) -> (B, Cout, H, W)."""
    B, Cin, H, W = x_nchw.shape
    Cout = w1.shape[0]

    # NCHW -> NHWC (channels on the lane dim); spatial zero padding=1 applied once.
    x = jnp.transpose(x_nchw, (0, 2, 3, 1)).astype(jnp.float32)
    xp = jnp.pad(x, ((0, 0), (1, 1), (1, 1), (0, 0)))

    # PyTorch (Cout, Cin, 3, 3) -> im2col weight matrix (9*Cin, Cout), bf16 for the MXU.
    # Row order (dy, dx, ci) matches the tap-concatenation order inside the kernel.
    def to_mat(w):
        return jnp.transpose(w, (2, 3, 1, 0)).reshape(-1, w.shape[0]).astype(jnp.bfloat16)

    out = pl.pallas_call(
        _conv_block_kernel,
        out_shape=jax.ShapeDtypeStruct((B, H * W, Cout), jnp.float32),
        grid=(B,),
        in_specs=[
            pl.BlockSpec((1, H + 2, W + 2, Cin), lambda b: (b, 0, 0, 0)),
            pl.BlockSpec((9 * Cin, Cout), lambda b: (0, 0)),
            pl.BlockSpec((1, Cout), lambda b: (0, 0)),
            pl.BlockSpec((9 * Cout, Cout), lambda b: (0, 0)),
            pl.BlockSpec((1, Cout), lambda b: (0, 0)),
        ],
        out_specs=pl.BlockSpec((1, H * W, Cout), lambda b: (b, 0, 0)),
        scratch_shapes=[pltpu.VMEM((H + 2, W + 2, Cout), jnp.float32)],
        compiler_params=pltpu.CompilerParams(dimension_semantics=("parallel",)),
    )(xp,
      to_mat(w1), b1.reshape(1, Cout).astype(jnp.float32),
      to_mat(w2), b2.reshape(1, Cout).astype(jnp.float32))

    # (B, H*W, Cout) -> (B, Cout, H, W): the reshape is free metadata; the transpose is
    # the one unavoidable layout op for the NCHW public API.
    return jnp.transpose(out.reshape(B, H, W, Cout), (0, 3, 1, 2))


# ---------------------------------------------------------------------------
# Plain-JAX reference (for a loose numerical check; kernel uses bf16 MXU operands)
# ---------------------------------------------------------------------------
def conv_block_reference(x, w1, b1, w2, b2):
    def conv_relu(h, w, b):
        y = jax.lax.conv_general_dilated(
            h, w, window_strides=(1, 1), padding=((1, 1), (1, 1)),
            dimension_numbers=("NCHW", "OIHW", "NCHW"),
            precision=jax.lax.Precision.HIGHEST)
        return jax.nn.relu(y + b[None, :, None, None])
    return conv_relu(conv_relu(x, w1, b1), w2, b2)


if __name__ == "__main__":
    key = jax.random.PRNGKey(0)
    B, Cin, Cout, H, W = 2, 4, 32, 16, 16

    kx, kw1, kb1, kw2, kb2 = jax.random.split(key, 5)
    x = jax.random.normal(kx, (B, Cin, H, W), dtype=jnp.float32)

    def init_conv(kw, kb, cin, cout):
        bound = float(1.0 / np.sqrt(cin * 9))
        w = jax.random.uniform(kw, (cout, cin, 3, 3), jnp.float32, -bound, bound)
        b = jax.random.uniform(kb, (cout,), jnp.float32, -bound, bound)
        return w, b

    w1, b1 = init_conv(kw1, kb1, Cin, Cout)
    w2, b2 = init_conv(kw2, kb2, Cout, Cout)

    fwd = jax.jit(conv_block)
    out = jax.block_until_ready(fwd(x, w1, b1, w2, b2))

    assert out.shape == (B, Cout, H, W), out.shape
    assert out.dtype == jnp.float32
    assert bool(jnp.all(jnp.isfinite(out)))

    # Correctness vs plain-JAX reference (loose tolerance: bf16 matmul operands).
    ref = conv_block_reference(x, w1, b1, w2, b2)
    np.testing.assert_allclose(np.asarray(out), np.asarray(ref), rtol=5e-2, atol=5e-2)

    print("KERNEL_OK")
</pallas_src>

<mosaic_0001>
module attributes {stable_mosaic.version = 11 : i64} {
  func.func @_conv_block_kernel(%arg0: i32, %arg1: memref<1x18x18x4xf32, #tpu.memory_space<vmem>>, %arg2: memref<36x32xbf16, #tpu.memory_space<vmem>>, %arg3: memref<1x32xf32, #tpu.memory_space<vmem>>, %arg4: memref<288x32xbf16, #tpu.memory_space<vmem>>, %arg5: memref<1x32xf32, #tpu.memory_space<vmem>>, %arg6: memref<1x256x32xf32, #tpu.memory_space<vmem>>, %arg7: memref<18x18x32xf32, #tpu.memory_space<vmem>>) attributes {dimension_semantics = [#tpu.dimension_semantics<parallel>], iteration_bounds = array<i64: 2>, scalar_prefetch = 0 : i64, scratch_operands = 1 : i64, tpu.core_type = #tpu.core_type<tc>, window_params = [{transform_indices = @transform_0, window_bounds = array<i64: 1, 18, 18, 4>}, {pipeline_mode = #tpu.pipeline_mode<synchronous>, transform_indices = @transform_1, window_bounds = array<i64: 36, 32>}, {pipeline_mode = #tpu.pipeline_mode<synchronous>, transform_indices = @transform_2, window_bounds = array<i64: 1, 32>}, {pipeline_mode = #tpu.pipeline_mode<synchronous>, transform_indices = @transform_3, window_bounds = array<i64: 288, 32>}, {pipeline_mode = #tpu.pipeline_mode<synchronous>, transform_indices = @transform_4, window_bounds = array<i64: 1, 32>}, {transform_indices = @transform_5, window_bounds = array<i64: 1, 256, 32>}]} {
    %cst = arith.constant 0.000000e+00 : f32
    %0 = vector.broadcast %cst : f32 to vector<18x18x32xf32>
    %c0 = arith.constant 0 : index
    %c0_0 = arith.constant 0 : index
    %c0_1 = arith.constant 0 : index
    %1 = vector.load %arg7[%c0, %c0_0, %c0_1] : memref<18x18x32xf32, #tpu.memory_space<vmem>>, vector<18x18x32xf32>
    tpu.vector_store %arg7[%c0, %c0_0, %c0_1], %0 {strides = array<i32>} : memref<18x18x32xf32, #tpu.memory_space<vmem>>, vector<18x18x32xf32>,
    %c0_2 = arith.constant 0 : index
    %c0_3 = arith.constant 0 : index
    %c0_4 = arith.constant 0 : index
    %c0_5 = arith.constant 0 : index
    %2 = vector.load %arg1[%c0_2, %c0_3, %c0_4, %c0_5] : memref<1x18x18x4xf32, #tpu.memory_space<vmem>>, vector<1x16x16x4xf32>
    %3 = vector.shape_cast %2 : vector<1x16x16x4xf32> to vector<16x16x4xf32>
    %4 = vector.shape_cast %3 : vector<16x16x4xf32> to vector<256x4xf32>
    %c0_6 = arith.constant 0 : index
    %c0_7 = arith.constant 0 : index
    %c1 = arith.constant 1 : index
    %c0_8 = arith.constant 0 : index
    %5 = vector.load %arg1[%c0_6, %c0_7, %c1, %c0_8] : memref<1x18x18x4xf32, #tpu.memory_space<vmem>>, vector<1x16x16x4xf32>
    %6 = vector.shape_cast %5 : vector<1x16x16x4xf32> to vector<16x16x4xf32>
    %7 = vector.shape_cast %6 : vector<16x16x4xf32> to vector<256x4xf32>
    %c0_9 = arith.constant 0 : index
    %c0_10 = arith.constant 0 : index
    %c2 = arith.constant 2 : index
    %c0_11 = arith.constant 0 : index
    %8 = vector.load %arg1[%c0_9, %c0_10, %c2, %c0_11] : memref<1x18x18x4xf32, #tpu.memory_space<vmem>>, vector<1x16x16x4xf32>
    %9 = vector.shape_cast %8 : vector<1x16x16x4xf32> to vector<16x16x4xf32>
    %10 = vector.shape_cast %9 : vector<16x16x4xf32> to vector<256x4xf32>
    %c0_12 = arith.constant 0 : index
    %c1_13 = arith.constant 1 : index
    %c0_14 = arith.constant 0 : index
    %c0_15 = arith.constant 0 : index
    %11 = vector.load %arg1[%c0_12, %c1_13, %c0_14, %c0_15] : memref<1x18x18x4xf32, #tpu.memory_space<vmem>>, vector<1x16x16x4xf32>
    %12 = vector.shape_cast %11 : vector<1x16x16x4xf32> to vector<16x16x4xf32>
    %13 = vector.shape_cast %12 : vector<16x16x4xf32> to vector<256x4xf32>
    %c0_16 = arith.constant 0 : index
    %c1_17 = arith.constant 1 : index
    %c1_18 = arith.constant 1 : index
    %c0_19 = arith.constant 0 : index
    %14 = vector.load %arg1[%c0_16, %c1_17, %c1_18, %c0_19] : memref<1x18x18x4xf32, #tpu.memory_space<vmem>>, vector<1x16x16x4xf32>
    %15 = vector.shape_cast %14 : vector<1x16x16x4xf32> to vector<16x16x4xf32>
    %16 = vector.shape_cast %15 : vector<16x16x4xf32> to vector<256x4xf32>
    %c0_20 = arith.constant 0 : index
    %c1_21 = arith.constant 1 : index
    %c2_22 = arith.constant 2 : index
    %c0_23 = arith.constant 0 : index
    %17 = vector.load %arg1[%c0_20, %c1_21, %c2_22, %c0_23] : memref<1x18x18x4xf32, #tpu.memory_space<vmem>>, vector<1x16x16x4xf32>
    %18 = vector.shape_cast %17 : vector<1x16x16x4xf32> to vector<16x16x4xf32>
    %19 = vector.shape_cast %18 : vector<16x16x4xf32> to vector<256x4xf32>
    %c0_24 = arith.constant 0 : index
    %c2_25 = arith.constant 2 : index
    %c0_26 = arith.constant 0 : index
    %c0_27 = arith.constant 0 : index
    %20 = vector.load %arg1[%c0_24, %c2_25, %c0_26, %c0_27] : memref<1x18x18x4xf32, #tpu.memory_space<vmem>>, vector<1x16x16x4xf32>
    %21 = vector.shape_cast %20 : vector<1x16x16x4xf32> to vector<16x16x4xf32>
    %22 = vector.shape_cast %21 : vector<16x16x4xf32> to vector<256x4xf32>
    %c0_28 = arith.constant 0 : index
    %c2_29 = arith.constant 2 : index
    %c1_30 = arith.constant 1 : index
    %c0_31 = arith.constant 0 : index
    %23 = vector.load %arg1[%c0_28, %c2_29, %c1_30, %c0_31] : memref<1x18x18x4xf32, #tpu.memory_space<vmem>>, vector<1x16x16x4xf32>
    %24 = vector.shape_cast %23 : vector<1x16x16x4xf32> to vector<16x16x4xf32>
    %25 = vector.shape_cast %24 : vector<16x16x4xf32> to vector<256x4xf32>
    %c0_32 = arith.constant 0 : index
    %c2_33 = arith.constant 2 : index
    %c2_34 = arith.constant 2 : index
    %c0_35 = arith.constant 0 : index
    %26 = vector.load %arg1[%c0_32, %c2_33, %c2_34, %c0_35] : memref<1x18x18x4xf32, #tpu.memory_space<vmem>>, vector<1x16x16x4xf32>
    %27 = vector.shape_cast %26 : vector<1x16x16x4xf32> to vector<16x16x4xf32>
    %28 = vector.shape_cast %27 : vector<16x16x4xf32> to vector<256x4xf32>
    %29 = tpu.concatenate %4, %7, %10, %13, %16, %19, %22, %25, %28 in 1 : vector<256x4xf32>, vector<256x4xf32>, vector<256x4xf32>, vector<256x4xf32>, vector<256x4xf32>, vector<256x4xf32>, vector<256x4xf32>, vector<256x4xf32>, vector<256x4xf32> -> vector<256x36xf32>
    %30 = arith.truncf %29 : vector<256x36xf32> to vector<256x36xbf16>
    %c0_36 = arith.constant 0 : index
    %c0_37 = arith.constant 0 : index
    %31 = vector.load %arg2[%c0_36, %c0_37] : memref<36x32xbf16, #tpu.memory_space<vmem>>, vector<36x32xbf16>
    %cst_38 = arith.constant dense<0.000000e+00> : vector<256x32xf32>
    %32 = tpu.matmul %30, %31, %cst_38 {dimension_numbers = #tpu.dot_dimension_numbers<[1], [0], [0], [1], [0, 0, 1, 1], [], []>} : vector<256x36xbf16>, vector<36x32xbf16>, vector<256x32xf32> -> vector<256x32xf32>
    %c0_39 = arith.constant 0 : index
    %c0_40 = arith.constant 0 : index
    %33 = vector.load %arg3[%c0_39, %c0_40] : memref<1x32xf32, #tpu.memory_space<vmem>>, vector<1x32xf32>
    %34 = vector.broadcast %33 : vector<1x32xf32> to vector<256x32xf32>
    %35 = arith.addf %32, %34 : vector<256x32xf32>
    %cst_41 = arith.constant 0.000000e+00 : f32
    %36 = vector.broadcast %cst_41 : f32 to vector<256x32xf32>
    %37 = arith.maximumf %35, %36 : vector<256x32xf32>
    %38 = vector.shape_cast %37 : vector<256x32xf32> to vector<16x16x32xf32>
    %c1_42 = arith.constant 1 : index
    %c1_43 = arith.constant 1 : index
    %c0_44 = arith.constant 0 : index
    %39 = vector.load %arg7[%c1_42, %c1_43, %c0_44] : memref<18x18x32xf32, #tpu.memory_space<vmem>>, vector<16x16x32xf32>
    tpu.vector_store %arg7[%c1_42, %c1_43, %c0_44], %38 {strides = array<i32>} : memref<18x18x32xf32, #tpu.memory_space<vmem>>, vector<16x16x32xf32>,
    %c0_45 = arith.constant 0 : index
    %c0_46 = arith.constant 0 : index
    %c0_47 = arith.constant 0 : index
    %40 = vector.load %arg7[%c0_45, %c0_46, %c0_47] : memref<18x18x32xf32, #tpu.memory_space<vmem>>, vector<16x16x32xf32>
    %41 = vector.shape_cast %40 : vector<16x16x32xf32> to vector<256x32xf32>
    %c0_48 = arith.constant 0 : index
    %c1_49 = arith.constant 1 : index
    %c0_50 = arith.constant 0 : index
    %42 = vector.load %arg7[%c0_48, %c1_49, %c0_50] : memref<18x18x32xf32, #tpu.memory_space<vmem>>, vector<16x16x32xf32>
    %43 = vector.shape_cast %42 : vector<16x16x32xf32> to vector<256x32xf32>
    %c0_51 = arith.constant 0 : index
    %c2_52 = arith.constant 2 : index
    %c0_53 = arith.constant 0 : index
    %44 = vector.load %arg7[%c0_51, %c2_52, %c0_53] : memref<18x18x32xf32, #tpu.memory_space<vmem>>, vector<16x16x32xf32>
    %45 = vector.shape_cast %44 : vector<16x16x32xf32> to vector<256x32xf32>
    %c1_54 = arith.constant 1 : index
    %c0_55 = arith.constant 0 : index
    %c0_56 = arith.constant 0 : index
    %46 = vector.load %arg7[%c1_54, %c0_55, %c0_56] : memref<18x18x32xf32, #tpu.memory_space<vmem>>, vector<16x16x32xf32>
    %47 = vector.shape_cast %46 : vector<16x16x32xf32> to vector<256x32xf32>
    %c1_57 = arith.constant 1 : index
    %c1_58 = arith.constant 1 : index
    %c0_59 = arith.constant 0 : index
    %48 = vector.load %arg7[%c1_57, %c1_58, %c0_59] : memref<18x18x32xf32, #tpu.memory_space<vmem>>, vector<16x16x32xf32>
    %49 = vector.shape_cast %48 : vector<16x16x32xf32> to vector<256x32xf32>
    %c1_60 = arith.constant 1 : index
    %c2_61 = arith.constant 2 : index
    %c0_62 = arith.constant 0 : index
    %50 = vector.load %arg7[%c1_60, %c2_61, %c0_62] : memref<18x18x32xf32, #tpu.memory_space<vmem>>, vector<16x16x32xf32>
    %51 = vector.shape_cast %50 : vector<16x16x32xf32> to vector<256x32xf32>
    %c2_63 = arith.constant 2 : index
    %c0_64 = arith.constant 0 : index
    %c0_65 = arith.constant 0 : index
    %52 = vector.load %arg7[%c2_63, %c0_64, %c0_65] : memref<18x18x32xf32, #tpu.memory_space<vmem>>, vector<16x16x32xf32>
    %53 = vector.shape_cast %52 : vector<16x16x32xf32> to vector<256x32xf32>
    %c2_66 = arith.constant 2 : index
    %c1_67 = arith.constant 1 : index
    %c0_68 = arith.constant 0 : index
    %54 = vector.load %arg7[%c2_66, %c1_67, %c0_68] : memref<18x18x32xf32, #tpu.memory_space<vmem>>, vector<16x16x32xf32>
    %55 = vector.shape_cast %54 : vector<16x16x32xf32> to vector<256x32xf32>
    %c2_69 = arith.constant 2 : index
    %c2_70 = arith.constant 2 : index
    %c0_71 = arith.constant 0 : index
    %56 = vector.load %arg7[%c2_69, %c2_70, %c0_71] : memref<18x18x32xf32, #tpu.memory_space<vmem>>, vector<16x16x32xf32>
    %57 = vector.shape_cast %56 : vector<16x16x32xf32> to vector<256x32xf32>
    %58 = tpu.concatenate %41, %43, %45, %47, %49, %51, %53, %55, %57 in 1 : vector<256x32xf32>, vector<256x32xf32>, vector<256x32xf32>, vector<256x32xf32>, vector<256x32xf32>, vector<256x32xf32>, vector<256x32xf32>, vector<256x32xf32>, vector<256x32xf32> -> vector<256x288xf32>
    %59 = arith.truncf %58 : vector<256x288xf32> to vector<256x288xbf16>
    %c0_72 = arith.constant 0 : index
    %c0_73 = arith.constant 0 : index
    %60 = vector.load %arg4[%c0_72, %c0_73] : memref<288x32xbf16, #tpu.memory_space<vmem>>, vector<288x32xbf16>
    %cst_74 = arith.constant dense<0.000000e+00> : vector<256x32xf32>
    %61 = tpu.matmul %59, %60, %cst_74 {dimension_numbers = #tpu.dot_dimension_numbers<[1], [0], [0], [1], [0, 0, 1, 1], [], []>} : vector<256x288xbf16>, vector<288x32xbf16>, vector<256x32xf32> -> vector<256x32xf32>
    %c0_75 = arith.constant 0 : index
    %c0_76 = arith.constant 0 : index
    %62 = vector.load %arg5[%c0_75, %c0_76] : memref<1x32xf32, #tpu.memory_space<vmem>>, vector<1x32xf32>
    %63 = vector.broadcast %62 : vector<1x32xf32> to vector<256x32xf32>
    %64 = arith.addf %61, %63 : vector<256x32xf32>
    %cst_77 = arith.constant 0.000000e+00 : f32
    %65 = vector.broadcast %cst_77 : f32 to vector<256x32xf32>
    %66 = arith.maximumf %64, %65 : vector<256x32xf32>
    %c0_78 = arith.constant 0 : index
    %c0_79 = arith.constant 0 : index
    %c0_80 = arith.constant 0 : index
    %67 = vector.load %arg6[%c0_78, %c0_79, %c0_80] : memref<1x256x32xf32, #tpu.memory_space<vmem>>, vector<1x256x32xf32>
    %68 = vector.shape_cast %67 : vector<1x256x32xf32> to vector<256x32xf32>
    %69 = vector.shape_cast %66 : vector<256x32xf32> to vector<1x256x32xf32>
    tpu.vector_store %arg6[%c0_78, %c0_79, %c0_80], %69 {strides = array<i32>} : memref<1x256x32xf32, #tpu.memory_space<vmem>>, vector<1x256x32xf32>,
    return
  }
  func.func @transform_0(%arg0: i32) -> (i32, i32, i32, i32) {
    %c0_i32 = arith.constant 0 : i32
    %c0_i32_0 = arith.constant 0 : i32
    %c0_i32_1 = arith.constant 0 : i32
    %c0_i32_2 = arith.constant 0 : i32
    return %arg0, %c0_i32, %c0_i32_0, %c0_i32_1 : i32, i32, i32, i32
  }
  func.func @transform_1(%arg0: i32) -> (i32, i32) {
    %c0_i32 = arith.constant 0 : i32
    %c0_i32_0 = arith.constant 0 : i32
    %c0_i32_1 = arith.constant 0 : i32
    return %c0_i32, %c0_i32_0 : i32, i32
  }
  func.func @transform_2(%arg0: i32) -> (i32, i32) {
    %c0_i32 = arith.constant 0 : i32
    %c0_i32_0 = arith.constant 0 : i32
    %c0_i32_1 = arith.constant 0 : i32
    return %c0_i32, %c0_i32_0 : i32, i32
  }
  func.func @transform_3(%arg0: i32) -> (i32, i32) {
    %c0_i32 = arith.constant 0 : i32
    %c0_i32_0 = arith.constant 0 : i32
    %c0_i32_1 = arith.constant 0 : i32
    return %c0_i32, %c0_i32_0 : i32, i32
  }
  func.func @transform_4(%arg0: i32) -> (i32, i32) {
    %c0_i32 = arith.constant 0 : i32
    %c0_i32_0 = arith.constant 0 : i32
    %c0_i32_1 = arith.constant 0 : i32
    return %c0_i32, %c0_i32_0 : i32, i32
  }
  func.func @transform_5(%arg0: i32) -> (i32, i32, i32) {
    %c0_i32 = arith.constant 0 : i32
    %c0_i32_0 = arith.constant 0 : i32
    %c0_i32_1 = arith.constant 0 : i32
    return %arg0, %c0_i32, %c0_i32_0 : i32, i32, i32
  }
}

</mosaic_0001>

<llo_original>
// kernel: conv_block.1
$region0: #{conv_block.1}
  #allocation0 [shape = 'u32[]', space=smem, size = 0x4, offset = 0x4, fixed_abs, tag = 'smem constant byte address 0x4 - core index']
  #allocation1 [shape = 'u32[144,128]{1,0:T(1,128)}', space=vmem, size = 0x12000, scoped, tag = 'internal scratch']
  #allocation2 [shape = 'f32[18,18,32]{2,1,0:T(8,128)}', space=vmem, size = 0x36000, scoped, tag = 'scratch operand']
  %s0 = inlined_call_operand.vmem [shape: f32[2,18,18,4], index: 0, kind: input, shape index: {}]
  %s1 = inlined_call_operand.vmem [shape: bf16[36,32], index: 1, kind: input, shape index: {}]
  %s2 = inlined_call_operand.vmem [shape: f32[1,32], index: 2, kind: input, shape index: {}]
  %s3 = inlined_call_operand.vmem [shape: bf16[288,32], index: 3, kind: input, shape index: {}]
  %s4 = inlined_call_operand.vmem [shape: f32[1,32], index: 4, kind: input, shape index: {}]
  %s5 = inlined_call_operand.hbm [shape: f32[2,256,32], index: 5, kind: output, shape index: {}]
  %s6 = sld [smem:[#allocation0]]
  $region53: #{conv_block.1} parent=0
    _
  %s8 = ssub.s32 1, %s6
  %s9 = scalar_select 0, %s8, %s6
  $region1: #{conv_block.1} parent=0
    #allocation3 [shape = 'u8[262144]{0}', space=vmem, size = 0x40000, scoped, tag = 'output window, operand 0']
    #allocation4 [shape = 's32[2]{0}', space=sflag, size = 0x8, scoped, tag = 'scoped memory for conv_block.1']
    %10 = vsyncpa [#allocation4], 0
    %s11 = scalar_lea.sflag [#allocation4], 1
    %12 = vsyncpa %s11, 0
    loop: start=0, step=1, limit=4
    $region2: #{conv_block.1} parent=1 // loop_pre_header
      _
    $region3: #{conv_block.1} parent=1 // loop_header
      %s14 = sphi 0, %s18
      %p15 = scmp.ge.s32.totalorder %s14, 4
      %s24 = sphi 0, %s26
      %s27 = sphi 0, %s24
      %s28 = sphi 0, %s27
      %s44 = sphi 0, %s28
      %s48 = sphi 0, %s48
      %s50 = sphi 0, %s48
      %s51 = sphi 0, %s50
      %s65 = sphi 0, %s51
      %s69 = sphi 0, %s69
      %s71 = sphi 0, %s69
      %s72 = sphi 0, %s71
      %s86 = sphi 0, %s72
      %s90 = sphi 0, %s90
      %s92 = sphi 0, %s90
      %s93 = sphi 0, %s92
      %s107 = sphi 0, %s93
      %s111 = sphi 0, %s111
      %s113 = sphi 0, %s111
      %s114 = sphi 0, %s113
      %s128 = sphi 0, %s114
      %s134 = sphi 0, %s136
      %s137 = sphi 0, %s134
      %s138 = sphi 0, %s137
      %s154 = sphi 0, %s138
    $region4: #{conv_block.1} parent=1 // loop_header_branch
      %17 = sbr.rel (%p15) target = $region8
    $region5: #{conv_block.1} parent=1 // loop_body
      %s19 = ssub.s32 %s14, 1
      %s20 = ssub.s32 %s14, 2
      %s21 = sadd.s32 %s14, 1
      %s22 = ssub.s32 %s14, %s21
      %p23 = scmp.eq.s32.totalorder %s22, 0
      %s25 = sadd.s32 %s24, 1
      %s26 = scalar_select %p23, %s24, %s25
      %p29 = pneg %p23
      %p30 = scmp.eq.s32.totalorder %s14, 1
      %p31 = por %p29, %p30
      %p32 = scmp.ne.s32.totalorder %s24, %s27
      %p33 = scmp.eq.s32.totalorder %s14, 0
      %p34 = por %p32, %p33
      %p35 = scmp.ne.s32.totalorder %s24, %s27
      %p36 = scmp.eq.s32.totalorder %s19, 1
      %p37 = por %p35, %p36
      %p38 = scmp.ne.s32.totalorder %s27, %s28
      %p39 = scmp.eq.s32.totalorder %s19, 0
      %p40 = por %p38, %p39
      %p41 = scmp.ne.s32.totalorder %s27, %s28
      %p42 = scmp.eq.s32.totalorder %s20, 1
      %p43 = por %p41, %p42
      %p45 = scmp.ne.s32.totalorder %s28, %s44
      %p46 = scmp.eq.s32.totalorder %s20, 0
      %p47 = por %p45, %p46
      %s49 = sadd.s32 %s48, 1
      %p52 = scmp.eq.s32.totalorder %s14, 1
      %p53 = scmp.ne.s32.totalorder %s48, %s50
      %p54 = scmp.eq.s32.totalorder %s14, 0
      %p55 = por %p53, %p54
      %p56 = scmp.ne.s32.totalorder %s48, %s50
      %p57 = scmp.eq.s32.totalorder %s19, 1
      %p58 = por %p56, %p57
      %p59 = scmp.ne.s32.totalorder %s50, %s51
      %p60 = scmp.eq.s32.totalorder %s19, 0
      %p61 = por %p59, %p60
      %p62 = scmp.ne.s32.totalorder %s50, %s51
      %p63 = scmp.eq.s32.totalorder %s20, 1
      %p64 = por %p62, %p63
      %p66 = scmp.ne.s32.totalorder %s51, %s65
      %p67 = scmp.eq.s32.totalorder %s20, 0
      %p68 = por %p66, %p67
      %s70 = sadd.s32 %s69, 1
      %p73 = scmp.eq.s32.totalorder %s14, 1
      %p74 = scmp.ne.s32.totalorder %s69, %s71
      %p75 = scmp.eq.s32.totalorder %s14, 0
      %p76 = por %p74, %p75
      %p77 = scmp.ne.s32.totalorder %s69, %s71
      %p78 = scmp.eq.s32.totalorder %s19, 1
      %p79 = por %p77, %p78
      %p80 = scmp.ne.s32.totalorder %s71, %s72
      %p81 = scmp.eq.s32.totalorder %s19, 0
      %p82 = por %p80, %p81
      %p83 = scmp.ne.s32.totalorder %s71, %s72
      %p84 = scmp.eq.s32.totalorder %s20, 1
      %p85 = por %p83, %p84
      %p87 = scmp.ne.s32.totalorder %s72, %s86
      %p88 = scmp.eq.s32.totalorder %s20, 0
      %p89 = por %p87, %p88
      %s91 = sadd.s32 %s90, 1
      %p94 = scmp.eq.s32.totalorder %s14, 1
      %p95 = scmp.ne.s32.totalorder %s90, %s92
      %p96 = scmp.eq.s32.totalorder %s14, 0
      %p97 = por %p95, %p96
      %p98 = scmp.ne.s32.totalorder %s90, %s92
      %p99 = scmp.eq.s32.totalorder %s19, 1
      %p100 = por %p98, %p99
      %p101 = scmp.ne.s32.totalorder %s92, %s93
      %p102 = scmp.eq.s32.totalorder %s19, 0
      %p103 = por %p101, %p102
      %p104 = scmp.ne.s32.totalorder %s92, %s93
      %p105 = scmp.eq.s32.totalorder %s20, 1
      %p106 = por %p104, %p105
      %p108 = scmp.ne.s32.totalorder %s93, %s107
      %p109 = scmp.eq.s32.totalorder %s20, 0
      %p110 = por %p108, %p109
      %s112 = sadd.s32 %s111, 1
      %p115 = scmp.eq.s32.totalorder %s14, 1
      %p116 = scmp.ne.s32.totalorder %s111, %s113
      %p117 = scmp.eq.s32.totalorder %s14, 0
      %p118 = por %p116, %p117
      %p119 = scmp.ne.s32.totalorder %s111, %s113
      %p120 = scmp.eq.s32.totalorder %s19, 1
      %p121 = por %p119, %p120
      %p122 = scmp.ne.s32.totalorder %s113, %s114
      %p123 = scmp.eq.s32.totalorder %s19, 0
      %p124 = por %p122, %p123
      %p125 = scmp.ne.s32.totalorder %s113, %s114
      %p126 = scmp.eq.s32.totalorder %s20, 1
      %p127 = por %p125, %p126
      %p129 = scmp.ne.s32.totalorder %s114, %s128
      %p130 = scmp.eq.s32.totalorder %s20, 0
      %p131 = por %p129, %p130
      %s132 = ssub.s32 %s14, %s21
      %p133 = scmp.eq.s32.totalorder %s132, 0
      %s135 = sadd.s32 %s134, 1
      %s136 = scalar_select %p133, %s134, %s135
      %p139 = pneg %p133
      %p140 = scmp.eq.s32.totalorder %s14, 1
      %p141 = por %p139, %p140
      %p142 = scmp.ne.s32.totalorder %s134, %s137
      %p143 = scmp.eq.s32.totalorder %s14, 0
      %p144 = por %p142, %p143
      %p145 = scmp.ne.s32.totalorder %s134, %s137
      %p146 = scmp.eq.s32.totalorder %s19, 1
      %p147 = por %p145, %p146
      %p148 = scmp.ne.s32.totalorder %s137, %s138
      %p149 = scmp.eq.s32.totalorder %s19, 0
      %p150 = por %p148, %p149
      %p151 = scmp.ne.s32.totalorder %s137, %s138
      %p152 = scmp.eq.s32.totalorder %s20, 1
      %p153 = por %p151, %p152
      %p155 = scmp.ne.s32.totalorder %s138, %s154
      %p156 = scmp.eq.s32.totalorder %s20, 0
      %p157 = por %p155, %p156
      %p158 = scmp.le.s32.totalorder 1, %s14
      %p159 = scmp.lt.s32.totalorder %s14, 3
      %p160 = pnand %p158, %p159
      %p161 = pneg %p160
      // Predicated region
      $region9: #{conv_block.1} parent=5 // pred_check
        _
      $region10: #{conv_block.1} parent=5 // pred_check_branch
        %163 = sbr.rel (%p160) target = $region12
      $region11: #{conv_block.1} parent=5 // pred_region
        %s164 = ssub.s32 %s14, 1
        // Predicated region
        $region13: #{conv_block.1} parent=11 // pred_check
          %p165 = pneg %p61
        $region14: #{conv_block.1} parent=11 // pred_check_branch
          %167 = sbr.rel (%p165) target = $region16
        $region15: #{conv_block.1} parent=11 // pred_region
          _
        $region16: #{conv_block.1} parent=11 // pred_fallthru
          _
        // Predicated region
        $region17: #{conv_block.1} parent=11 // pred_check
          %p168 = pneg %p82
        $region18: #{conv_block.1} parent=11 // pred_check_branch
          %170 = sbr.rel (%p168) target = $region20
        $region19: #{conv_block.1} parent=11 // pred_region
          _
        $region20: #{conv_block.1} parent=11 // pred_fallthru
          _
        // Predicated region
        $region21: #{conv_block.1} parent=11 // pred_check
          %p171 = pneg %p103
        $region22: #{conv_block.1} parent=11 // pred_check_branch
          %173 = sbr.rel (%p171) target = $region24
        $region23: #{conv_block.1} parent=11 // pred_region
          _
        $region24: #{conv_block.1} parent=11 // pred_fallthru
          _
        // Predicated region
        $region25: #{conv_block.1} parent=11 // pred_check
          %p174 = pneg %p124
        $region26: #{conv_block.1} parent=11 // pred_check_branch
          %176 = sbr.rel (%p174) target = $region28
        $region27: #{conv_block.1} parent=11 // pred_region
          _
        $region28: #{conv_block.1} parent=11 // pred_fallthru
          _
      $region12: #{conv_block.1} parent=5 // pred_fallthru
        _
      %p177 = scmp.lt.s32.totalorder %s14, 2
      // Predicated region
      $region29: #{conv_block.1} parent=5 // pred_check
        %p178 = pneg %p177
      $region30: #{conv_block.1} parent=5 // pred_check_branch
        %180 = sbr.rel (%p178) target = $region32
      $region31: #{conv_block.1} parent=5 // pred_region
        // Predicated region
        $region33: #{conv_block.1} parent=31 // pred_check
          %p181 = pneg %p34
        $region34: #{conv_block.1} parent=31 // pred_check_branch
          %183 = sbr.rel (%p181) target = $region36
        $region35: #{conv_block.1} parent=31 // pred_region
          %p184 = scmp.lt.s32.totalorder %s14, 1
          %s185 = scalar_select %p184, %s14, 1
          %s186 = smul.addr %s185, 54
          %s187 = smul.addr %s186, 8
          %s188 = scalar_lea.vmem %s0, %s187
        $region36: #{conv_block.1} parent=31 // pred_fallthru
          _
      $region32: #{conv_block.1} parent=5 // pred_fallthru
        _
      %p189 = scmp.le.s32.totalorder 1, %s14
      %p190 = scmp.lt.s32.totalorder %s14, 3
      %p191 = pnand %p189, %p190
      %p192 = pneg %p191
      // Predicated region
      $region37: #{conv_block.1} parent=5 // pred_check
        _
      $region38: #{conv_block.1} parent=5 // pred_check_branch
        %194 = sbr.rel (%p191) target = $region40
      $region39: #{conv_block.1} parent=5 // pred_region
        %s195 = ssub.s32 %s14, 1
        %p196 = scmp.lt.s32.totalorder %s19, 1
        %s197 = scalar_select %p196, %s19, 1
        %s198 = smul.addr %s197, 54
        %s199 = smul.addr %s198, 8
        %s200 = scalar_lea.vmem %s0, %s199
        %p201 = pneg %p40
        %p202 = pneg %p37
        %p203 = pneg %p61
        %p204 = pneg %p58
        %p205 = pneg %p82
        %p206 = pneg %p79
        %p207 = pneg %p103
        %p208 = pneg %p100
        %p209 = pneg %p124
        %p210 = pneg %p121
        %p211 = pneg %p150
        %p212 = pneg %p147
        %s213 = sand.u32 %s137, 1
        %s214 = scalar_lea.sflag [#allocation4], %s213
        %s215 = sand.u32 %s137, 1
        %s216 = smul.addr %s215, 256
        %s217 = scalar_lea.vmem [#allocation3], %s216
        %p218 = scmp.lt.s32.totalorder %s19, 1
        %s219 = scalar_select %p218, %s19, 1
        %s220 = smul.addr %s219, 54
        %s221 = smul.addr %s220, 8
        %s222 = scalar_lea.vmem %s0, %s221
        %vm224 = vcmask 261120
        %225 = vst.msk [vmem:[#allocation2] sm:$0xff] %vm224, 0.0
        %226 = vst.msk [vmem:[#allocation2 + $0x8] sm:$0xff] %vm224, 0.0
        %vm227 = vcmask 254976
        %228 = vst.msk [vmem:[#allocation2 + $0x10] sm:$0x3] %vm227, 0.0
        %229 = vst.msk [vmem:[#allocation2 + $0x18] sm:$0xff] %vm224, 0.0
        %230 = vst.msk [vmem:[#allocation2 + $0x20] sm:$0xff] %vm224, 0.0
        %231 = vst.msk [vmem:[#allocation2 + $0x28] sm:$0x3] %vm227, 0.0
        %232 = vst.msk [vmem:[#allocation2 + $0x30] sm:$0xff] %vm224, 0.0
        %233 = vst.msk [vmem:[#allocation2 + $0x38] sm:$0xff] %vm224, 0.0
        %234 = vst.msk [vmem:[#allocation2 + $0x40] sm:$0x3] %vm227, 0.0
        %235 = vst.msk [vmem:[#allocation2 + $0x48] sm:$0xff] %vm224, 0.0
        %236 = vst.msk [vmem:[#allocation2 + $0x50] sm:$0xff] %vm224, 0.0
        %237 = vst.msk [vmem:[#allocation2 + $0x58] sm:$0x3] %vm227, 0.0
        %238 = vst.msk [vmem:[#allocation2 + $0x60] sm:$0xff] %vm224, 0.0
        %239 = vst.msk [vmem:[#allocation2 + $0x68] sm:$0xff] %vm224, 0.0
        %240 = vst.msk [vmem:[#allocation2 + $0x70] sm:$0x3] %vm227, 0.0
        %241 = vst.msk [vmem:[#allocation2 + $0x78] sm:$0xff] %vm224, 0.0
        %242 = vst.msk [vmem:[#allocation2 + $0x80] sm:$0xff] %vm224, 0.0
        %243 = vst.msk [vmem:[#allocation2 + $0x88] sm:$0x3] %vm227, 0.0
        %244 = vst.msk [vmem:[#allocation2 + $0x90] sm:$0xff] %vm224, 0.0
        %245 = vst.msk [vmem:[#allocation2 + $0x98] sm:$0xff] %vm224, 0.0
        %246 = vst.msk [vmem:[#allocation2 + $0xa0] sm:$0x3] %vm227, 0.0
        %247 = vst.msk [vmem:[#allocation2 + $0xa8] sm:$0xff] %vm224, 0.0
        %248 = vst.msk [vmem:[#allocation2 + $0xb0] sm:$0xff] %vm224, 0.0
        %249 = vst.msk [vmem:[#allocation2 + $0xb8] sm:$0x3] %vm227, 0.0
        %250 = vst.msk [vmem:[#allocation2 + $0xc0] sm:$0xff] %vm224, 0.0
        %251 = vst.msk [vmem:[#allocation2 + $0xc8] sm:$0xff] %vm224, 0.0
        %252 = vst.msk [vmem:[#allocation2 + $0xd0] sm:$0x3] %vm227, 0.0
        %253 = vst.msk [vmem:[#allocation2 + $0xd8] sm:$0xff] %vm224, 0.0
        %254 = vst.msk [vmem:[#allocation2 + $0xe0] sm:$0xff] %vm224, 0.0
        %255 = vst.msk [vmem:[#allocation2 + $0xe8] sm:$0x3] %vm227, 0.0
        %256 = vst.msk [vmem:[#allocation2 + $0xf0] sm:$0xff] %vm224, 0.0
        %257 = vst.msk [vmem:[#allocation2 + $0xf8] sm:$0xff] %vm224, 0.0
        %258 = vst.msk [vmem:[#allocation2 + $0x100] sm:$0x3] %vm227, 0.0
        %259 = vst.msk [vmem:[#allocation2 + $0x108] sm:$0xff] %vm224, 0.0
        %260 = vst.msk [vmem:[#allocation2 + $0x110] sm:$0xff] %vm224, 0.0
        %261 = vst.msk [vmem:[#allocation2 + $0x118] sm:$0x3] %vm227, 0.0
        %262 = vst.msk [vmem:[#allocation2 + $0x120] sm:$0xff] %vm224, 0.0
        %263 = vst.msk [vmem:[#allocation2 + $0x128] sm:$0xff] %vm224, 0.0
        %264 = vst.msk [vmem:[#allocation2 + $0x130] sm:$0x3] %vm227, 0.0
        %265 = vst.msk [vmem:[#allocation2 + $0x138] sm:$0xff] %vm224, 0.0
        %266 = vst.msk [vmem:[#allocation2 + $0x140] sm:$0xff] %vm224, 0.0
        %267 = vst.msk [vmem:[#allocation2 + $0x148] sm:$0x3] %vm227, 0.0
        %268 = vst.msk [vmem:[#allocation2 + $0x150] sm:$0xff] %vm224, 0.0
        %269 = vst.msk [vmem:[#allocation2 + $0x158] sm:$0xff] %vm224, 0.0
        %270 = vst.msk [vmem:[#allocation2 + $0x160] sm:$0x3] %vm227, 0.0
        %271 = vst.msk [vmem:[#allocation2 + $0x168] sm:$0xff] %vm224, 0.0
        %272 = vst.msk [vmem:[#allocation2 + $0x170] sm:$0xff] %vm224, 0.0
        %273 = vst.msk [vmem:[#allocation2 + $0x178] sm:$0x3] %vm227, 0.0
        %274 = vst.msk [vmem:[#allocation2 + $0x180] sm:$0xff] %vm224, 0.0
        %275 = vst.msk [vmem:[#allocation2 + $0x188] sm:$0xff] %vm224, 0.0
        %276 = vst.msk [vmem:[#allocation2 + $0x190] sm:$0x3] %vm227, 0.0
        %277 = vst.msk [vmem:[#allocation2 + $0x198] sm:$0xff] %vm224, 0.0
        %278 = vst.msk [vmem:[#allocation2 + $0x1a0] sm:$0xff] %vm224, 0.0
        %279 = vst.msk [vmem:[#allocation2 + $0x1a8] sm:$0x3] %vm227, 0.0
        %v280 = vld [vmem:[%s222] sm:$0xff]
        %v281 = vld [vmem:[%s222 + $0x8] sm:$0xff]
        %v282 = vld [vmem:[%s222 + $0x18] sm:$0xff]
        %v283 = vld [vmem:[%s222 + $0x20] sm:$0xff]
        %v284 = vld [vmem:[%s222 + $0x30] sm:$0xff]
        %v285 = vld [vmem:[%s222 + $0x38] sm:$0xff]
        %v286 = vld [vmem:[%s222 + $0x48] sm:$0xff]
        %v287 = vld [vmem:[%s222 + $0x50] sm:$0xff]
        %v288 = vld [vmem:[%s222 + $0x60] sm:$0xff]
        %v289 = vld [vmem:[%s222 + $0x68] sm:$0xff]
        %v290 = vld [vmem:[%s222 + $0x78] sm:$0xff]
        %v291 = vld [vmem:[%s222 + $0x80] sm:$0xff]
        %v292 = vld [vmem:[%s222 + $0x90] sm:$0xff]
        %v293 = vld [vmem:[%s222 + $0x98] sm:$0xff]
        %v294 = vld [vmem:[%s222 + $0xa8] sm:$0xff]
        %v295 = vld [vmem:[%s222 + $0xb0] sm:$0xff]
        %v296 = vld [vmem:[%s222 + $0xc0] sm:$0xff]
        %v297 = vld [vmem:[%s222 + $0xc8] sm:$0xff]
        %v298 = vld [vmem:[%s222 + $0xd8] sm:$0xff]
        %v299 = vld [vmem:[%s222 + $0xe0] sm:$0xff]
        %v300 = vld [vmem:[%s222 + $0xf0] sm:$0xff]
        %v301 = vld [vmem:[%s222 + $0xf8] sm:$0xff]
        %v302 = vld [vmem:[%s222 + $0x108] sm:$0xff]
        %v303 = vld [vmem:[%s222 + $0x110] sm:$0xff]
        %v304 = vld [vmem:[%s222 + $0x120] sm:$0xff]
        %v305 = vld [vmem:[%s222 + $0x128] sm:$0xff]
        %v306 = vld [vmem:[%s222 + $0x138] sm:$0xff]
        %v307 = vld [vmem:[%s222 + $0x140] sm:$0xff]
        %v308 = vld [vmem:[%s222 + $0x150] sm:$0xff]
        %v309 = vld [vmem:[%s222 + $0x158] sm:$0xff]
        %v310 = vld [vmem:[%s222 + $0x168] sm:$0xff]
        %v311 = vld [vmem:[%s222 + $0x170] sm:$0xff]
        %v312 = vld [vmem:[%s222 + $0x1] sm:$0xff]
        %v313 = vld [vmem:[%s222 + $0x9] sm:$0xff]
        %v314 = vld [vmem:[%s222 + $0x19] sm:$0xff]
        %v315 = vld [vmem:[%s222 + $0x21] sm:$0xff]
        %v316 = vld [vmem:[%s222 + $0x31] sm:$0xff]
        %v317 = vld [vmem:[%s222 + $0x39] sm:$0xff]
        %v318 = vld [vmem:[%s222 + $0x49] sm:$0xff]
        %v319 = vld [vmem:[%s222 + $0x51] sm:$0xff]
        %v320 = vld [vmem:[%s222 + $0x61] sm:$0xff]
        %v321 = vld [vmem:[%s222 + $0x69] sm:$0xff]
        %v322 = vld [vmem:[%s222 + $0x79] sm:$0xff]
        %v323 = vld [vmem:[%s222 + $0x81] sm:$0xff]
        %v324 = vld [vmem:[%s222 + $0x91] sm:$0xff]
        %v325 = vld [vmem:[%s222 + $0x99] sm:$0xff]
        %v326 = vld [vmem:[%s222 + $0xa9] sm:$0xff]
        %v327 = vld [vmem:[%s222 + $0xb1] sm:$0xff]
        %v328 = vld [vmem:[%s222 + $0xc1] sm:$0xff]
        %v329 = vld [vmem:[%s222 + $0xc9] sm:$0xff]
        %v330 = vld [vmem:[%s222 + $0xd9] sm:$0xff]
        %v331 = vld [vmem:[%s222 + $0xe1] sm:$0xff]
        %v332 = vld [vmem:[%s222 + $0xf1] sm:$0xff]
        %v333 = vld [vmem:[%s222 + $0xf9] sm:$0xff]
        %v334 = vld [vmem:[%s222 + $0x109] sm:$0xff]
        %v335 = vld [vmem:[%s222 + $0x111] sm:$0xff]
        %v336 = vld [vmem:[%s222 + $0x121] sm:$0xff]
        %v337 = vld [vmem:[%s222 + $0x129] sm:$0xff]
        %v338 = vld [vmem:[%s222 + $0x139] sm:$0xff]
        %v339 = vld [vmem:[%s222 + $0x141] sm:$0xff]
        %v340 = vld [vmem:[%s222 + $0x151] sm:$0xff]
        %v341 = vld [vmem:[%s222 + $0x159] sm:$0xff]
        %v342 = vld [vmem:[%s222 + $0x169] sm:$0xff]
        %v343 = vld [vmem:[%s222 + $0x171] sm:$0xff]
        %v344 = vld [vmem:[%s222 + $0x2] sm:$0xff]
        %v345 = vld [vmem:[%s222 + $0xa] sm:$0xff]
        %v346 = vld [vmem:[%s222 + $0x1a] sm:$0xff]
        %v347 = vld [vmem:[%s222 + $0x22] sm:$0xff]
        %v348 = vld [vmem:[%s222 + $0x32] sm:$0xff]
        %v349 = vld [vmem:[%s222 + $0x3a] sm:$0xff]
        %v350 = vld [vmem:[%s222 + $0x4a] sm:$0xff]
        %v351 = vld [vmem:[%s222 + $0x52] sm:$0xff]
        %v352 = vld [vmem:[%s222 + $0x62] sm:$0xff]
        %v353 = vld [vmem:[%s222 + $0x6a] sm:$0xff]
        %v354 = vld [vmem:[%s222 + $0x7a] sm:$0xff]
        %v355 = vld [vmem:[%s222 + $0x82] sm:$0xff]
        %v356 = vld [vmem:[%s222 + $0x92] sm:$0xff]
        %v357 = vld [vmem:[%s222 + $0x9a] sm:$0xff]
        %v358 = vld [vmem:[%s222 + $0xaa] sm:$0xff]
        %v359 = vld [vmem:[%s222 + $0xb2] sm:$0xff]
        %v360 = vld [vmem:[%s222 + $0xc2] sm:$0xff]
        %v361 = vld [vmem:[%s222 + $0xca] sm:$0xff]
        %v362 = vld [vmem:[%s222 + $0xda] sm:$0xff]
        %v363 = vld [vmem:[%s222 + $0xe2] sm:$0xff]
        %v364 = vld [vmem:[%s222 + $0xf2] sm:$0xff]
        %v365 = vld [vmem:[%s222 + $0xfa] sm:$0xff]
        %v366 = vld [vmem:[%s222 + $0x10a] sm:$0xff]
        %v367 = vld [vmem:[%s222 + $0x112] sm:$0xff]
        %v368 = vld [vmem:[%s222 + $0x122] sm:$0xff]
        %v369 = vld [vmem:[%s222 + $0x12a] sm:$0xff]
        %v370 = vld [vmem:[%s222 + $0x13a] sm:$0xff]
        %v371 = vld [vmem:[%s222 + $0x142] sm:$0xff]
        %v372 = vld [vmem:[%s222 + $0x152] sm:$0xff]
        %v373 = vld [vmem:[%s222 + $0x15a] sm:$0xff]
        %v374 = vld [vmem:[%s222 + $0x16a] sm:$0xff]
        %v375 = vld [vmem:[%s222 + $0x172] sm:$0xff]
        %s376 = scalar_lea.vmem %s222, 24
        %v377 = vld [vmem:[%s376] sm:$0xff]
        %v378 = vld [vmem:[%s376 + $0x8] sm:$0xff]
        %v379 = vld [vmem:[%s376 + $0x18] sm:$0xff]
        %v380 = vld [vmem:[%s376 + $0x20] sm:$0xff]
        %v381 = vld [vmem:[%s376 + $0x30] sm:$0xff]
        %v382 = vld [vmem:[%s376 + $0x38] sm:$0xff]
        %v383 = vld [vmem:[%s376 + $0x48] sm:$0xff]
        %v384 = vld [vmem:[%s376 + $0x50] sm:$0xff]
        %v385 = vld [vmem:[%s376 + $0x60] sm:$0xff]
        %v386 = vld [vmem:[%s376 + $0x68] sm:$0xff]
        %v387 = vld [vmem:[%s376 + $0x78] sm:$0xff]
        %v388 = vld [vmem:[%s376 + $0x80] sm:$0xff]
        %v389 = vld [vmem:[%s376 + $0x90] sm:$0xff]
        %v390 = vld [vmem:[%s376 + $0x98] sm:$0xff]
        %v391 = vld [vmem:[%s376 + $0xa8] sm:$0xff]
        %v392 = vld [vmem:[%s376 + $0xb0] sm:$0xff]
        %v393 = vld [vmem:[%s376 + $0xc0] sm:$0xff]
        %v394 = vld [vmem:[%s376 + $0xc8] sm:$0xff]
        %v395 = vld [vmem:[%s376 + $0xd8] sm:$0xff]
        %v396 = vld [vmem:[%s376 + $0xe0] sm:$0xff]
        %v397 = vld [vmem:[%s376 + $0xf0] sm:$0xff]
        %v398 = vld [vmem:[%s376 + $0xf8] sm:$0xff]
        %v399 = vld [vmem:[%s376 + $0x108] sm:$0xff]
        %v400 = vld [vmem:[%s376 + $0x110] sm:$0xff]
        %v401 = vld [vmem:[%s376 + $0x120] sm:$0xff]
        %v402 = vld [vmem:[%s376 + $0x128] sm:$0xff]
        %v403 = vld [vmem:[%s376 + $0x138] sm:$0xff]
        %v404 = vld [vmem:[%s376 + $0x140] sm:$0xff]
        %v405 = vld [vmem:[%s376 + $0x150] sm:$0xff]
        %v406 = vld [vmem:[%s376 + $0x158] sm:$0xff]
        %v407 = vld [vmem:[%s376 + $0x168] sm:$0xff]
        %v408 = vld [vmem:[%s376 + $0x170] sm:$0xff]
        %v409 = vld [vmem:[%s376 + $0x1] sm:$0xff]
        %v410 = vld [vmem:[%s376 + $0x9] sm:$0xff]
        %v411 = vld [vmem:[%s376 + $0x19] sm:$0xff]
        %v412 = vld [vmem:[%s376 + $0x21] sm:$0xff]
        %v413 = vld [vmem:[%s376 + $0x31] sm:$0xff]
        %v414 = vld [vmem:[%s376 + $0x39] sm:$0xff]
        %v415 = vld [vmem:[%s376 + $0x49] sm:$0xff]
        %v416 = vld [vmem:[%s376 + $0x51] sm:$0xff]
        %v417 = vld [vmem:[%s376 + $0x61] sm:$0xff]
        %v418 = vld [vmem:[%s376 + $0x69] sm:$0xff]
        %v419 = vld [vmem:[%s376 + $0x79] sm:$0xff]
        %v420 = vld [vmem:[%s376 + $0x81] sm:$0xff]
        %v421 = vld [vmem:[%s376 + $0x91] sm:$0xff]
        %v422 = vld [vmem:[%s376 + $0x99] sm:$0xff]
        %v423 = vld [vmem:[%s376 + $0xa9] sm:$0xff]
        %v424 = vld [vmem:[%s376 + $0xb1] sm:$0xff]
        %v425 = vld [vmem:[%s376 + $0xc1] sm:$0xff]
        %v426 = vld [vmem:[%s376 + $0xc9] sm:$0xff]
        %v427 = vld [vmem:[%s376 + $0xd9] sm:$0xff]
        %v428 = vld [vmem:[%s376 + $0xe1] sm:$0xff]
        %v429 = vld [vmem:[%s376 + $0xf1] sm:$0xff]
        %v430 = vld [vmem:[%s376 + $0xf9] sm:$0xff]
        %v431 = vld [vmem:[%s376 + $0x109] sm:$0xff]
        %v432 = vld [vmem:[%s376 + $0x111] sm:$0xff]
        %v433 = vld [vmem:[%s376 + $0x121] sm:$0xff]
        %v434 = vld [vmem:[%s376 + $0x129] sm:$0xff]
        %v435 = vld [vmem:[%s376 + $0x139] sm:$0xff]
        %v436 = vld [vmem:[%s376 + $0x141] sm:$0xff]
        %v437 = vld [vmem:[%s376 + $0x151] sm:$0xff]
        %v438 = vld [vmem:[%s376 + $0x159] sm:$0xff]
        %v439 = vld [vmem:[%s376 + $0x169] sm:$0xff]
        %v440 = vld [vmem:[%s376 + $0x171] sm:$0xff]
        %v441 = vld [vmem:[%s376 + $0x2] sm:$0xff]
        %v442 = vld [vmem:[%s376 + $0xa] sm:$0xff]
        %v443 = vld [vmem:[%s376 + $0x1a] sm:$0xff]
        %v444 = vld [vmem:[%s376 + $0x22] sm:$0xff]
        %v445 = vld [vmem:[%s376 + $0x32] sm:$0xff]
        %v446 = vld [vmem:[%s376 + $0x3a] sm:$0xff]
        %v447 = vld [vmem:[%s376 + $0x4a] sm:$0xff]
        %v448 = vld [vmem:[%s376 + $0x52] sm:$0xff]
        %v449 = vld [vmem:[%s376 + $0x62] sm:$0xff]
        %v450 = vld [vmem:[%s376 + $0x6a] sm:$0xff]
        %v451 = vld [vmem:[%s376 + $0x7a] sm:$0xff]
        %v452 = vld [vmem:[%s376 + $0x82] sm:$0xff]
        %v453 = vld [vmem:[%s376 + $0x92] sm:$0xff]
        %v454 = vld [vmem:[%s376 + $0x9a] sm:$0xff]
        %v455 = vld [vmem:[%s376 + $0xaa] sm:$0xff]
        %v456 = vld [vmem:[%s376 + $0xb2] sm:$0xff]
        %v457 = vld [vmem:[%s376 + $0xc2] sm:$0xff]
        %v458 = vld [vmem:[%s376 + $0xca] sm:$0xff]
        %v459 = vld [vmem:[%s376 + $0xda] sm:$0xff]
        %v460 = vld [vmem:[%s376 + $0xe2] sm:$0xff]
        %v461 = vld [vmem:[%s376 + $0xf2] sm:$0xff]
        %v462 = vld [vmem:[%s376 + $0xfa] sm:$0xff]
        %v463 = vld [vmem:[%s376 + $0x10a] sm:$0xff]
        %v464 = vld [vmem:[%s376 + $0x112] sm:$0xff]
        %v465 = vld [vmem:[%s376 + $0x122] sm:$0xff]
        %v466 = vld [vmem:[%s376 + $0x12a] sm:$0xff]
        %v467 = vld [vmem:[%s376 + $0x13a] sm:$0xff]
        %v468 = vld [vmem:[%s376 + $0x142] sm:$0xff]
        %v469 = vld [vmem:[%s376 + $0x152] sm:$0xff]
        %v470 = vld [vmem:[%s376 + $0x15a] sm:$0xff]
        %v471 = vld [vmem:[%s376 + $0x16a] sm:$0xff]
        %v472 = vld [vmem:[%s376 + $0x172] sm:$0xff]
        %s473 = scalar_lea.vmem %s222, 48
        %v474 = vld [vmem:[%s473] sm:$0xff]
        %v475 = vld [vmem:[%s473 + $0x8] sm:$0xff]
        %v476 = vld [vmem:[%s473 + $0x18] sm:$0xff]
        %v477 = vld [vmem:[%s473 + $0x20] sm:$0xff]
        %v478 = vld [vmem:[%s473 + $0x30] sm:$0xff]
        %v479 = vld [vmem:[%s473 + $0x38] sm:$0xff]
        %v480 = vld [vmem:[%s473 + $0x48] sm:$0xff]
        %v481 = vld [vmem:[%s473 + $0x50] sm:$0xff]
        %v482 = vld [vmem:[%s473 + $0x60] sm:$0xff]
        %v483 = vld [vmem:[%s473 + $0x68] sm:$0xff]
        %v484 = vld [vmem:[%s473 + $0x78] sm:$0xff]
        %v485 = vld [vmem:[%s473 + $0x80] sm:$0xff]
        %v486 = vld [vmem:[%s473 + $0x90] sm:$0xff]
        %v487 = vld [vmem:[%s473 + $0x98] sm:$0xff]
        %v488 = vld [vmem:[%s473 + $0xa8] sm:$0xff]
        %v489 = vld [vmem:[%s473 + $0xb0] sm:$0xff]
        %v490 = vld [vmem:[%s473 + $0xc0] sm:$0xff]
        %v491 = vld [vmem:[%s473 + $0xc8] sm:$0xff]
        %v492 = vld [vmem:[%s473 + $0xd8] sm:$0xff]
        %v493 = vld [vmem:[%s473 + $0xe0] sm:$0xff]
        %v494 = vld [vmem:[%s473 + $0xf0] sm:$0xff]
        %v495 = vld [vmem:[%s473 + $0xf8] sm:$0xff]
        %v496 = vld [vmem:[%s473 + $0x108] sm:$0xff]
        %v497 = vld [vmem:[%s473 + $0x110] sm:$0xff]
        %v498 = vld [vmem:[%s473 + $0x120] sm:$0xff]
        %v499 = vld [vmem:[%s473 + $0x128] sm:$0xff]
        %v500 = vld [vmem:[%s473 + $0x138] sm:$0xff]
        %v501 = vld [vmem:[%s473 + $0x140] sm:$0xff]
        %v502 = vld [vmem:[%s473 + $0x150] sm:$0xff]
        %v503 = vld [vmem:[%s473 + $0x158] sm:$0xff]
        %v504 = vld [vmem:[%s473 + $0x168] sm:$0xff]
        %v505 = vld [vmem:[%s473 + $0x170] sm:$0xff]
        %v506 = vld [vmem:[%s473 + $0x1] sm:$0xff]
        %v507 = vld [vmem:[%s473 + $0x9] sm:$0xff]
        %v508 = vld [vmem:[%s473 + $0x19] sm:$0xff]
        %v509 = vld [vmem:[%s473 + $0x21] sm:$0xff]
        %v510 = vld [vmem:[%s473 + $0x31] sm:$0xff]
        %v511 = vld [vmem:[%s473 + $0x39] sm:$0xff]
        %v512 = vld [vmem:[%s473 + $0x49] sm:$0xff]
        %v513 = vld [vmem:[%s473 + $0x51] sm:$0xff]
        %v514 = vld [vmem:[%s473 + $0x61] sm:$0xff]
        %v515 = vld [vmem:[%s473 + $0x69] sm:$0xff]
        %v516 = vld [vmem:[%s473 + $0x79] sm:$0xff]
        %v517 = vld [vmem:[%s473 + $0x81] sm:$0xff]
        %v518 = vld [vmem:[%s473 + $0x91] sm:$0xff]
        %v519 = vld [vmem:[%s473 + $0x99] sm:$0xff]
        %v520 = vld [vmem:[%s473 + $0xa9] sm:$0xff]
        %v521 = vld [vmem:[%s473 + $0xb1] sm:$0xff]
        %v522 = vld [vmem:[%s473 + $0xc1] sm:$0xff]
        %v523 = vld [vmem:[%s473 + $0xc9] sm:$0xff]
        %v524 = vld [vmem:[%s473 + $0xd9] sm:$0xff]
        %v525 = vld [vmem:[%s473 + $0xe1] sm:$0xff]
        %v526 = vld [vmem:[%s473 + $0xf1] sm:$0xff]
        %v527 = vld [vmem:[%s473 + $0xf9] sm:$0xff]
        %v528 = vld [vmem:[%s473 + $0x109] sm:$0xff]
        %v529 = vld [vmem:[%s473 + $0x111] sm:$0xff]
        %v530 = vld [vmem:[%s473 + $0x121] sm:$0xff]
        %v531 = vld [vmem:[%s473 + $0x129] sm:$0xff]
        %v532 = vld [vmem:[%s473 + $0x139] sm:$0xff]
        %v533 = vld [vmem:[%s473 + $0x141] sm:$0xff]
        %v534 = vld [vmem:[%s473 + $0x151] sm:$0xff]
        %v535 = vld [vmem:[%s473 + $0x159] sm:$0xff]
        %v536 = vld [vmem:[%s473 + $0x169] sm:$0xff]
        %v537 = vld [vmem:[%s473 + $0x171] sm:$0xff]
        %v538 = vld [vmem:[%s473 + $0x2] sm:$0xff]
        %v539 = vld [vmem:[%s473 + $0xa] sm:$0xff]
        %v540 = vld [vmem:[%s473 + $0x1a] sm:$0xff]
        %v541 = vld [vmem:[%s473 + $0x22] sm:$0xff]
        %v542 = vld [vmem:[%s473 + $0x32] sm:$0xff]
        %v543 = vld [vmem:[%s473 + $0x3a] sm:$0xff]
        %v544 = vld [vmem:[%s473 + $0x4a] sm:$0xff]
        %v545 = vld [vmem:[%s473 + $0x52] sm:$0xff]
        %v546 = vld [vmem:[%s473 + $0x62] sm:$0xff]
        %v547 = vld [vmem:[%s473 + $0x6a] sm:$0xff]
        %v548 = vld [vmem:[%s473 + $0x7a] sm:$0xff]
        %v549 = vld [vmem:[%s473 + $0x82] sm:$0xff]
        %v550 = vld [vmem:[%s473 + $0x92] sm:$0xff]
        %v551 = vld [vmem:[%s473 + $0x9a] sm:$0xff]
        %v552 = vld [vmem:[%s473 + $0xaa] sm:$0xff]
        %v553 = vld [vmem:[%s473 + $0xb2] sm:$0xff]
        %v554 = vld [vmem:[%s473 + $0xc2] sm:$0xff]
        %v555 = vld [vmem:[%s473 + $0xca] sm:$0xff]
        %v556 = vld [vmem:[%s473 + $0xda] sm:$0xff]
        %v557 = vld [vmem:[%s473 + $0xe2] sm:$0xff]
        %v558 = vld [vmem:[%s473 + $0xf2] sm:$0xff]
        %v559 = vld [vmem:[%s473 + $0xfa] sm:$0xff]
        %v560 = vld [vmem:[%s473 + $0x10a] sm:$0xff]
        %v561 = vld [vmem:[%s473 + $0x112] sm:$0xff]
        %v562 = vld [vmem:[%s473 + $0x122] sm:$0xff]
        %v563 = vld [vmem:[%s473 + $0x12a] sm:$0xff]
        %v564 = vld [vmem:[%s473 + $0x13a] sm:$0xff]
        %v565 = vld [vmem:[%s473 + $0x142] sm:$0xff]
        %v566 = vld [vmem:[%s473 + $0x152] sm:$0xff]
        %v567 = vld [vmem:[%s473 + $0x15a] sm:$0xff]
        %v568 = vld [vmem:[%s473 + $0x16a] sm:$0xff]
        %v569 = vld [vmem:[%s473 + $0x172] sm:$0xff]
        %602 = vrot.lane.b32.xlu0 %v312, 4
        %v603 = vpop.permute.xlu0 %602
        %604 = vrot.lane.b32.xlu0 %v313, 4
        %v605 = vpop.permute.xlu0 %604
        %606 = vrot.lane.b32.xlu0 %v314, 4
        %v607 = vpop.permute.xlu0 %606
        %608 = vrot.lane.b32.xlu0 %v315, 4
        %v609 = vpop.permute.xlu0 %608
        %610 = vrot.lane.b32.xlu0 %v316, 4
        %v611 = vpop.permute.xlu0 %610
        %612 = vrot.lane.b32.xlu0 %v317, 4
        %v613 = vpop.permute.xlu0 %612
        %614 = vrot.lane.b32.xlu0 %v318, 4
        %v615 = vpop.permute.xlu0 %614
        %616 = vrot.lane.b32.xlu0 %v319, 4
        %v617 = vpop.permute.xlu0 %616
        %618 = vrot.lane.b32.xlu0 %v320, 4
        %v619 = vpop.permute.xlu0 %618
        %620 = vrot.lane.b32.xlu0 %v321, 4
        %v621 = vpop.permute.xlu0 %620
        %622 = vrot.lane.b32.xlu0 %v322, 4
        %v623 = vpop.permute.xlu0 %622
        %624 = vrot.lane.b32.xlu0 %v323, 4
        %v625 = vpop.permute.xlu0 %624
        %626 = vrot.lane.b32.xlu0 %v324, 4
        %v627 = vpop.permute.xlu0 %626
        %628 = vrot.lane.b32.xlu0 %v325, 4
        %v629 = vpop.permute.xlu0 %628
        %630 = vrot.lane.b32.xlu0 %v326, 4
        %v631 = vpop.permute.xlu0 %630
        %632 = vrot.lane.b32.xlu0 %v327, 4
        %v633 = vpop.permute.xlu0 %632
        %634 = vrot.lane.b32.xlu0 %v328, 4
        %v635 = vpop.permute.xlu0 %634
        %636 = vrot.lane.b32.xlu0 %v329, 4
        %v637 = vpop.permute.xlu0 %636
        %638 = vrot.lane.b32.xlu0 %v330, 4
        %v639 = vpop.permute.xlu0 %638
        %640 = vrot.lane.b32.xlu0 %v331, 4
        %v641 = vpop.permute.xlu0 %640
        %642 = vrot.lane.b32.xlu0 %v332, 4
        %v643 = vpop.permute.xlu0 %642
        %644 = vrot.lane.b32.xlu0 %v333, 4
        %v645 = vpop.permute.xlu0 %644
        %646 = vrot.lane.b32.xlu0 %v334, 4
        %v647 = vpop.permute.xlu0 %646
        %648 = vrot.lane.b32.xlu0 %v335, 4
        %v649 = vpop.permute.xlu0 %648
        %650 = vrot.lane.b32.xlu0 %v336, 4
        %v651 = vpop.permute.xlu0 %650
        %652 = vrot.lane.b32.xlu0 %v337, 4
        %v653 = vpop.permute.xlu0 %652
        %654 = vrot.lane.b32.xlu0 %v338, 4
        %v655 = vpop.permute.xlu0 %654
        %656 = vrot.lane.b32.xlu0 %v339, 4
        %v657 = vpop.permute.xlu0 %656
        %658 = vrot.lane.b32.xlu0 %v340, 4
        %v659 = vpop.permute.xlu0 %658
        %660 = vrot.lane.b32.xlu0 %v341, 4
        %v661 = vpop.permute.xlu0 %660
        %662 = vrot.lane.b32.xlu0 %v342, 4
        %v663 = vpop.permute.xlu0 %662
        %664 = vrot.lane.b32.xlu0 %v343, 4
        %v665 = vpop.permute.xlu0 %664
        %730 = vrot.lane.b32.xlu0 %v344, 8
        %v731 = vpop.permute.xlu0 %730
        %732 = vrot.lane.b32.xlu0 %v345, 8
        %v733 = vpop.permute.xlu0 %732
        %734 = vrot.lane.b32.xlu0 %v346, 8
        %v735 = vpop.permute.xlu0 %734
        %736 = vrot.lane.b32.xlu0 %v347, 8
        %v737 = vpop.permute.xlu0 %736
        %738 = vrot.lane.b32.xlu0 %v348, 8
        %v739 = vpop.permute.xlu0 %738
        %740 = vrot.lane.b32.xlu0 %v349, 8
        %v741 = vpop.permute.xlu0 %740
        %742 = vrot.lane.b32.xlu0 %v350, 8
        %v743 = vpop.permute.xlu0 %742
        %744 = vrot.lane.b32.xlu0 %v351, 8
        %v745 = vpop.permute.xlu0 %744
        %746 = vrot.lane.b32.xlu0 %v352, 8
        %v747 = vpop.permute.xlu0 %746
        %748 = vrot.lane.b32.xlu0 %v353, 8
        %v749 = vpop.permute.xlu0 %748
        %750 = vrot.lane.b32.xlu0 %v354, 8
        %v751 = vpop.permute.xlu0 %750
        %752 = vrot.lane.b32.xlu0 %v355, 8
        %v753 = vpop.permute.xlu0 %752
        %754 = vrot.lane.b32.xlu0 %v356, 8
        %v755 = vpop.permute.xlu0 %754
        %756 = vrot.lane.b32.xlu0 %v357, 8
        %v757 = vpop.permute.xlu0 %756
        %758 = vrot.lane.b32.xlu0 %v358, 8
        %v759 = vpop.permute.xlu0 %758
        %760 = vrot.lane.b32.xlu0 %v359, 8
        %v761 = vpop.permute.xlu0 %760
        %762 = vrot.lane.b32.xlu0 %v360, 8
        %v763 = vpop.permute.xlu0 %762
        %764 = vrot.lane.b32.xlu0 %v361, 8
        %v765 = vpop.permute.xlu0 %764
        %766 = vrot.lane.b32.xlu0 %v362, 8
        %v767 = vpop.permute.xlu0 %766
        %768 = vrot.lane.b32.xlu0 %v363, 8
        %v769 = vpop.permute.xlu0 %768
        %770 = vrot.lane.b32.xlu0 %v364, 8
        %v771 = vpop.permute.xlu0 %770
        %772 = vrot.lane.b32.xlu0 %v365, 8
        %v773 = vpop.permute.xlu0 %772
        %774 = vrot.lane.b32.xlu0 %v366, 8
        %v775 = vpop.permute.xlu0 %774
        %776 = vrot.lane.b32.xlu0 %v367, 8
        %v777 = vpop.permute.xlu0 %776
        %778 = vrot.lane.b32.xlu0 %v368, 8
        %v779 = vpop.permute.xlu0 %778
        %780 = vrot.lane.b32.xlu0 %v369, 8
        %v781 = vpop.permute.xlu0 %780
        %782 = vrot.lane.b32.xlu0 %v370, 8
        %v783 = vpop.permute.xlu0 %782
        %784 = vrot.lane.b32.xlu0 %v371, 8
        %v785 = vpop.permute.xlu0 %784
        %786 = vrot.lane.b32.xlu0 %v372, 8
        %v787 = vpop.permute.xlu0 %786
        %788 = vrot.lane.b32.xlu0 %v373, 8
        %v789 = vpop.permute.xlu0 %788
        %790 = vrot.lane.b32.xlu0 %v374, 8
        %v791 = vpop.permute.xlu0 %790
        %792 = vrot.lane.b32.xlu0 %v375, 8
        %v793 = vpop.permute.xlu0 %792
        %858 = vrot.lane.b32.xlu0 %v377, 12
        %v859 = vpop.permute.xlu0 %858
        %860 = vrot.lane.b32.xlu0 %v378, 12
        %v861 = vpop.permute.xlu0 %860
        %862 = vrot.lane.b32.xlu0 %v379, 12
        %v863 = vpop.permute.xlu0 %862
        %864 = vrot.lane.b32.xlu0 %v380, 12
        %v865 = vpop.permute.xlu0 %864
        %866 = vrot.lane.b32.xlu0 %v381, 12
        %v867 = vpop.permute.xlu0 %866
        %868 = vrot.lane.b32.xlu0 %v382, 12
        %v869 = vpop.permute.xlu0 %868
        %870 = vrot.lane.b32.xlu0 %v383, 12
        %v871 = vpop.permute.xlu0 %870
        %872 = vrot.lane.b32.xlu0 %v384, 12
        %v873 = vpop.permute.xlu0 %872
        %874 = vrot.lane.b32.xlu0 %v385, 12
        %v875 = vpop.permute.xlu0 %874
        %876 = vrot.lane.b32.xlu0 %v386, 12
        %v877 = vpop.permute.xlu0 %876
        %878 = vrot.lane.b32.xlu0 %v387, 12
        %v879 = vpop.permute.xlu0 %878
        %880 = vrot.lane.b32.xlu0 %v388, 12
        %v881 = vpop.permute.xlu0 %880
        %882 = vrot.lane.b32.xlu0 %v389, 12
        %v883 = vpop.permute.xlu0 %882
        %884 = vrot.lane.b32.xlu0 %v390, 12
        %v885 = vpop.permute.xlu0 %884
        %886 = vrot.lane.b32.xlu0 %v391, 12
        %v887 = vpop.permute.xlu0 %886
        %888 = vrot.lane.b32.xlu0 %v392, 12
        %v889 = vpop.permute.xlu0 %888
        %890 = vrot.lane.b32.xlu0 %v393, 12
        %v891 = vpop.permute.xlu0 %890
        %892 = vrot.lane.b32.xlu0 %v394, 12
        %v893 = vpop.permute.xlu0 %892
        %894 = vrot.lane.b32.xlu0 %v395, 12
        %v895 = vpop.permute.xlu0 %894
        %896 = vrot.lane.b32.xlu0 %v396, 12
        %v897 = vpop.permute.xlu0 %896
        %898 = vrot.lane.b32.xlu0 %v397, 12
        %v899 = vpop.permute.xlu0 %898
        %900 = vrot.lane.b32.xlu0 %v398, 12
        %v901 = vpop.permute.xlu0 %900
        %902 = vrot.lane.b32.xlu0 %v399, 12
        %v903 = vpop.permute.xlu0 %902
        %904 = vrot.lane.b32.xlu0 %v400, 12
        %v905 = vpop.permute.xlu0 %904
        %906 = vrot.lane.b32.xlu0 %v401, 12
        %v907 = vpop.permute.xlu0 %906
        %908 = vrot.lane.b32.xlu0 %v402, 12
        %v909 = vpop.permute.xlu0 %908
        %910 = vrot.lane.b32.xlu0 %v403, 12
        %v911 = vpop.permute.xlu0 %910
        %912 = vrot.lane.b32.xlu0 %v404, 12
        %v913 = vpop.permute.xlu0 %912
        %914 = vrot.lane.b32.xlu0 %v405, 12
        %v915 = vpop.permute.xlu0 %914
        %916 = vrot.lane.b32.xlu0 %v406, 12
        %v917 = vpop.permute.xlu0 %916
        %918 = vrot.lane.b32.xlu0 %v407, 12
        %v919 = vpop.permute.xlu0 %918
        %920 = vrot.lane.b32.xlu0 %v408, 12
        %v921 = vpop.permute.xlu0 %920
        %986 = vrot.lane.b32.xlu0 %v409, 16
        %v987 = vpop.permute.xlu0 %986
        %988 = vrot.lane.b32.xlu0 %v410, 16
        %v989 = vpop.permute.xlu0 %988
        %990 = vrot.lane.b32.xlu0 %v411, 16
        %v991 = vpop.permute.xlu0 %990
        %992 = vrot.lane.b32.xlu0 %v412, 16
        %v993 = vpop.permute.xlu0 %992
        %994 = vrot.lane.b32.xlu0 %v413, 16
        %v995 = vpop.permute.xlu0 %994
        %996 = vrot.lane.b32.xlu0 %v414, 16
        %v997 = vpop.permute.xlu0 %996
        %998 = vrot.lane.b32.xlu0 %v415, 16
        %v999 = vpop.permute.xlu0 %998
        %1000 = vrot.lane.b32.xlu0 %v416, 16
        %v1001 = vpop.permute.xlu0 %1000
        %1002 = vrot.lane.b32.xlu0 %v417, 16
        %v1003 = vpop.permute.xlu0 %1002
        %1004 = vrot.lane.b32.xlu0 %v418, 16
        %v1005 = vpop.permute.xlu0 %1004
        %1006 = vrot.lane.b32.xlu0 %v419, 16
        %v1007 = vpop.permute.xlu0 %1006
        %1008 = vrot.lane.b32.xlu0 %v420, 16
        %v1009 = vpop.permute.xlu0 %1008
        %1010 = vrot.lane.b32.xlu0 %v421, 16
        %v1011 = vpop.permute.xlu0 %1010
        %1012 = vrot.lane.b32.xlu0 %v422, 16
        %v1013 = vpop.permute.xlu0 %1012
        %1014 = vrot.lane.b32.xlu0 %v423, 16
        %v1015 = vpop.permute.xlu0 %1014
        %1016 = vrot.lane.b32.xlu0 %v424, 16
        %v1017 = vpop.permute.xlu0 %1016
        %1018 = vrot.lane.b32.xlu0 %v425, 16
        %v1019 = vpop.permute.xlu0 %1018
        %1020 = vrot.lane.b32.xlu0 %v426, 16
        %v1021 = vpop.permute.xlu0 %1020
        %1022 = vrot.lane.b32.xlu0 %v427, 16
        %v1023 = vpop.permute.xlu0 %1022
        %1024 = vrot.lane.b32.xlu0 %v428, 16
        %v1025 = vpop.permute.xlu0 %1024
        %1026 = vrot.lane.b32.xlu0 %v429, 16
        %v1027 = vpop.permute.xlu0 %1026
        %1028 = vrot.lane.b32.xlu0 %v430, 16
        %v1029 = vpop.permute.xlu0 %1028
        %1030 = vrot.lane.b32.xlu0 %v431, 16
        %v1031 = vpop.permute.xlu0 %1030
        %1032 = vrot.lane.b32.xlu0 %v432, 16
        %v1033 = vpop.permute.xlu0 %1032
        %1034 = vrot.lane.b32.xlu0 %v433, 16
        %v1035 = vpop.permute.xlu0 %1034
        %1036 = vrot.lane.b32.xlu0 %v434, 16
        %v1037 = vpop.permute.xlu0 %1036
        %1038 = vrot.lane.b32.xlu0 %v435, 16
        %v1039 = vpop.permute.xlu0 %1038
        %1040 = vrot.lane.b32.xlu0 %v436, 16
        %v1041 = vpop.permute.xlu0 %1040
        %1042 = vrot.lane.b32.xlu0 %v437, 16
        %v1043 = vpop.permute.xlu0 %1042
        %1044 = vrot.lane.b32.xlu0 %v438, 16
        %v1045 = vpop.permute.xlu0 %1044
        %1046 = vrot.lane.b32.xlu0 %v439, 16
        %v1047 = vpop.permute.xlu0 %1046
        %1048 = vrot.lane.b32.xlu0 %v440, 16
        %v1049 = vpop.permute.xlu0 %1048
        %1114 = vrot.lane.b32.xlu0 %v441, 20
        %v1115 = vpop.permute.xlu0 %1114
        %1116 = vrot.lane.b32.xlu0 %v442, 20
        %v1117 = vpop.permute.xlu0 %1116
        %1118 = vrot.lane.b32.xlu0 %v443, 20
        %v1119 = vpop.permute.xlu0 %1118
        %1120 = vrot.lane.b32.xlu0 %v444, 20
        %v1121 = vpop.permute.xlu0 %1120
        %1122 = vrot.lane.b32.xlu0 %v445, 20
        %v1123 = vpop.permute.xlu0 %1122
        %1124 = vrot.lane.b32.xlu0 %v446, 20
        %v1125 = vpop.permute.xlu0 %1124
        %1126 = vrot.lane.b32.xlu0 %v447, 20
        %v1127 = vpop.permute.xlu0 %1126
        %1128 = vrot.lane.b32.xlu0 %v448, 20
        %v1129 = vpop.permute.xlu0 %1128
        %1130 = vrot.lane.b32.xlu0 %v449, 20
        %v1131 = vpop.permute.xlu0 %1130
        %1132 = vrot.lane.b32.xlu0 %v450, 20
        %v1133 = vpop.permute.xlu0 %1132
        %1134 = vrot.lane.b32.xlu0 %v451, 20
        %v1135 = vpop.permute.xlu0 %1134
        %1136 = vrot.lane.b32.xlu0 %v452, 20
        %v1137 = vpop.permute.xlu0 %1136
        %1138 = vrot.lane.b32.xlu0 %v453, 20
        %v1139 = vpop.permute.xlu0 %1138
        %1140 = vrot.lane.b32.xlu0 %v454, 20
        %v1141 = vpop.permute.xlu0 %1140
        %1142 = vrot.lane.b32.xlu0 %v455, 20
        %v1143 = vpop.permute.xlu0 %1142
        %1144 = vrot.lane.b32.xlu0 %v456, 20
        %v1145 = vpop.permute.xlu0 %1144
        %1146 = vrot.lane.b32.xlu0 %v457, 20
        %v1147 = vpop.permute.xlu0 %1146
        %1148 = vrot.lane.b32.xlu0 %v458, 20
        %v1149 = vpop.permute.xlu0 %1148
        %1150 = vrot.lane.b32.xlu0 %v459, 20
        %v1151 = vpop.permute.xlu0 %1150
        %1152 = vrot.lane.b32.xlu0 %v460, 20
        %v1153 = vpop.permute.xlu0 %1152
        %1154 = vrot.lane.b32.xlu0 %v461, 20
        %v1155 = vpop.permute.xlu0 %1154
        %1156 = vrot.lane.b32.xlu0 %v462, 20
        %v1157 = vpop.permute.xlu0 %1156
        %1158 = vrot.lane.b32.xlu0 %v463, 20
        %v1159 = vpop.permute.xlu0 %1158
        %1160 = vrot.lane.b32.xlu0 %v464, 20
        %v1161 = vpop.permute.xlu0 %1160
        %1162 = vrot.lane.b32.xlu0 %v465, 20
        %v1163 = vpop.permute.xlu0 %1162
        %1164 = vrot.lane.b32.xlu0 %v466, 20
        %v1165 = vpop.permute.xlu0 %1164
        %1166 = vrot.lane.b32.xlu0 %v467, 20
        %v1167 = vpop.permute.xlu0 %1166
        %1168 = vrot.lane.b32.xlu0 %v468, 20
        %v1169 = vpop.permute.xlu0 %1168
        %1170 = vrot.lane.b32.xlu0 %v469, 20
        %v1171 = vpop.permute.xlu0 %1170
        %1172 = vrot.lane.b32.xlu0 %v470, 20
        %v1173 = vpop.permute.xlu0 %1172
        %1174 = vrot.lane.b32.xlu0 %v471, 20
        %v1175 = vpop.permute.xlu0 %1174
        %1176 = vrot.lane.b32.xlu0 %v472, 20
        %v1177 = vpop.permute.xlu0 %1176
        %1242 = vrot.lane.b32.xlu0 %v474, 24
        %v1243 = vpop.permute.xlu0 %1242
        %1244 = vrot.lane.b32.xlu0 %v475, 24
        %v1245 = vpop.permute.xlu0 %1244
        %1246 = vrot.lane.b32.xlu0 %v476, 24
        %v1247 = vpop.permute.xlu0 %1246
        %1248 = vrot.lane.b32.xlu0 %v477, 24
        %v1249 = vpop.permute.xlu0 %1248
        %1250 = vrot.lane.b32.xlu0 %v478, 24
        %v1251 = vpop.permute.xlu0 %1250
        %1252 = vrot.lane.b32.xlu0 %v479, 24
        %v1253 = vpop.permute.xlu0 %1252
        %1254 = vrot.lane.b32.xlu0 %v480, 24
        %v1255 = vpop.permute.xlu0 %1254
        %1256 = vrot.lane.b32.xlu0 %v481, 24
        %v1257 = vpop.permute.xlu0 %1256
        %1258 = vrot.lane.b32.xlu0 %v482, 24
        %v1259 = vpop.permute.xlu0 %1258
        %1260 = vrot.lane.b32.xlu0 %v483, 24
        %v1261 = vpop.permute.xlu0 %1260
        %1262 = vrot.lane.b32.xlu0 %v484, 24
        %v1263 = vpop.permute.xlu0 %1262
        %1264 = vrot.lane.b32.xlu0 %v485, 24
        %v1265 = vpop.permute.xlu0 %1264
        %1266 = vrot.lane.b32.xlu0 %v486, 24
        %v1267 = vpop.permute.xlu0 %1266
        %1268 = vrot.lane.b32.xlu0 %v487, 24
        %v1269 = vpop.permute.xlu0 %1268
        %1270 = vrot.lane.b32.xlu0 %v488, 24
        %v1271 = vpop.permute.xlu0 %1270
        %1272 = vrot.lane.b32.xlu0 %v489, 24
        %v1273 = vpop.permute.xlu0 %1272
        %1274 = vrot.lane.b32.xlu0 %v490, 24
        %v1275 = vpop.permute.xlu0 %1274
        %1276 = vrot.lane.b32.xlu0 %v491, 24
        %v1277 = vpop.permute.xlu0 %1276
        %1278 = vrot.lane.b32.xlu0 %v492, 24
        %v1279 = vpop.permute.xlu0 %1278
        %1280 = vrot.lane.b32.xlu0 %v493, 24
        %v1281 = vpop.permute.xlu0 %1280
        %1282 = vrot.lane.b32.xlu0 %v494, 24
        %v1283 = vpop.permute.xlu0 %1282
        %1284 = vrot.lane.b32.xlu0 %v495, 24
        %v1285 = vpop.permute.xlu0 %1284
        %1286 = vrot.lane.b32.xlu0 %v496, 24
        %v1287 = vpop.permute.xlu0 %1286
        %1288 = vrot.lane.b32.xlu0 %v497, 24
        %v1289 = vpop.permute.xlu0 %1288
        %1290 = vrot.lane.b32.xlu0 %v498, 24
        %v1291 = vpop.permute.xlu0 %1290
        %1292 = vrot.lane.b32.xlu0 %v499, 24
        %v1293 = vpop.permute.xlu0 %1292
        %1294 = vrot.lane.b32.xlu0 %v500, 24
        %v1295 = vpop.permute.xlu0 %1294
        %1296 = vrot.lane.b32.xlu0 %v501, 24
        %v1297 = vpop.permute.xlu0 %1296
        %1298 = vrot.lane.b32.xlu0 %v502, 24
        %v1299 = vpop.permute.xlu0 %1298
        %1300 = vrot.lane.b32.xlu0 %v503, 24
        %v1301 = vpop.permute.xlu0 %1300
        %1302 = vrot.lane.b32.xlu0 %v504, 24
        %v1303 = vpop.permute.xlu0 %1302
        %1304 = vrot.lane.b32.xlu0 %v505, 24
        %v1305 = vpop.permute.xlu0 %1304
        %1370 = vrot.lane.b32.xlu0 %v506, 28
        %v1371 = vpop.permute.xlu0 %1370
        %1372 = vrot.lane.b32.xlu0 %v507, 28
        %v1373 = vpop.permute.xlu0 %1372
        %1374 = vrot.lane.b32.xlu0 %v508, 28
        %v1375 = vpop.permute.xlu0 %1374
        %1376 = vrot.lane.b32.xlu0 %v509, 28
        %v1377 = vpop.permute.xlu0 %1376
        %1378 = vrot.lane.b32.xlu0 %v510, 28
        %v1379 = vpop.permute.xlu0 %1378
        %1380 = vrot.lane.b32.xlu0 %v511, 28
        %v1381 = vpop.permute.xlu0 %1380
        %1382 = vrot.lane.b32.xlu0 %v512, 28
        %v1383 = vpop.permute.xlu0 %1382
        %1384 = vrot.lane.b32.xlu0 %v513, 28
        %v1385 = vpop.permute.xlu0 %1384
        %1386 = vrot.lane.b32.xlu0 %v514, 28
        %v1387 = vpop.permute.xlu0 %1386
        %1388 = vrot.lane.b32.xlu0 %v515, 28
        %v1389 = vpop.permute.xlu0 %1388
        %1390 = vrot.lane.b32.xlu0 %v516, 28
        %v1391 = vpop.permute.xlu0 %1390
        %1392 = vrot.lane.b32.xlu0 %v517, 28
        %v1393 = vpop.permute.xlu0 %1392
        %1394 = vrot.lane.b32.xlu0 %v518, 28
        %v1395 = vpop.permute.xlu0 %1394
        %1396 = vrot.lane.b32.xlu0 %v519, 28
        %v1397 = vpop.permute.xlu0 %1396
        %1398 = vrot.lane.b32.xlu0 %v520, 28
        %v1399 = vpop.permute.xlu0 %1398
        %1400 = vrot.lane.b32.xlu0 %v521, 28
        %v1401 = vpop.permute.xlu0 %1400
        %1402 = vrot.lane.b32.xlu0 %v522, 28
        %v1403 = vpop.permute.xlu0 %1402
        %1404 = vrot.lane.b32.xlu0 %v523, 28
        %v1405 = vpop.permute.xlu0 %1404
        %1406 = vrot.lane.b32.xlu0 %v524, 28
        %v1407 = vpop.permute.xlu0 %1406
        %1408 = vrot.lane.b32.xlu0 %v525, 28
        %v1409 = vpop.permute.xlu0 %1408
        %1410 = vrot.lane.b32.xlu0 %v526, 28
        %v1411 = vpop.permute.xlu0 %1410
        %1412 = vrot.lane.b32.xlu0 %v527, 28
        %v1413 = vpop.permute.xlu0 %1412
        %1414 = vrot.lane.b32.xlu0 %v528, 28
        %v1415 = vpop.permute.xlu0 %1414
        %1416 = vrot.lane.b32.xlu0 %v529, 28
        %v1417 = vpop.permute.xlu0 %1416
        %1418 = vrot.lane.b32.xlu0 %v530, 28
        %v1419 = vpop.permute.xlu0 %1418
        %1420 = vrot.lane.b32.xlu0 %v531, 28
        %v1421 = vpop.permute.xlu0 %1420
        %1422 = vrot.lane.b32.xlu0 %v532, 28
        %v1423 = vpop.permute.xlu0 %1422
        %1424 = vrot.lane.b32.xlu0 %v533, 28
        %v1425 = vpop.permute.xlu0 %1424
        %1426 = vrot.lane.b32.xlu0 %v534, 28
        %v1427 = vpop.permute.xlu0 %1426
        %1428 = vrot.lane.b32.xlu0 %v535, 28
        %v1429 = vpop.permute.xlu0 %1428
        %1430 = vrot.lane.b32.xlu0 %v536, 28
        %v1431 = vpop.permute.xlu0 %1430
        %1432 = vrot.lane.b32.xlu0 %v537, 28
        %v1433 = vpop.permute.xlu0 %1432
        %1498 = vrot.lane.b32.xlu0 %v538, 32
        %v1499 = vpop.permute.xlu0 %1498
        %1500 = vrot.lane.b32.xlu0 %v539, 32
        %v1501 = vpop.permute.xlu0 %1500
        %1502 = vrot.lane.b32.xlu0 %v540, 32
        %v1503 = vpop.permute.xlu0 %1502
        %1504 = vrot.lane.b32.xlu0 %v541, 32
        %v1505 = vpop.permute.xlu0 %1504
        %1506 = vrot.lane.b32.xlu0 %v542, 32
        %v1507 = vpop.permute.xlu0 %1506
        %1508 = vrot.lane.b32.xlu0 %v543, 32
        %v1509 = vpop.permute.xlu0 %1508
        %1510 = vrot.lane.b32.xlu0 %v544, 32
        %v1511 = vpop.permute.xlu0 %1510
        %1512 = vrot.lane.b32.xlu0 %v545, 32
        %v1513 = vpop.permute.xlu0 %1512
        %1514 = vrot.lane.b32.xlu0 %v546, 32
        %v1515 = vpop.permute.xlu0 %1514
        %1516 = vrot.lane.b32.xlu0 %v547, 32
        %v1517 = vpop.permute.xlu0 %1516
        %1518 = vrot.lane.b32.xlu0 %v548, 32
        %v1519 = vpop.permute.xlu0 %1518
        %1520 = vrot.lane.b32.xlu0 %v549, 32
        %v1521 = vpop.permute.xlu0 %1520
        %1522 = vrot.lane.b32.xlu0 %v550, 32
        %v1523 = vpop.permute.xlu0 %1522
        %1524 = vrot.lane.b32.xlu0 %v551, 32
        %v1525 = vpop.permute.xlu0 %1524
        %1526 = vrot.lane.b32.xlu0 %v552, 32
        %v1527 = vpop.permute.xlu0 %1526
        %1528 = vrot.lane.b32.xlu0 %v553, 32
        %v1529 = vpop.permute.xlu0 %1528
        %1530 = vrot.lane.b32.xlu0 %v554, 32
        %v1531 = vpop.permute.xlu0 %1530
        %1532 = vrot.lane.b32.xlu0 %v555, 32
        %v1533 = vpop.permute.xlu0 %1532
        %1534 = vrot.lane.b32.xlu0 %v556, 32
        %v1535 = vpop.permute.xlu0 %1534
        %1536 = vrot.lane.b32.xlu0 %v557, 32
        %v1537 = vpop.permute.xlu0 %1536
        %1538 = vrot.lane.b32.xlu0 %v558, 32
        %v1539 = vpop.permute.xlu0 %1538
        %1540 = vrot.lane.b32.xlu0 %v559, 32
        %v1541 = vpop.permute.xlu0 %1540
        %1542 = vrot.lane.b32.xlu0 %v560, 32
        %v1543 = vpop.permute.xlu0 %1542
        %1544 = vrot.lane.b32.xlu0 %v561, 32
        %v1545 = vpop.permute.xlu0 %1544
        %1546 = vrot.lane.b32.xlu0 %v562, 32
        %v1547 = vpop.permute.xlu0 %1546
        %1548 = vrot.lane.b32.xlu0 %v563, 32
        %v1549 = vpop.permute.xlu0 %1548
        %1550 = vrot.lane.b32.xlu0 %v564, 32
        %v1551 = vpop.permute.xlu0 %1550
        %1552 = vrot.lane.b32.xlu0 %v565, 32
        %v1553 = vpop.permute.xlu0 %1552
        %1554 = vrot.lane.b32.xlu0 %v566, 32
        %v1555 = vpop.permute.xlu0 %1554
        %1556 = vrot.lane.b32.xlu0 %v567, 32
        %v1557 = vpop.permute.xlu0 %1556
        %1558 = vrot.lane.b32.xlu0 %v568, 32
        %v1559 = vpop.permute.xlu0 %1558
        %1560 = vrot.lane.b32.xlu0 %v569, 32
        %v1561 = vpop.permute.xlu0 %1560
        %vm1594 = vcmask 31744
        %v1595 = vsel %vm1594, %v280, %v603
        %v1596 = vsel %vm1594, %v281, %v605
        %v1597 = vsel %vm1594, %v282, %v607
        %v1598 = vsel %vm1594, %v283, %v609
        %v1599 = vsel %vm1594, %v284, %v611
        %v1600 = vsel %vm1594, %v285, %v613
        %v1601 = vsel %vm1594, %v286, %v615
        %v1602 = vsel %vm1594, %v287, %v617
        %v1603 = vsel %vm1594, %v288, %v619
        %v1604 = vsel %vm1594, %v289, %v621
        %v1605 = vsel %vm1594, %v290, %v623
        %v1606 = vsel %vm1594, %v291, %v625
        %v1607 = vsel %vm1594, %v292, %v627
        %v1608 = vsel %vm1594, %v293, %v629
        %v1609 = vsel %vm1594, %v294, %v631
        %v1610 = vsel %vm1594, %v295, %v633
        %v1611 = vsel %vm1594, %v296, %v635
        %v1612 = vsel %vm1594, %v297, %v637
        %v1613 = vsel %vm1594, %v298, %v639
        %v1614 = vsel %vm1594, %v299, %v641
        %v1615 = vsel %vm1594, %v300, %v643
        %v1616 = vsel %vm1594, %v301, %v645
        %v1617 = vsel %vm1594, %v302, %v647
        %v1618 = vsel %vm1594, %v303, %v649
        %v1619 = vsel %vm1594, %v304, %v651
        %v1620 = vsel %vm1594, %v305, %v653
        %v1621 = vsel %vm1594, %v306, %v655
        %v1622 = vsel %vm1594, %v307, %v657
        %v1623 = vsel %vm1594, %v308, %v659
        %v1624 = vsel %vm1594, %v309, %v661
        %v1625 = vsel %vm1594, %v310, %v663
        %v1626 = vsel %vm1594, %v311, %v665
        %vm1627 = vcmask 64512
        %v1628 = vsel %vm1627, %v1595, %v731
        %v1629 = vsel %vm1627, %v1596, %v733
        %v1630 = vsel %vm1627, %v1597, %v735
        %v1631 = vsel %vm1627, %v1598, %v737
        %v1632 = vsel %vm1627, %v1599, %v739
        %v1633 = vsel %vm1627, %v1600, %v741
        %v1634 = vsel %vm1627, %v1601, %v743
        %v1635 = vsel %vm1627, %v1602, %v745
        %v1636 = vsel %vm1627, %v1603, %v747
        %v1637 = vsel %vm1627, %v1604, %v749
        %v1638 = vsel %vm1627, %v1605, %v751
        %v1639 = vsel %vm1627, %v1606, %v753
        %v1640 = vsel %vm1627, %v1607, %v755
        %v1641 = vsel %vm1627, %v1608, %v757
        %v1642 = vsel %vm1627, %v1609, %v759
        %v1643 = vsel %vm1627, %v1610, %v761
        %v1644 = vsel %vm1627, %v1611, %v763
        %v1645 = vsel %vm1627, %v1612, %v765
        %v1646 = vsel %vm1627, %v1613, %v767
        %v1647 = vsel %vm1627, %v1614, %v769
        %v1648 = vsel %vm1627, %v1615, %v771
        %v1649 = vsel %vm1627, %v1616, %v773
        %v1650 = vsel %vm1627, %v1617, %v775
        %v1651 = vsel %vm1627, %v1618, %v777
        %v1652 = vsel %vm1627, %v1619, %v779
        %v1653 = vsel %vm1627, %v1620, %v781
        %v1654 = vsel %vm1627, %v1621, %v783
        %v1655 = vsel %vm1627, %v1622, %v785
        %v1656 = vsel %vm1627, %v1623, %v787
        %v1657 = vsel %vm1627, %v1624, %v789
        %v1658 = vsel %vm1627, %v1625, %v791
        %v1659 = vsel %vm1627, %v1626, %v793
        %vm1660 = vcmask 97280
        %v1661 = vsel %vm1660, %v1628, %v859
        %v1662 = vsel %vm1660, %v1629, %v861
        %v1663 = vsel %vm1660, %v1630, %v863
        %v1664 = vsel %vm1660, %v1631, %v865
        %v1665 = vsel %vm1660, %v1632, %v867
        %v1666 = vsel %vm1660, %v1633, %v869
        %v1667 = vsel %vm1660, %v1634, %v871
        %v1668 = vsel %vm1660, %v1635, %v873
        %v1669 = vsel %vm1660, %v1636, %v875
        %v1670 = vsel %vm1660, %v1637, %v877
        %v1671 = vsel %vm1660, %v1638, %v879
        %v1672 = vsel %vm1660, %v1639, %v881
        %v1673 = vsel %vm1660, %v1640, %v883
        %v1674 = vsel %vm1660, %v1641, %v885
        %v1675 = vsel %vm1660, %v1642, %v887
        %v1676 = vsel %vm1660, %v1643, %v889
        %v1677 = vsel %vm1660, %v1644, %v891
        %v1678 = vsel %vm1660, %v1645, %v893
        %v1679 = vsel %vm1660, %v1646, %v895
        %v1680 = vsel %vm1660, %v1647, %v897
        %v1681 = vsel %vm1660, %v1648, %v899
        %v1682 = vsel %vm1660, %v1649, %v901
        %v1683 = vsel %vm1660, %v1650, %v903
        %v1684 = vsel %vm1660, %v1651, %v905
        %v1685 = vsel %vm1660, %v1652, %v907
        %v1686 = vsel %vm1660, %v1653, %v909
        %v1687 = vsel %vm1660, %v1654, %v911
        %v1688 = vsel %vm1660, %v1655, %v913
        %v1689 = vsel %vm1660, %v1656, %v915
        %v1690 = vsel %vm1660, %v1657, %v917
        %v1691 = vsel %vm1660, %v1658, %v919
        %v1692 = vsel %vm1660, %v1659, %v921
        %vm1693 = vcmask 130048
        %v1694 = vsel %vm1693, %v1661, %v987
        %v1695 = vsel %vm1693, %v1662, %v989
        %v1696 = vsel %vm1693, %v1663, %v991
        %v1697 = vsel %vm1693, %v1664, %v993
        %v1698 = vsel %vm1693, %v1665, %v995
        %v1699 = vsel %vm1693, %v1666, %v997
        %v1700 = vsel %vm1693, %v1667, %v999
        %v1701 = vsel %vm1693, %v1668, %v1001
        %v1702 = vsel %vm1693, %v1669, %v1003
        %v1703 = vsel %vm1693, %v1670, %v1005
        %v1704 = vsel %vm1693, %v1671, %v1007
        %v1705 = vsel %vm1693, %v1672, %v1009
        %v1706 = vsel %vm1693, %v1673, %v1011
        %v1707 = vsel %vm1693, %v1674, %v1013
        %v1708 = vsel %vm1693, %v1675, %v1015
        %v1709 = vsel %vm1693, %v1676, %v1017
        %v1710 = vsel %vm1693, %v1677, %v1019
        %v1711 = vsel %vm1693, %v1678, %v1021
        %v1712 = vsel %vm1693, %v1679, %v1023
        %v1713 = vsel %vm1693, %v1680, %v1025
        %v1714 = vsel %vm1693, %v1681, %v1027
        %v1715 = vsel %vm1693, %v1682, %v1029
        %v1716 = vsel %vm1693, %v1683, %v1031
        %v1717 = vsel %vm1693, %v1684, %v1033
        %v1718 = vsel %vm1693, %v1685, %v1035
        %v1719 = vsel %vm1693, %v1686, %v1037
        %v1720 = vsel %vm1693, %v1687, %v1039
        %v1721 = vsel %vm1693, %v1688, %v1041
        %v1722 = vsel %vm1693, %v1689, %v1043
        %v1723 = vsel %vm1693, %v1690, %v1045
        %v1724 = vsel %vm1693, %v1691, %v1047
        %v1725 = vsel %vm1693, %v1692, %v1049
        %vm1726 = vcmask 162816
        %v1727 = vsel %vm1726, %v1694, %v1115
        %v1728 = vsel %vm1726, %v1695, %v1117
        %v1729 = vsel %vm1726, %v1696, %v1119
        %v1730 = vsel %vm1726, %v1697, %v1121
        %v1731 = vsel %vm1726, %v1698, %v1123
        %v1732 = vsel %vm1726, %v1699, %v1125
        %v1733 = vsel %vm1726, %v1700, %v1127
        %v1734 = vsel %vm1726, %v1701, %v1129
        %v1735 = vsel %vm1726, %v1702, %v1131
        %v1736 = vsel %vm1726, %v1703, %v1133
        %v1737 = vsel %vm1726, %v1704, %v1135
        %v1738 = vsel %vm1726, %v1705, %v1137
        %v1739 = vsel %vm1726, %v1706, %v1139
        %v1740 = vsel %vm1726, %v1707, %v1141
        %v1741 = vsel %vm1726, %v1708, %v1143
        %v1742 = vsel %vm1726, %v1709, %v1145
        %v1743 = vsel %vm1726, %v1710, %v1147
        %v1744 = vsel %vm1726, %v1711, %v1149
        %v1745 = vsel %vm1726, %v1712, %v1151
        %v1746 = vsel %vm1726, %v1713, %v1153
        %v1747 = vsel %vm1726, %v1714, %v1155
        %v1748 = vsel %vm1726, %v1715, %v1157
        %v1749 = vsel %vm1726, %v1716, %v1159
        %v1750 = vsel %vm1726, %v1717, %v1161
        %v1751 = vsel %vm1726, %v1718, %v1163
        %v1752 = vsel %vm1726, %v1719, %v1165
        %v1753 = vsel %vm1726, %v1720, %v1167
        %v1754 = vsel %vm1726, %v1721, %v1169
        %v1755 = vsel %vm1726, %v1722, %v1171
        %v1756 = vsel %vm1726, %v1723, %v1173
        %v1757 = vsel %vm1726, %v1724, %v1175
        %v1758 = vsel %vm1726, %v1725, %v1177
        %vm1759 = vcmask 195584
        %v1760 = vsel %vm1759, %v1727, %v1243
        %v1761 = vsel %vm1759, %v1728, %v1245
        %v1762 = vsel %vm1759, %v1729, %v1247
        %v1763 = vsel %vm1759, %v1730, %v1249
        %v1764 = vsel %vm1759, %v1731, %v1251
        %v1765 = vsel %vm1759, %v1732, %v1253
        %v1766 = vsel %vm1759, %v1733, %v1255
        %v1767 = vsel %vm1759, %v1734, %v1257
        %v1768 = vsel %vm1759, %v1735, %v1259
        %v1769 = vsel %vm1759, %v1736, %v1261
        %v1770 = vsel %vm1759, %v1737, %v1263
        %v1771 = vsel %vm1759, %v1738, %v1265
        %v1772 = vsel %vm1759, %v1739, %v1267
        %v1773 = vsel %vm1759, %v1740, %v1269
        %v1774 = vsel %vm1759, %v1741, %v1271
        %v1775 = vsel %vm1759, %v1742, %v1273
        %v1776 = vsel %vm1759, %v1743, %v1275
        %v1777 = vsel %vm1759, %v1744, %v1277
        %v1778 = vsel %vm1759, %v1745, %v1279
        %v1779 = vsel %vm1759, %v1746, %v1281
        %v1780 = vsel %vm1759, %v1747, %v1283
        %v1781 = vsel %vm1759, %v1748, %v1285
        %v1782 = vsel %vm1759, %v1749, %v1287
        %v1783 = vsel %vm1759, %v1750, %v1289
        %v1784 = vsel %vm1759, %v1751, %v1291
        %v1785 = vsel %vm1759, %v1752, %v1293
        %v1786 = vsel %vm1759, %v1753, %v1295
        %v1787 = vsel %vm1759, %v1754, %v1297
        %v1788 = vsel %vm1759, %v1755, %v1299
        %v1789 = vsel %vm1759, %v1756, %v1301
        %v1790 = vsel %vm1759, %v1757, %v1303
        %v1791 = vsel %vm1759, %v1758, %v1305
        %vm1792 = vcmask 228352
        %v1793 = vsel %vm1792, %v1760, %v1371
        %v1794 = vsel %vm1792, %v1761, %v1373
        %v1795 = vsel %vm1792, %v1762, %v1375
        %v1796 = vsel %vm1792, %v1763, %v1377
        %v1797 = vsel %vm1792, %v1764, %v1379
        %v1798 = vsel %vm1792, %v1765, %v1381
        %v1799 = vsel %vm1792, %v1766, %v1383
        %v1800 = vsel %vm1792, %v1767, %v1385
        %v1801 = vsel %vm1792, %v1768, %v1387
        %v1802 = vsel %vm1792, %v1769, %v1389
        %v1803 = vsel %vm1792, %v1770, %v1391
        %v1804 = vsel %vm1792, %v1771, %v1393
        %v1805 = vsel %vm1792, %v1772, %v1395
        %v1806 = vsel %vm1792, %v1773, %v1397
        %v1807 = vsel %vm1792, %v1774, %v1399
        %v1808 = vsel %vm1792, %v1775, %v1401
        %v1809 = vsel %vm1792, %v1776, %v1403
        %v1810 = vsel %vm1792, %v1777, %v1405
        %v1811 = vsel %vm1792, %v1778, %v1407
        %v1812 = vsel %vm1792, %v1779, %v1409
        %v1813 = vsel %vm1792, %v1780, %v1411
        %v1814 = vsel %vm1792, %v1781, %v1413
        %v1815 = vsel %vm1792, %v1782, %v1415
        %v1816 = vsel %vm1792, %v1783, %v1417
        %v1817 = vsel %vm1792, %v1784, %v1419
        %v1818 = vsel %vm1792, %v1785, %v1421
        %v1819 = vsel %vm1792, %v1786, %v1423
        %v1820 = vsel %vm1792, %v1787, %v1425
        %v1821 = vsel %vm1792, %v1788, %v1427
        %v1822 = vsel %vm1792, %v1789, %v1429
        %v1823 = vsel %vm1792, %v1790, %v1431
        %v1824 = vsel %vm1792, %v1791, %v1433
        %v1825 = vsel %vm224, %v1793, %v1499
        %v1826 = vsel %vm224, %v1794, %v1501
        %v1827 = vsel %vm224, %v1795, %v1503
        %v1828 = vsel %vm224, %v1796, %v1505
        %v1829 = vsel %vm224, %v1797, %v1507
        %v1830 = vsel %vm224, %v1798, %v1509
        %v1831 = vsel %vm224, %v1799, %v1511
        %v1832 = vsel %vm224, %v1800, %v1513
        %v1833 = vsel %vm224, %v1801, %v1515
        %v1834 = vsel %vm224, %v1802, %v1517
        %v1835 = vsel %vm224, %v1803, %v1519
        %v1836 = vsel %vm224, %v1804, %v1521
        %v1837 = vsel %vm224, %v1805, %v1523
        %v1838 = vsel %vm224, %v1806, %v1525
        %v1839 = vsel %vm224, %v1807, %v1527
        %v1840 = vsel %vm224, %v1808, %v1529
        %v1841 = vsel %vm224, %v1809, %v1531
        %v1842 = vsel %vm224, %v1810, %v1533
        %v1843 = vsel %vm224, %v1811, %v1535
        %v1844 = vsel %vm224, %v1812, %v1537
        %v1845 = vsel %vm224, %v1813, %v1539
        %v1846 = vsel %vm224, %v1814, %v1541
        %v1847 = vsel %vm224, %v1815, %v1543
        %v1848 = vsel %vm224, %v1816, %v1545
        %v1849 = vsel %vm224, %v1817, %v1547
        %v1850 = vsel %vm224, %v1818, %v1549
        %v1851 = vsel %vm224, %v1819, %v1551
        %v1852 = vsel %vm224, %v1820, %v1553
        %v1853 = vsel %vm224, %v1821, %v1555
        %v1854 = vsel %vm224, %v1822, %v1557
        %v1855 = vsel %vm224, %v1823, %v1559
        %v1856 = vsel %vm224, %v1824, %v1561
        %v1857 = vpack.c.bf16 %v1826, %v1825
        %v1858 = vpack.c.bf16 %v1828, %v1827
        %v1859 = vpack.c.bf16 %v1830, %v1829
        %v1860 = vpack.c.bf16 %v1832, %v1831
        %v1861 = vpack.c.bf16 %v1834, %v1833
        %v1862 = vpack.c.bf16 %v1836, %v1835
        %v1863 = vpack.c.bf16 %v1838, %v1837
        %v1864 = vpack.c.bf16 %v1840, %v1839
        %v1865 = vpack.c.bf16 %v1842, %v1841
        %v1866 = vpack.c.bf16 %v1844, %v1843
        %v1867 = vpack.c.bf16 %v1846, %v1845
        %v1868 = vpack.c.bf16 %v1848, %v1847
        %v1869 = vpack.c.bf16 %v1850, %v1849
        %v1870 = vpack.c.bf16 %v1852, %v1851
        %v1871 = vpack.c.bf16 %v1854, %v1853
        %v1872 = vpack.c.bf16 %v1856, %v1855
        %v1873 = vld [vmem:[%s1] sm:$0xf]
        %v1874 = vld [vmem:[%s1 + $0x4] sm:$0xf]
        %v1875 = vld [vmem:[%s1 + $0x8] sm:$0xf]
        %v1876 = vld [vmem:[%s1 + $0xc] sm:$0xf]
        %v1877 = vld [vmem:[%s1 + $0x10] sm:$0x3]
        %v1878 = vld [vmem:[%s2] sm:$0x1]
        %v1880 = vlaneseq
        %v1881 = vshrl.u32 %v1880, 7
        %v1882 = vsub.s32 0, %v1881
        %v1883 = vrot.slane %v1878, %v1882
        %v1890 = vunpack.c.l.b16 %v1873
        %v1891 = vunpack.c.l.b16 %v1874
        %v1892 = vunpack.c.l.b16 %v1875
        %v1893 = vunpack.c.l.b16 %v1876
        %v1894 = vunpack.c.l.b16 %v1877
        %v1895 = vpack.c.b16 %v1891, %v1890
        %v1896 = vpack.c.b16 %v1893, %v1892
        %v1897 = vpack.c.b16 %v1894, %v1894
        %vm1900 = vcmask 293888
        %v1902 = vsel %vm1900, %v1857, 0
        %v1905 = vsel %vm1900, %v1858, 0
        %v1908 = vsel %vm1900, %v1859, 0
        %v1911 = vsel %vm1900, %v1860, 0
        %v1914 = vsel %vm1900, %v1861, 0
        %v1917 = vsel %vm1900, %v1862, 0
        %v1920 = vsel %vm1900, %v1863, 0
        %v1923 = vsel %vm1900, %v1864, 0
        %v1926 = vsel %vm1900, %v1865, 0
        %v1929 = vsel %vm1900, %v1866, 0
        %v1932 = vsel %vm1900, %v1867, 0
        %v1935 = vsel %vm1900, %v1868, 0
        %v1938 = vsel %vm1900, %v1869, 0
        %v1941 = vsel %vm1900, %v1870, 0
        %v1944 = vsel %vm1900, %v1871, 0
        %v1947 = vsel %vm1900, %v1872, 0
        %vm1949 = vcmask 1041408
        %v1951 = vsel %vm1949, %v1897, 0
        %1953 = vmatprep.subr.bf16.mxu0 0
        %1954 = vmatpush1.bf16.msra.mxu0 0
        %1955 = vmatprep.subr.bf16.mxu0 0
        %1956 = vmatpush1.bf16.msra.mxu0 0
        %1957 = vmatprep.subr.bf16.mxu0 0
        %1958 = vmatpush1.bf16.msra.mxu0 0
        %1959 = vmatprep.subr.bf16.mxu0 0
        %1960 = vmatpush1.bf16.msra.mxu0 0
        %1961 = vmatprep.subr.bf16.mxu0 0
        %1962 = vmatpush1.bf16.msra.mxu0 0
        %1963 = vmatprep.subr.bf16.mxu0 0
        %1964 = vmatpush1.bf16.msra.mxu0 %v1951
        %1965 = vmatprep.subr.bf16.mxu0 0
        %1966 = vmatpush1.bf16.msra.mxu0 %v1896
        %1967 = vmatprep.subr.bf16.mxu0 0
        %1968 = vmatpush1.bf16.msra.mxu0 %v1895
        %1969 = vmatprep.subr.bf16.mxu0 0
        %1970 = vmatpush2.bf16.msra.mxu0 0
        %1971 = vmatprep.subr.bf16.mxu0 0
        %1972 = vmatpush2.bf16.msra.mxu0 0
        %1973 = vmatprep.subr.bf16.mxu0 0
        %1974 = vmatpush2.bf16.msra.mxu0 0
        %1975 = vmatprep.subr.bf16.mxu0 0
        %1976 = vmatpush2.bf16.msra.mxu0 0
        %1977 = vmatprep.subr.bf16.mxu0 0
        %1978 = vmatpush2.bf16.msra.mxu0 0
        %1979 = vmatprep.subr.bf16.mxu0 0
        %1980 = vmatpush2.bf16.msra.mxu0 0
        %1981 = vmatprep.subr.bf16.mxu0 0
        %1982 = vmatpush2.bf16.msra.mxu0 0
        %1983 = vmatprep.subr.bf16.mxu0 0
        %1984 = vmatpush2.bf16.msra.mxu0 0
        %1985 = vmatprep.mubr.bf16.mxu0 0
        %1986 = vmatmul.mubr.bf16.gmra.mxu0 %v1902
        %v1987 = vpop.f32.mrf.mxu0
        %v1988 = vadd.f32 %v1883, %v1987
        %v1989 = vpop.f32.mrf.mxu0
        %v1990 = vpop.f32.mrf.mxu0
        %v1991 = vadd.f32 %v1883, %v1990
        %v1992 = vpop.f32.mrf.mxu0
        %1993 = vmatprep.mubr.bf16.mxu0 0
        %1994 = vmatmul.mubr.bf16.gmra.mxu0 %v1905
        %v1995 = vpop.f32.mrf.mxu0
        %v1996 = vadd.f32 %v1883, %v1995
        %v1997 = vpop.f32.mrf.mxu0
        %v1998 = vpop.f32.mrf.mxu0
        %v1999 = vadd.f32 %v1883, %v1998
        %v2000 = vpop.f32.mrf.mxu0
        %2001 = vmatprep.mubr.bf16.mxu0 0
        %2002 = vmatmul.mubr.bf16.gmra.mxu0 %v1908
        %v2003 = vpop.f32.mrf.mxu0
        %v2004 = vadd.f32 %v1883, %v2003
        %v2005 = vpop.f32.mrf.mxu0
        %v2006 = vpop.f32.mrf.mxu0
        %v2007 = vadd.f32 %v1883, %v2006
        %v2008 = vpop.f32.mrf.mxu0
        %2009 = vmatprep.mubr.bf16.mxu0 0
        %2010 = vmatmul.mubr.bf16.gmra.mxu0 %v1911
        %v2011 = vpop.f32.mrf.mxu0
        %v2012 = vadd.f32 %v1883, %v2011
        %v2013 = vpop.f32.mrf.mxu0
        %v2014 = vpop.f32.mrf.mxu0
        %v2015 = vadd.f32 %v1883, %v2014
        %v2016 = vpop.f32.mrf.mxu0
        %2017 = vmatprep.mubr.bf16.mxu0 0
        %2018 = vmatmul.mubr.bf16.gmra.mxu0 %v1914
        %v2019 = vpop.f32.mrf.mxu0
        %v2020 = vadd.f32 %v1883, %v2019
        %v2021 = vpop.f32.mrf.mxu0
        %v2022 = vpop.f32.mrf.mxu0
        %v2023 = vadd.f32 %v1883, %v2022
        %v2024 = vpop.f32.mrf.mxu0
        %2025 = vmatprep.mubr.bf16.mxu0 0
        %2026 = vmatmul.mubr.bf16.gmra.mxu0 %v1917
        %v2027 = vpop.f32.mrf.mxu0
        %v2028 = vadd.f32 %v1883, %v2027
        %v2029 = vpop.f32.mrf.mxu0
        %v2030 = vpop.f32.mrf.mxu0
        %v2031 = vadd.f32 %v1883, %v2030
        %v2032 = vpop.f32.mrf.mxu0
        %2033 = vmatprep.mubr.bf16.mxu0 0
        %2034 = vmatmul.mubr.bf16.gmra.mxu0 %v1920
        %v2035 = vpop.f32.mrf.mxu0
        %v2036 = vadd.f32 %v1883, %v2035
        %v2037 = vpop.f32.mrf.mxu0
        %v2038 = vpop.f32.mrf.mxu0
        %v2039 = vadd.f32 %v1883, %v2038
        %v2040 = vpop.f32.mrf.mxu0
        %2041 = vmatprep.mubr.bf16.mxu0 0
        %2042 = vmatmul.mubr.bf16.gmra.mxu0 %v1923
        %v2043 = vpop.f32.mrf.mxu0
        %v2044 = vadd.f32 %v1883, %v2043
        %v2045 = vpop.f32.mrf.mxu0
        %v2046 = vpop.f32.mrf.mxu0
        %v2047 = vadd.f32 %v1883, %v2046
        %v2048 = vpop.f32.mrf.mxu0
        %2049 = vmatprep.mubr.bf16.mxu0 0
        %2050 = vmatmul.mubr.bf16.gmra.mxu0 %v1926
        %v2051 = vpop.f32.mrf.mxu0
        %v2052 = vadd.f32 %v1883, %v2051
        %v2053 = vpop.f32.mrf.mxu0
        %v2054 = vpop.f32.mrf.mxu0
        %v2055 = vadd.f32 %v1883, %v2054
        %v2056 = vpop.f32.mrf.mxu0
        %2057 = vmatprep.mubr.bf16.mxu0 0
        %2058 = vmatmul.mubr.bf16.gmra.mxu0 %v1929
        %v2059 = vpop.f32.mrf.mxu0
        %v2060 = vadd.f32 %v1883, %v2059
        %v2061 = vpop.f32.mrf.mxu0
        %v2062 = vpop.f32.mrf.mxu0
        %v2063 = vadd.f32 %v1883, %v2062
        %v2064 = vpop.f32.mrf.mxu0
        %2065 = vmatprep.mubr.bf16.mxu0 0
        %2066 = vmatmul.mubr.bf16.gmra.mxu0 %v1932
        %v2067 = vpop.f32.mrf.mxu0
        %v2068 = vadd.f32 %v1883, %v2067
        %v2069 = vpop.f32.mrf.mxu0
        %v2070 = vpop.f32.mrf.mxu0
        %v2071 = vadd.f32 %v1883, %v2070
        %v2072 = vpop.f32.mrf.mxu0
        %2073 = vmatprep.mubr.bf16.mxu0 0
        %2074 = vmatmul.mubr.bf16.gmra.mxu0 %v1935
        %v2075 = vpop.f32.mrf.mxu0
        %v2076 = vadd.f32 %v1883, %v2075
        %v2077 = vpop.f32.mrf.mxu0
        %v2078 = vpop.f32.mrf.mxu0
        %v2079 = vadd.f32 %v1883, %v2078
        %v2080 = vpop.f32.mrf.mxu0
        %2081 = vmatprep.mubr.bf16.mxu0 0
        %2082 = vmatmul.mubr.bf16.gmra.mxu0 %v1938
        %v2083 = vpop.f32.mrf.mxu0
        %v2084 = vadd.f32 %v1883, %v2083
        %v2085 = vpop.f32.mrf.mxu0
        %v2086 = vpop.f32.mrf.mxu0
        %v2087 = vadd.f32 %v1883, %v2086
        %v2088 = vpop.f32.mrf.mxu0
        %2089 = vmatprep.mubr.bf16.mxu0 0
        %2090 = vmatmul.mubr.bf16.gmra.mxu0 %v1941
        %v2091 = vpop.f32.mrf.mxu0
        %v2092 = vadd.f32 %v1883, %v2091
        %v2093 = vpop.f32.mrf.mxu0
        %v2094 = vpop.f32.mrf.mxu0
        %v2095 = vadd.f32 %v1883, %v2094
        %v2096 = vpop.f32.mrf.mxu0
        %2097 = vmatprep.mubr.bf16.mxu0 0
        %2098 = vmatmul.mubr.bf16.gmra.mxu0 %v1944
        %v2099 = vpop.f32.mrf.mxu0
        %v2100 = vadd.f32 %v1883, %v2099
        %v2101 = vpop.f32.mrf.mxu0
        %v2102 = vpop.f32.mrf.mxu0
        %v2103 = vadd.f32 %v1883, %v2102
        %v2104 = vpop.f32.mrf.mxu0
        %2105 = vmatprep.mubr.bf16.mxu0 0
        %2106 = vmatmul.mubr.bf16.gmra.mxu0 %v1947
        %v2107 = vpop.f32.mrf.mxu0
        %v2108 = vadd.f32 %v1883, %v2107
        %v2109 = vpop.f32.mrf.mxu0
        %v2110 = vpop.f32.mrf.mxu0
        %v2111 = vadd.f32 %v1883, %v2110
        %v2112 = vpop.f32.mrf.mxu0
        %2113 = vdwg.mxu0
        %v2114 = vmax.f32 %v1988, 0.0
        %v2115 = vmax.f32 %v1991, 0.0
        %v2116 = vmax.f32 %v1996, 0.0
        %v2117 = vmax.f32 %v1999, 0.0
        %v2118 = vmax.f32 %v2004, 0.0
        %v2119 = vmax.f32 %v2007, 0.0
        %v2120 = vmax.f32 %v2012, 0.0
        %v2121 = vmax.f32 %v2015, 0.0
        %v2122 = vmax.f32 %v2020, 0.0
        %v2123 = vmax.f32 %v2023, 0.0
        %v2124 = vmax.f32 %v2028, 0.0
        %v2125 = vmax.f32 %v2031, 0.0
        %v2126 = vmax.f32 %v2036, 0.0
        %v2127 = vmax.f32 %v2039, 0.0
        %v2128 = vmax.f32 %v2044, 0.0
        %v2129 = vmax.f32 %v2047, 0.0
        %v2130 = vmax.f32 %v2052, 0.0
        %v2131 = vmax.f32 %v2055, 0.0
        %v2132 = vmax.f32 %v2060, 0.0
        %v2133 = vmax.f32 %v2063, 0.0
        %v2134 = vmax.f32 %v2068, 0.0
        %v2135 = vmax.f32 %v2071, 0.0
        %v2136 = vmax.f32 %v2076, 0.0
        %v2137 = vmax.f32 %v2079, 0.0
        %v2138 = vmax.f32 %v2084, 0.0
        %v2139 = vmax.f32 %v2087, 0.0
        %v2140 = vmax.f32 %v2092, 0.0
        %v2141 = vmax.f32 %v2095, 0.0
        %v2142 = vmax.f32 %v2100, 0.0
        %v2143 = vmax.f32 %v2103, 0.0
        %v2144 = vmax.f32 %v2108, 0.0
        %v2145 = vmax.f32 %v2111, 0.0
        %s2146 = scalar_lea.vmem [#allocation2], 24
        %2147 = vst.msk [vmem:[%s2146 + $0x1] sm:$0xff] %vm224, %v2114
        %2148 = vst.msk [vmem:[%s2146 + $0x9] sm:$0xff] %vm224, %v2115
        %2149 = vst.msk [vmem:[%s2146 + $0x19] sm:$0xff] %vm224, %v2116
        %2150 = vst.msk [vmem:[%s2146 + $0x21] sm:$0xff] %vm224, %v2117
        %2151 = vst.msk [vmem:[%s2146 + $0x31] sm:$0xff] %vm224, %v2118
        %2152 = vst.msk [vmem:[%s2146 + $0x39] sm:$0xff] %vm224, %v2119
        %2153 = vst.msk [vmem:[%s2146 + $0x49] sm:$0xff] %vm224, %v2120
        %2154 = vst.msk [vmem:[%s2146 + $0x51] sm:$0xff] %vm224, %v2121
        %2155 = vst.msk [vmem:[%s2146 + $0x61] sm:$0xff] %vm224, %v2122
        %2156 = vst.msk [vmem:[%s2146 + $0x69] sm:$0xff] %vm224, %v2123
        %2157 = vst.msk [vmem:[%s2146 + $0x79] sm:$0xff] %vm224, %v2124
        %2158 = vst.msk [vmem:[%s2146 + $0x81] sm:$0xff] %vm224, %v2125
        %2159 = vst.msk [vmem:[%s2146 + $0x91] sm:$0xff] %vm224, %v2126
        %2160 = vst.msk [vmem:[%s2146 + $0x99] sm:$0xff] %vm224, %v2127
        %2161 = vst.msk [vmem:[%s2146 + $0xa9] sm:$0xff] %vm224, %v2128
        %2162 = vst.msk [vmem:[%s2146 + $0xb1] sm:$0xff] %vm224, %v2129
        %2163 = vst.msk [vmem:[%s2146 + $0xc1] sm:$0xff] %vm224, %v2130
        %2164 = vst.msk [vmem:[%s2146 + $0xc9] sm:$0xff] %vm224, %v2131
        %2165 = vst.msk [vmem:[%s2146 + $0xd9] sm:$0xff] %vm224, %v2132
        %2166 = vst.msk [vmem:[%s2146 + $0xe1] sm:$0xff] %vm224, %v2133
        %2167 = vst.msk [vmem:[%s2146 + $0xf1] sm:$0xff] %vm224, %v2134
        %2168 = vst.msk [vmem:[%s2146 + $0xf9] sm:$0xff] %vm224, %v2135
        %2169 = vst.msk [vmem:[%s2146 + $0x109] sm:$0xff] %vm224, %v2136
        %2170 = vst.msk [vmem:[%s2146 + $0x111] sm:$0xff] %vm224, %v2137
        %2171 = vst.msk [vmem:[%s2146 + $0x121] sm:$0xff] %vm224, %v2138
        %2172 = vst.msk [vmem:[%s2146 + $0x129] sm:$0xff] %vm224, %v2139
        %2173 = vst.msk [vmem:[%s2146 + $0x139] sm:$0xff] %vm224, %v2140
        %2174 = vst.msk [vmem:[%s2146 + $0x141] sm:$0xff] %vm224, %v2141
        %2175 = vst.msk [vmem:[%s2146 + $0x151] sm:$0xff] %vm224, %v2142
        %2176 = vst.msk [vmem:[%s2146 + $0x159] sm:$0xff] %vm224, %v2143
        %2177 = vst.msk [vmem:[%s2146 + $0x169] sm:$0xff] %vm224, %v2144
        %2178 = vst.msk [vmem:[%s2146 + $0x171] sm:$0xff] %vm224, %v2145
        %v2179 = vld [vmem:[#allocation2] sm:$0xff]
        %v2180 = vld [vmem:[#allocation2 + $0x8] sm:$0xff]
        %v2181 = vld [vmem:[#allocation2 + $0x18] sm:$0xff]
        %v2182 = vld [vmem:[#allocation2 + $0x20] sm:$0xff]
        %v2183 = vld [vmem:[#allocation2 + $0x30] sm:$0xff]
        %v2184 = vld [vmem:[#allocation2 + $0x38] sm:$0xff]
        %v2185 = vld [vmem:[#allocation2 + $0x48] sm:$0xff]
        %v2186 = vld [vmem:[#allocation2 + $0x50] sm:$0xff]
        %v2187 = vld [vmem:[#allocation2 + $0x60] sm:$0xff]
        %v2188 = vld [vmem:[#allocation2 + $0x68] sm:$0xff]
        %v2189 = vld [vmem:[#allocation2 + $0x78] sm:$0xff]
        %v2190 = vld [vmem:[#allocation2 + $0x80] sm:$0xff]
        %v2191 = vld [vmem:[#allocation2 + $0x90] sm:$0xff]
        %v2192 = vld [vmem:[#allocation2 + $0x98] sm:$0xff]
        %v2193 = vld [vmem:[#allocation2 + $0xa8] sm:$0xff]
        %v2194 = vld [vmem:[#allocation2 + $0xb0] sm:$0xff]
        %v2195 = vld [vmem:[#allocation2 + $0xc0] sm:$0xff]
        %v2196 = vld [vmem:[#allocation2 + $0xc8] sm:$0xff]
        %v2197 = vld [vmem:[#allocation2 + $0xd8] sm:$0xff]
        %v2198 = vld [vmem:[#allocation2 + $0xe0] sm:$0xff]
        %v2199 = vld [vmem:[#allocation2 + $0xf0] sm:$0xff]
        %v2200 = vld [vmem:[#allocation2 + $0xf8] sm:$0xff]
        %v2201 = vld [vmem:[#allocation2 + $0x108] sm:$0xff]
        %v2202 = vld [vmem:[#allocation2 + $0x110] sm:$0xff]
        %v2203 = vld [vmem:[#allocation2 + $0x120] sm:$0xff]
        %v2204 = vld [vmem:[#allocation2 + $0x128] sm:$0xff]
        %v2205 = vld [vmem:[#allocation2 + $0x138] sm:$0xff]
        %v2206 = vld [vmem:[#allocation2 + $0x140] sm:$0xff]
        %v2207 = vld [vmem:[#allocation2 + $0x150] sm:$0xff]
        %v2208 = vld [vmem:[#allocation2 + $0x158] sm:$0xff]
        %v2209 = vld [vmem:[#allocation2 + $0x168] sm:$0xff]
        %v2210 = vld [vmem:[#allocation2 + $0x170] sm:$0xff]
        %v2211 = vld [vmem:[#allocation2 + $0x1] sm:$0xff]
        %v2212 = vld [vmem:[#allocation2 + $0x9] sm:$0xff]
        %v2213 = vld [vmem:[#allocation2 + $0x19] sm:$0xff]
        %v2214 = vld [vmem:[#allocation2 + $0x21] sm:$0xff]
        %v2215 = vld [vmem:[#allocation2 + $0x31] sm:$0xff]
        %v2216 = vld [vmem:[#allocation2 + $0x39] sm:$0xff]
        %v2217 = vld [vmem:[#allocation2 + $0x49] sm:$0xff]
        %v2218 = vld [vmem:[#allocation2 + $0x51] sm:$0xff]
        %v2219 = vld [vmem:[#allocation2 + $0x61] sm:$0xff]
        %v2220 = vld [vmem:[#allocation2 + $0x69] sm:$0xff]
        %v2221 = vld [vmem:[#allocation2 + $0x79] sm:$0xff]
        %v2222 = vld [vmem:[#allocation2 + $0x81] sm:$0xff]
        %v2223 = vld [vmem:[#allocation2 + $0x91] sm:$0xff]
        %v2224 = vld [vmem:[#allocation2 + $0x99] sm:$0xff]
        %v2225 = vld [vmem:[#allocation2 + $0xa9] sm:$0xff]
        %v2226 = vld [vmem:[#allocation2 + $0xb1] sm:$0xff]
        %v2227 = vld [vmem:[#allocation2 + $0xc1] sm:$0xff]
        %v2228 = vld [vmem:[#allocation2 + $0xc9] sm:$0xff]
        %v2229 = vld [vmem:[#allocation2 + $0xd9] sm:$0xff]
        %v2230 = vld [vmem:[#allocation2 + $0xe1] sm:$0xff]
        %v2231 = vld [vmem:[#allocation2 + $0xf1] sm:$0xff]
        %v2232 = vld [vmem:[#allocation2 + $0xf9] sm:$0xff]
        %v2233 = vld [vmem:[#allocation2 + $0x109] sm:$0xff]
        %v2234 = vld [vmem:[#allocation2 + $0x111] sm:$0xff]
        %v2235 = vld [vmem:[#allocation2 + $0x121] sm:$0xff]
        %v2236 = vld [vmem:[#allocation2 + $0x129] sm:$0xff]
        %v2237 = vld [vmem:[#allocation2 + $0x139] sm:$0xff]
        %v2238 = vld [vmem:[#allocation2 + $0x141] sm:$0xff]
        %v2239 = vld [vmem:[#allocation2 + $0x151] sm:$0xff]
        %v2240 = vld [vmem:[#allocation2 + $0x159] sm:$0xff]
        %v2241 = vld [vmem:[#allocation2 + $0x169] sm:$0xff]
        %v2242 = vld [vmem:[#allocation2 + $0x171] sm:$0xff]
        %v2243 = vld [vmem:[#allocation2 + $0x2] sm:$0xff]
        %v2244 = vld [vmem:[#allocation2 + $0xa] sm:$0xff]
        %v2245 = vld [vmem:[#allocation2 + $0x1a] sm:$0xff]
        %v2246 = vld [vmem:[#allocation2 + $0x22] sm:$0xff]
        %v2247 = vld [vmem:[#allocation2 + $0x32] sm:$0xff]
        %v2248 = vld [vmem:[#allocation2 + $0x3a] sm:$0xff]
        %v2249 = vld [vmem:[#allocation2 + $0x4a] sm:$0xff]
        %v2250 = vld [vmem:[#allocation2 + $0x52] sm:$0xff]
        %v2251 = vld [vmem:[#allocation2 + $0x62] sm:$0xff]
        %v2252 = vld [vmem:[#allocation2 + $0x6a] sm:$0xff]
        %v2253 = vld [vmem:[#allocation2 + $0x7a] sm:$0xff]
        %v2254 = vld [vmem:[#allocation2 + $0x82] sm:$0xff]
        %v2255 = vld [vmem:[#allocation2 + $0x92] sm:$0xff]
        %v2256 = vld [vmem:[#allocation2 + $0x9a] sm:$0xff]
        %v2257 = vld [vmem:[#allocation2 + $0xaa] sm:$0xff]
        %v2258 = vld [vmem:[#allocation2 + $0xb2] sm:$0xff]
        %v2259 = vld [vmem:[#allocation2 + $0xc2] sm:$0xff]
        %v2260 = vld [vmem:[#allocation2 + $0xca] sm:$0xff]
        %v2261 = vld [vmem:[#allocation2 + $0xda] sm:$0xff]
        %v2262 = vld [vmem:[#allocation2 + $0xe2] sm:$0xff]
        %v2263 = vld [vmem:[#allocation2 + $0xf2] sm:$0xff]
        %v2264 = vld [vmem:[#allocation2 + $0xfa] sm:$0xff]
        %v2265 = vld [vmem:[#allocation2 + $0x10a] sm:$0xff]
        %v2266 = vld [vmem:[#allocation2 + $0x112] sm:$0xff]
        %v2267 = vld [vmem:[#allocation2 + $0x122] sm:$0xff]
        %v2268 = vld [vmem:[#allocation2 + $0x12a] sm:$0xff]
        %v2269 = vld [vmem:[#allocation2 + $0x13a] sm:$0xff]
        %v2270 = vld [vmem:[#allocation2 + $0x142] sm:$0xff]
        %v2271 = vld [vmem:[#allocation2 + $0x152] sm:$0xff]
        %v2272 = vld [vmem:[#allocation2 + $0x15a] sm:$0xff]
        %v2273 = vld [vmem:[#allocation2 + $0x16a] sm:$0xff]
        %v2274 = vld [vmem:[#allocation2 + $0x172] sm:$0xff]
        %v2275 = vld [vmem:[%s2146] sm:$0xff]
        %v2276 = vld [vmem:[%s2146 + $0x8] sm:$0xff]
        %v2277 = vld [vmem:[%s2146 + $0x18] sm:$0xff]
        %v2278 = vld [vmem:[%s2146 + $0x20] sm:$0xff]
        %v2279 = vld [vmem:[%s2146 + $0x30] sm:$0xff]
        %v2280 = vld [vmem:[%s2146 + $0x38] sm:$0xff]
        %v2281 = vld [vmem:[%s2146 + $0x48] sm:$0xff]
        %v2282 = vld [vmem:[%s2146 + $0x50] sm:$0xff]
        %v2283 = vld [vmem:[%s2146 + $0x60] sm:$0xff]
        %v2284 = vld [vmem:[%s2146 + $0x68] sm:$0xff]
        %v2285 = vld [vmem:[%s2146 + $0x78] sm:$0xff]
        %v2286 = vld [vmem:[%s2146 + $0x80] sm:$0xff]
        %v2287 = vld [vmem:[%s2146 + $0x90] sm:$0xff]
        %v2288 = vld [vmem:[%s2146 + $0x98] sm:$0xff]
        %v2289 = vld [vmem:[%s2146 + $0xa8] sm:$0xff]
        %v2290 = vld [vmem:[%s2146 + $0xb0] sm:$0xff]
        %v2291 = vld [vmem:[%s2146 + $0xc0] sm:$0xff]
        %v2292 = vld [vmem:[%s2146 + $0xc8] sm:$0xff]
        %v2293 = vld [vmem:[%s2146 + $0xd8] sm:$0xff]
        %v2294 = vld [vmem:[%s2146 + $0xe0] sm:$0xff]
        %v2295 = vld [vmem:[%s2146 + $0xf0] sm:$0xff]
        %v2296 = vld [vmem:[%s2146 + $0xf8] sm:$0xff]
        %v2297 = vld [vmem:[%s2146 + $0x108] sm:$0xff]
        %v2298 = vld [vmem:[%s2146 + $0x110] sm:$0xff]
        %v2299 = vld [vmem:[%s2146 + $0x120] sm:$0xff]
        %v2300 = vld [vmem:[%s2146 + $0x128] sm:$0xff]
        %v2301 = vld [vmem:[%s2146 + $0x138] sm:$0xff]
        %v2302 = vld [vmem:[%s2146 + $0x140] sm:$0xff]
        %v2303 = vld [vmem:[%s2146 + $0x150] sm:$0xff]
        %v2304 = vld [vmem:[%s2146 + $0x158] sm:$0xff]
        %v2305 = vld [vmem:[%s2146 + $0x168] sm:$0xff]
        %v2306 = vld [vmem:[%s2146 + $0x170] sm:$0xff]
        %v2307 = vld [vmem:[%s2146 + $0x1] sm:$0xff]
        %v2308 = vld [vmem:[%s2146 + $0x9] sm:$0xff]
        %v2309 = vld [vmem:[%s2146 + $0x19] sm:$0xff]
        %v2310 = vld [vmem:[%s2146 + $0x21] sm:$0xff]
        %v2311 = vld [vmem:[%s2146 + $0x31] sm:$0xff]
        %v2312 = vld [vmem:[%s2146 + $0x39] sm:$0xff]
        %v2313 = vld [vmem:[%s2146 + $0x49] sm:$0xff]
        %v2314 = vld [vmem:[%s2146 + $0x51] sm:$0xff]
        %v2315 = vld [vmem:[%s2146 + $0x61] sm:$0xff]
        %v2316 = vld [vmem:[%s2146 + $0x69] sm:$0xff]
        %v2317 = vld [vmem:[%s2146 + $0x79] sm:$0xff]
        %v2318 = vld [vmem:[%s2146 + $0x81] sm:$0xff]
        %v2319 = vld [vmem:[%s2146 + $0x91] sm:$0xff]
        %v2320 = vld [vmem:[%s2146 + $0x99] sm:$0xff]
        %v2321 = vld [vmem:[%s2146 + $0xa9] sm:$0xff]
        %v2322 = vld [vmem:[%s2146 + $0xb1] sm:$0xff]
        %v2323 = vld [vmem:[%s2146 + $0xc1] sm:$0xff]
        %v2324 = vld [vmem:[%s2146 + $0xc9] sm:$0xff]
        %v2325 = vld [vmem:[%s2146 + $0xd9] sm:$0xff]
        %v2326 = vld [vmem:[%s2146 + $0xe1] sm:$0xff]
        %v2327 = vld [vmem:[%s2146 + $0xf1] sm:$0xff]
        %v2328 = vld [vmem:[%s2146 + $0xf9] sm:$0xff]
        %v2329 = vld [vmem:[%s2146 + $0x109] sm:$0xff]
        %v2330 = vld [vmem:[%s2146 + $0x111] sm:$0xff]
        %v2331 = vld [vmem:[%s2146 + $0x121] sm:$0xff]
        %v2332 = vld [vmem:[%s2146 + $0x129] sm:$0xff]
        %v2333 = vld [vmem:[%s2146 + $0x139] sm:$0xff]
        %v2334 = vld [vmem:[%s2146 + $0x141] sm:$0xff]
        %v2335 = vld [vmem:[%s2146 + $0x151] sm:$0xff]
        %v2336 = vld [vmem:[%s2146 + $0x159] sm:$0xff]
        %v2337 = vld [vmem:[%s2146 + $0x169] sm:$0xff]
        %v2338 = vld [vmem:[%s2146 + $0x171] sm:$0xff]
        %v2339 = vld [vmem:[%s2146 + $0x2] sm:$0xff]
        %v2340 = vld [vmem:[%s2146 + $0xa] sm:$0xff]
        %v2341 = vld [vmem:[%s2146 + $0x1a] sm:$0xff]
        %v2342 = vld [vmem:[%s2146 + $0x22] sm:$0xff]
        %v2343 = vld [vmem:[%s2146 + $0x32] sm:$0xff]
        %v2344 = vld [vmem:[%s2146 + $0x3a] sm:$0xff]
        %v2345 = vld [vmem:[%s2146 + $0x4a] sm:$0xff]
        %v2346 = vld [vmem:[%s2146 + $0x52] sm:$0xff]
        %v2347 = vld [vmem:[%s2146 + $0x62] sm:$0xff]
        %v2348 = vld [vmem:[%s2146 + $0x6a] sm:$0xff]
        %v2349 = vld [vmem:[%s2146 + $0x7a] sm:$0xff]
        %v2350 = vld [vmem:[%s2146 + $0x82] sm:$0xff]
        %v2351 = vld [vmem:[%s2146 + $0x92] sm:$0xff]
        %v2352 = vld [vmem:[%s2146 + $0x9a] sm:$0xff]
        %v2353 = vld [vmem:[%s2146 + $0xaa] sm:$0xff]
        %v2354 = vld [vmem:[%s2146 + $0xb2] sm:$0xff]
        %v2355 = vld [vmem:[%s2146 + $0xc2] sm:$0xff]
        %v2356 = vld [vmem:[%s2146 + $0xca] sm:$0xff]
        %v2357 = vld [vmem:[%s2146 + $0xda] sm:$0xff]
        %v2358 = vld [vmem:[%s2146 + $0xe2] sm:$0xff]
        %v2359 = vld [vmem:[%s2146 + $0xf2] sm:$0xff]
        %v2360 = vld [vmem:[%s2146 + $0xfa] sm:$0xff]
        %v2361 = vld [vmem:[%s2146 + $0x10a] sm:$0xff]
        %v2362 = vld [vmem:[%s2146 + $0x112] sm:$0xff]
        %v2363 = vld [vmem:[%s2146 + $0x122] sm:$0xff]
        %v2364 = vld [vmem:[%s2146 + $0x12a] sm:$0xff]
        %v2365 = vld [vmem:[%s2146 + $0x13a] sm:$0xff]
        %v2366 = vld [vmem:[%s2146 + $0x142] sm:$0xff]
        %v2367 = vld [vmem:[%s2146 + $0x152] sm:$0xff]
        %v2368 = vld [vmem:[%s2146 + $0x15a] sm:$0xff]
        %v2369 = vld [vmem:[%s2146 + $0x16a] sm:$0xff]
        %v2370 = vld [vmem:[%s2146 + $0x172] sm:$0xff]
        %s2371 = scalar_lea.vmem [#allocation2], 48
        %v2372 = vld [vmem:[%s2371] sm:$0xff]
        %v2373 = vld [vmem:[%s2371 + $0x8] sm:$0xff]
        %v2374 = vld [vmem:[%s2371 + $0x18] sm:$0xff]
        %v2375 = vld [vmem:[%s2371 + $0x20] sm:$0xff]
        %v2376 = vld [vmem:[%s2371 + $0x30] sm:$0xff]
        %v2377 = vld [vmem:[%s2371 + $0x38] sm:$0xff]
        %v2378 = vld [vmem:[%s2371 + $0x48] sm:$0xff]
        %v2379 = vld [vmem:[%s2371 + $0x50] sm:$0xff]
        %v2380 = vld [vmem:[%s2371 + $0x60] sm:$0xff]
        %v2381 = vld [vmem:[%s2371 + $0x68] sm:$0xff]
        %v2382 = vld [vmem:[%s2371 + $0x78] sm:$0xff]
        %v2383 = vld [vmem:[%s2371 + $0x80] sm:$0xff]
        %v2384 = vld [vmem:[%s2371 + $0x90] sm:$0xff]
        %v2385 = vld [vmem:[%s2371 + $0x98] sm:$0xff]
        %v2386 = vld [vmem:[%s2371 + $0xa8] sm:$0xff]
        %v2387 = vld [vmem:[%s2371 + $0xb0] sm:$0xff]
        %v2388 = vld [vmem:[%s2371 + $0xc0] sm:$0xff]
        %v2389 = vld [vmem:[%s2371 + $0xc8] sm:$0xff]
        %v2390 = vld [vmem:[%s2371 + $0xd8] sm:$0xff]
        %v2391 = vld [vmem:[%s2371 + $0xe0] sm:$0xff]
        %v2392 = vld [vmem:[%s2371 + $0xf0] sm:$0xff]
        %v2393 = vld [vmem:[%s2371 + $0xf8] sm:$0xff]
        %v2394 = vld [vmem:[%s2371 + $0x108] sm:$0xff]
        %v2395 = vld [vmem:[%s2371 + $0x110] sm:$0xff]
        %v2396 = vld [vmem:[%s2371 + $0x120] sm:$0xff]
        %v2397 = vld [vmem:[%s2371 + $0x128] sm:$0xff]
        %v2398 = vld [vmem:[%s2371 + $0x138] sm:$0xff]
        %v2399 = vld [vmem:[%s2371 + $0x140] sm:$0xff]
        %v2400 = vld [vmem:[%s2371 + $0x150] sm:$0xff]
        %v2401 = vld [vmem:[%s2371 + $0x158] sm:$0xff]
        %v2402 = vld [vmem:[%s2371 + $0x168] sm:$0xff]
        %v2403 = vld [vmem:[%s2371 + $0x170] sm:$0xff]
        %v2404 = vld [vmem:[%s2371 + $0x1] sm:$0xff]
        %v2405 = vld [vmem:[%s2371 + $0x9] sm:$0xff]
        %v2406 = vld [vmem:[%s2371 + $0x19] sm:$0xff]
        %v2407 = vld [vmem:[%s2371 + $0x21] sm:$0xff]
        %v2408 = vld [vmem:[%s2371 + $0x31] sm:$0xff]
        %v2409 = vld [vmem:[%s2371 + $0x39] sm:$0xff]
        %v2410 = vld [vmem:[%s2371 + $0x49] sm:$0xff]
        %v2411 = vld [vmem:[%s2371 + $0x51] sm:$0xff]
        %v2412 = vld [vmem:[%s2371 + $0x61] sm:$0xff]
        %v2413 = vld [vmem:[%s2371 + $0x69] sm:$0xff]
        %v2414 = vld [vmem:[%s2371 + $0x79] sm:$0xff]
        %v2415 = vld [vmem:[%s2371 + $0x81] sm:$0xff]
        %v2416 = vld [vmem:[%s2371 + $0x91] sm:$0xff]
        %v2417 = vld [vmem:[%s2371 + $0x99] sm:$0xff]
        %v2418 = vld [vmem:[%s2371 + $0xa9] sm:$0xff]
        %v2419 = vld [vmem:[%s2371 + $0xb1] sm:$0xff]
        %v2420 = vld [vmem:[%s2371 + $0xc1] sm:$0xff]
        %v2421 = vld [vmem:[%s2371 + $0xc9] sm:$0xff]
        %v2422 = vld [vmem:[%s2371 + $0xd9] sm:$0xff]
        %v2423 = vld [vmem:[%s2371 + $0xe1] sm:$0xff]
        %v2424 = vld [vmem:[%s2371 + $0xf1] sm:$0xff]
        %v2425 = vld [vmem:[%s2371 + $0xf9] sm:$0xff]
        %v2426 = vld [vmem:[%s2371 + $0x109] sm:$0xff]
        %v2427 = vld [vmem:[%s2371 + $0x111] sm:$0xff]
        %v2428 = vld [vmem:[%s2371 + $0x121] sm:$0xff]
        %v2429 = vld [vmem:[%s2371 + $0x129] sm:$0xff]
        %v2430 = vld [vmem:[%s2371 + $0x139] sm:$0xff]
        %v2431 = vld [vmem:[%s2371 + $0x141] sm:$0xff]
        %v2432 = vld [vmem:[%s2371 + $0x151] sm:$0xff]
        %v2433 = vld [vmem:[%s2371 + $0x159] sm:$0xff]
        %v2434 = vld [vmem:[%s2371 + $0x169] sm:$0xff]
        %v2435 = vld [vmem:[%s2371 + $0x171] sm:$0xff]
        %v2436 = vld [vmem:[%s2371 + $0x2] sm:$0xff]
        %v2437 = vld [vmem:[%s2371 + $0xa] sm:$0xff]
        %v2438 = vld [vmem:[%s2371 + $0x1a] sm:$0xff]
        %v2439 = vld [vmem:[%s2371 + $0x22] sm:$0xff]
        %v2440 = vld [vmem:[%s2371 + $0x32] sm:$0xff]
        %v2441 = vld [vmem:[%s2371 + $0x3a] sm:$0xff]
        %v2442 = vld [vmem:[%s2371 + $0x4a] sm:$0xff]
        %v2443 = vld [vmem:[%s2371 + $0x52] sm:$0xff]
        %v2444 = vld [vmem:[%s2371 + $0x62] sm:$0xff]
        %v2445 = vld [vmem:[%s2371 + $0x6a] sm:$0xff]
        %v2446 = vld [vmem:[%s2371 + $0x7a] sm:$0xff]
        %v2447 = vld [vmem:[%s2371 + $0x82] sm:$0xff]
        %v2448 = vld [vmem:[%s2371 + $0x92] sm:$0xff]
        %v2449 = vld [vmem:[%s2371 + $0x9a] sm:$0xff]
        %v2450 = vld [vmem:[%s2371 + $0xaa] sm:$0xff]
        %v2451 = vld [vmem:[%s2371 + $0xb2] sm:$0xff]
        %v2452 = vld [vmem:[%s2371 + $0xc2] sm:$0xff]
        %v2453 = vld [vmem:[%s2371 + $0xca] sm:$0xff]
        %v2454 = vld [vmem:[%s2371 + $0xda] sm:$0xff]
        %v2455 = vld [vmem:[%s2371 + $0xe2] sm:$0xff]
        %v2456 = vld [vmem:[%s2371 + $0xf2] sm:$0xff]
        %v2457 = vld [vmem:[%s2371 + $0xfa] sm:$0xff]
        %v2458 = vld [vmem:[%s2371 + $0x10a] sm:$0xff]
        %v2459 = vld [vmem:[%s2371 + $0x112] sm:$0xff]
        %v2460 = vld [vmem:[%s2371 + $0x122] sm:$0xff]
        %v2461 = vld [vmem:[%s2371 + $0x12a] sm:$0xff]
        %v2462 = vld [vmem:[%s2371 + $0x13a] sm:$0xff]
        %v2463 = vld [vmem:[%s2371 + $0x142] sm:$0xff]
        %v2464 = vld [vmem:[%s2371 + $0x152] sm:$0xff]
        %v2465 = vld [vmem:[%s2371 + $0x15a] sm:$0xff]
        %v2466 = vld [vmem:[%s2371 + $0x16a] sm:$0xff]
        %v2467 = vld [vmem:[%s2371 + $0x172] sm:$0xff]
        %2500 = vrot.lane.b32.xlu0 %v2211, 32
        %v2501 = vpop.permute.xlu0 %2500
        %2502 = vrot.lane.b32.xlu0 %v2212, 32
        %v2503 = vpop.permute.xlu0 %2502
        %2504 = vrot.lane.b32.xlu0 %v2213, 32
        %v2505 = vpop.permute.xlu0 %2504
        %2506 = vrot.lane.b32.xlu0 %v2214, 32
        %v2507 = vpop.permute.xlu0 %2506
        %2508 = vrot.lane.b32.xlu0 %v2215, 32
        %v2509 = vpop.permute.xlu0 %2508
        %2510 = vrot.lane.b32.xlu0 %v2216, 32
        %v2511 = vpop.permute.xlu0 %2510
        %2512 = vrot.lane.b32.xlu0 %v2217, 32
        %v2513 = vpop.permute.xlu0 %2512
        %2514 = vrot.lane.b32.xlu0 %v2218, 32
        %v2515 = vpop.permute.xlu0 %2514
        %2516 = vrot.lane.b32.xlu0 %v2219, 32
        %v2517 = vpop.permute.xlu0 %2516
        %2518 = vrot.lane.b32.xlu0 %v2220, 32
        %v2519 = vpop.permute.xlu0 %2518
        %2520 = vrot.lane.b32.xlu0 %v2221, 32
        %v2521 = vpop.permute.xlu0 %2520
        %2522 = vrot.lane.b32.xlu0 %v2222, 32
        %v2523 = vpop.permute.xlu0 %2522
        %2524 = vrot.lane.b32.xlu0 %v2223, 32
        %v2525 = vpop.permute.xlu0 %2524
        %2526 = vrot.lane.b32.xlu0 %v2224, 32
        %v2527 = vpop.permute.xlu0 %2526
        %2528 = vrot.lane.b32.xlu0 %v2225, 32
        %v2529 = vpop.permute.xlu0 %2528
        %2530 = vrot.lane.b32.xlu0 %v2226, 32
        %v2531 = vpop.permute.xlu0 %2530
        %2532 = vrot.lane.b32.xlu0 %v2227, 32
        %v2533 = vpop.permute.xlu0 %2532
        %2534 = vrot.lane.b32.xlu0 %v2228, 32
        %v2535 = vpop.permute.xlu0 %2534
        %2536 = vrot.lane.b32.xlu0 %v2229, 32
        %v2537 = vpop.permute.xlu0 %2536
        %2538 = vrot.lane.b32.xlu0 %v2230, 32
        %v2539 = vpop.permute.xlu0 %2538
        %2540 = vrot.lane.b32.xlu0 %v2231, 32
        %v2541 = vpop.permute.xlu0 %2540
        %2542 = vrot.lane.b32.xlu0 %v2232, 32
        %v2543 = vpop.permute.xlu0 %2542
        %2544 = vrot.lane.b32.xlu0 %v2233, 32
        %v2545 = vpop.permute.xlu0 %2544
        %2546 = vrot.lane.b32.xlu0 %v2234, 32
        %v2547 = vpop.permute.xlu0 %2546
        %2548 = vrot.lane.b32.xlu0 %v2235, 32
        %v2549 = vpop.permute.xlu0 %2548
        %2550 = vrot.lane.b32.xlu0 %v2236, 32
        %v2551 = vpop.permute.xlu0 %2550
        %2552 = vrot.lane.b32.xlu0 %v2237, 32
        %v2553 = vpop.permute.xlu0 %2552
        %2554 = vrot.lane.b32.xlu0 %v2238, 32
        %v2555 = vpop.permute.xlu0 %2554
        %2556 = vrot.lane.b32.xlu0 %v2239, 32
        %v2557 = vpop.permute.xlu0 %2556
        %2558 = vrot.lane.b32.xlu0 %v2240, 32
        %v2559 = vpop.permute.xlu0 %2558
        %2560 = vrot.lane.b32.xlu0 %v2241, 32
        %v2561 = vpop.permute.xlu0 %2560
        %2562 = vrot.lane.b32.xlu0 %v2242, 32
        %v2563 = vpop.permute.xlu0 %2562
        %2628 = vrot.lane.b32.xlu0 %v2243, 64
        %v2629 = vpop.permute.xlu0 %2628
        %2630 = vrot.lane.b32.xlu0 %v2244, 64
        %v2631 = vpop.permute.xlu0 %2630
        %2632 = vrot.lane.b32.xlu0 %v2245, 64
        %v2633 = vpop.permute.xlu0 %2632
        %2634 = vrot.lane.b32.xlu0 %v2246, 64
        %v2635 = vpop.permute.xlu0 %2634
        %2636 = vrot.lane.b32.xlu0 %v2247, 64
        %v2637 = vpop.permute.xlu0 %2636
        %2638 = vrot.lane.b32.xlu0 %v2248, 64
        %v2639 = vpop.permute.xlu0 %2638
        %2640 = vrot.lane.b32.xlu0 %v2249, 64
        %v2641 = vpop.permute.xlu0 %2640
        %2642 = vrot.lane.b32.xlu0 %v2250, 64
        %v2643 = vpop.permute.xlu0 %2642
        %2644 = vrot.lane.b32.xlu0 %v2251, 64
        %v2645 = vpop.permute.xlu0 %2644
        %2646 = vrot.lane.b32.xlu0 %v2252, 64
        %v2647 = vpop.permute.xlu0 %2646
        %2648 = vrot.lane.b32.xlu0 %v2253, 64
        %v2649 = vpop.permute.xlu0 %2648
        %2650 = vrot.lane.b32.xlu0 %v2254, 64
        %v2651 = vpop.permute.xlu0 %2650
        %2652 = vrot.lane.b32.xlu0 %v2255, 64
        %v2653 = vpop.permute.xlu0 %2652
        %2654 = vrot.lane.b32.xlu0 %v2256, 64
        %v2655 = vpop.permute.xlu0 %2654
        %2656 = vrot.lane.b32.xlu0 %v2257, 64
        %v2657 = vpop.permute.xlu0 %2656
        %2658 = vrot.lane.b32.xlu0 %v2258, 64
        %v2659 = vpop.permute.xlu0 %2658
        %2660 = vrot.lane.b32.xlu0 %v2259, 64
        %v2661 = vpop.permute.xlu0 %2660
        %2662 = vrot.lane.b32.xlu0 %v2260, 64
        %v2663 = vpop.permute.xlu0 %2662
        %2664 = vrot.lane.b32.xlu0 %v2261, 64
        %v2665 = vpop.permute.xlu0 %2664
        %2666 = vrot.lane.b32.xlu0 %v2262, 64
        %v2667 = vpop.permute.xlu0 %2666
        %2668 = vrot.lane.b32.xlu0 %v2263, 64
        %v2669 = vpop.permute.xlu0 %2668
        %2670 = vrot.lane.b32.xlu0 %v2264, 64
        %v2671 = vpop.permute.xlu0 %2670
        %2672 = vrot.lane.b32.xlu0 %v2265, 64
        %v2673 = vpop.permute.xlu0 %2672
        %2674 = vrot.lane.b32.xlu0 %v2266, 64
        %v2675 = vpop.permute.xlu0 %2674
        %2676 = vrot.lane.b32.xlu0 %v2267, 64
        %v2677 = vpop.permute.xlu0 %2676
        %2678 = vrot.lane.b32.xlu0 %v2268, 64
        %v2679 = vpop.permute.xlu0 %2678
        %2680 = vrot.lane.b32.xlu0 %v2269, 64
        %v2681 = vpop.permute.xlu0 %2680
        %2682 = vrot.lane.b32.xlu0 %v2270, 64
        %v2683 = vpop.permute.xlu0 %2682
        %2684 = vrot.lane.b32.xlu0 %v2271, 64
        %v2685 = vpop.permute.xlu0 %2684
        %2686 = vrot.lane.b32.xlu0 %v2272, 64
        %v2687 = vpop.permute.xlu0 %2686
        %2688 = vrot.lane.b32.xlu0 %v2273, 64
        %v2689 = vpop.permute.xlu0 %2688
        %2690 = vrot.lane.b32.xlu0 %v2274, 64
        %v2691 = vpop.permute.xlu0 %2690
        %2756 = vrot.lane.b32.xlu0 %v2275, 96
        %v2757 = vpop.permute.xlu0 %2756
        %2758 = vrot.lane.b32.xlu0 %v2276, 96
        %v2759 = vpop.permute.xlu0 %2758
        %2760 = vrot.lane.b32.xlu0 %v2277, 96
        %v2761 = vpop.permute.xlu0 %2760
        %2762 = vrot.lane.b32.xlu0 %v2278, 96
        %v2763 = vpop.permute.xlu0 %2762
        %2764 = vrot.lane.b32.xlu0 %v2279, 96
        %v2765 = vpop.permute.xlu0 %2764
        %2766 = vrot.lane.b32.xlu0 %v2280, 96
        %v2767 = vpop.permute.xlu0 %2766
        %2768 = vrot.lane.b32.xlu0 %v2281, 96
        %v2769 = vpop.permute.xlu0 %2768
        %2770 = vrot.lane.b32.xlu0 %v2282, 96
        %v2771 = vpop.permute.xlu0 %2770
        %2772 = vrot.lane.b32.xlu0 %v2283, 96
        %v2773 = vpop.permute.xlu0 %2772
        %2774 = vrot.lane.b32.xlu0 %v2284, 96
        %v2775 = vpop.permute.xlu0 %2774
        %2776 = vrot.lane.b32.xlu0 %v2285, 96
        %v2777 = vpop.permute.xlu0 %2776
        %2778 = vrot.lane.b32.xlu0 %v2286, 96
        %v2779 = vpop.permute.xlu0 %2778
        %2780 = vrot.lane.b32.xlu0 %v2287, 96
        %v2781 = vpop.permute.xlu0 %2780
        %2782 = vrot.lane.b32.xlu0 %v2288, 96
        %v2783 = vpop.permute.xlu0 %2782
        %2784 = vrot.lane.b32.xlu0 %v2289, 96
        %v2785 = vpop.permute.xlu0 %2784
        %2786 = vrot.lane.b32.xlu0 %v2290, 96
        %v2787 = vpop.permute.xlu0 %2786
        %2788 = vrot.lane.b32.xlu0 %v2291, 96
        %v2789 = vpop.permute.xlu0 %2788
        %2790 = vrot.lane.b32.xlu0 %v2292, 96
        %v2791 = vpop.permute.xlu0 %2790
        %2792 = vrot.lane.b32.xlu0 %v2293, 96
        %v2793 = vpop.permute.xlu0 %2792
        %2794 = vrot.lane.b32.xlu0 %v2294, 96
        %v2795 = vpop.permute.xlu0 %2794
        %2796 = vrot.lane.b32.xlu0 %v2295, 96
        %v2797 = vpop.permute.xlu0 %2796
        %2798 = vrot.lane.b32.xlu0 %v2296, 96
        %v2799 = vpop.permute.xlu0 %2798
        %2800 = vrot.lane.b32.xlu0 %v2297, 96
        %v2801 = vpop.permute.xlu0 %2800
        %2802 = vrot.lane.b32.xlu0 %v2298, 96
        %v2803 = vpop.permute.xlu0 %2802
        %2804 = vrot.lane.b32.xlu0 %v2299, 96
        %v2805 = vpop.permute.xlu0 %2804
        %2806 = vrot.lane.b32.xlu0 %v2300, 96
        %v2807 = vpop.permute.xlu0 %2806
        %2808 = vrot.lane.b32.xlu0 %v2301, 96
        %v2809 = vpop.permute.xlu0 %2808
        %2810 = vrot.lane.b32.xlu0 %v2302, 96
        %v2811 = vpop.permute.xlu0 %2810
        %2812 = vrot.lane.b32.xlu0 %v2303, 96
        %v2813 = vpop.permute.xlu0 %2812
        %2814 = vrot.lane.b32.xlu0 %v2304, 96
        %v2815 = vpop.permute.xlu0 %2814
        %2816 = vrot.lane.b32.xlu0 %v2305, 96
        %v2817 = vpop.permute.xlu0 %2816
        %2818 = vrot.lane.b32.xlu0 %v2306, 96
        %v2819 = vpop.permute.xlu0 %2818
        %2884 = vrot.lane.b32.xlu0 %v2339, 32
        %v2885 = vpop.permute.xlu0 %2884
        %2886 = vrot.lane.b32.xlu0 %v2340, 32
        %v2887 = vpop.permute.xlu0 %2886
        %2888 = vrot.lane.b32.xlu0 %v2341, 32
        %v2889 = vpop.permute.xlu0 %2888
        %2890 = vrot.lane.b32.xlu0 %v2342, 32
        %v2891 = vpop.permute.xlu0 %2890
        %2892 = vrot.lane.b32.xlu0 %v2343, 32
        %v2893 = vpop.permute.xlu0 %2892
        %2894 = vrot.lane.b32.xlu0 %v2344, 32
        %v2895 = vpop.permute.xlu0 %2894
        %2896 = vrot.lane.b32.xlu0 %v2345, 32
        %v2897 = vpop.permute.xlu0 %2896
        %2898 = vrot.lane.b32.xlu0 %v2346, 32
        %v2899 = vpop.permute.xlu0 %2898
        %2900 = vrot.lane.b32.xlu0 %v2347, 32
        %v2901 = vpop.permute.xlu0 %2900
        %2902 = vrot.lane.b32.xlu0 %v2348, 32
        %v2903 = vpop.permute.xlu0 %2902
        %2904 = vrot.lane.b32.xlu0 %v2349, 32
        %v2905 = vpop.permute.xlu0 %2904
        %2906 = vrot.lane.b32.xlu0 %v2350, 32
        %v2907 = vpop.permute.xlu0 %2906
        %2908 = vrot.lane.b32.xlu0 %v2351, 32
        %v2909 = vpop.permute.xlu0 %2908
        %2910 = vrot.lane.b32.xlu0 %v2352, 32
        %v2911 = vpop.permute.xlu0 %2910
        %2912 = vrot.lane.b32.xlu0 %v2353, 32
        %v2913 = vpop.permute.xlu0 %2912
        %2914 = vrot.lane.b32.xlu0 %v2354, 32
        %v2915 = vpop.permute.xlu0 %2914
        %2916 = vrot.lane.b32.xlu0 %v2355, 32
        %v2917 = vpop.permute.xlu0 %2916
        %2918 = vrot.lane.b32.xlu0 %v2356, 32
        %v2919 = vpop.permute.xlu0 %2918
        %2920 = vrot.lane.b32.xlu0 %v2357, 32
        %v2921 = vpop.permute.xlu0 %2920
        %2922 = vrot.lane.b32.xlu0 %v2358, 32
        %v2923 = vpop.permute.xlu0 %2922
        %2924 = vrot.lane.b32.xlu0 %v2359, 32
        %v2925 = vpop.permute.xlu0 %2924
        %2926 = vrot.lane.b32.xlu0 %v2360, 32
        %v2927 = vpop.permute.xlu0 %2926
        %2928 = vrot.lane.b32.xlu0 %v2361, 32
        %v2929 = vpop.permute.xlu0 %2928
        %2930 = vrot.lane.b32.xlu0 %v2362, 32
        %v2931 = vpop.permute.xlu0 %2930
        %2932 = vrot.lane.b32.xlu0 %v2363, 32
        %v2933 = vpop.permute.xlu0 %2932
        %2934 = vrot.lane.b32.xlu0 %v2364, 32
        %v2935 = vpop.permute.xlu0 %2934
        %2936 = vrot.lane.b32.xlu0 %v2365, 32
        %v2937 = vpop.permute.xlu0 %2936
        %2938 = vrot.lane.b32.xlu0 %v2366, 32
        %v2939 = vpop.permute.xlu0 %2938
        %2940 = vrot.lane.b32.xlu0 %v2367, 32
        %v2941 = vpop.permute.xlu0 %2940
        %2942 = vrot.lane.b32.xlu0 %v2368, 32
        %v2943 = vpop.permute.xlu0 %2942
        %2944 = vrot.lane.b32.xlu0 %v2369, 32
        %v2945 = vpop.permute.xlu0 %2944
        %2946 = vrot.lane.b32.xlu0 %v2370, 32
        %v2947 = vpop.permute.xlu0 %2946
        %3012 = vrot.lane.b32.xlu0 %v2372, 64
        %v3013 = vpop.permute.xlu0 %3012
        %3014 = vrot.lane.b32.xlu0 %v2373, 64
        %v3015 = vpop.permute.xlu0 %3014
        %3016 = vrot.lane.b32.xlu0 %v2374, 64
        %v3017 = vpop.permute.xlu0 %3016
        %3018 = vrot.lane.b32.xlu0 %v2375, 64
        %v3019 = vpop.permute.xlu0 %3018
        %3020 = vrot.lane.b32.xlu0 %v2376, 64
        %v3021 = vpop.permute.xlu0 %3020
        %3022 = vrot.lane.b32.xlu0 %v2377, 64
        %v3023 = vpop.permute.xlu0 %3022
        %3024 = vrot.lane.b32.xlu0 %v2378, 64
        %v3025 = vpop.permute.xlu0 %3024
        %3026 = vrot.lane.b32.xlu0 %v2379, 64
        %v3027 = vpop.permute.xlu0 %3026
        %3028 = vrot.lane.b32.xlu0 %v2380, 64
        %v3029 = vpop.permute.xlu0 %3028
        %3030 = vrot.lane.b32.xlu0 %v2381, 64
        %v3031 = vpop.permute.xlu0 %3030
        %3032 = vrot.lane.b32.xlu0 %v2382, 64
        %v3033 = vpop.permute.xlu0 %3032
        %3034 = vrot.lane.b32.xlu0 %v2383, 64
        %v3035 = vpop.permute.xlu0 %3034
        %3036 = vrot.lane.b32.xlu0 %v2384, 64
        %v3037 = vpop.permute.xlu0 %3036
        %3038 = vrot.lane.b32.xlu0 %v2385, 64
        %v3039 = vpop.permute.xlu0 %3038
        %3040 = vrot.lane.b32.xlu0 %v2386, 64
        %v3041 = vpop.permute.xlu0 %3040
        %3042 = vrot.lane.b32.xlu0 %v2387, 64
        %v3043 = vpop.permute.xlu0 %3042
        %3044 = vrot.lane.b32.xlu0 %v2388, 64
        %v3045 = vpop.permute.xlu0 %3044
        %3046 = vrot.lane.b32.xlu0 %v2389, 64
        %v3047 = vpop.permute.xlu0 %3046
        %3048 = vrot.lane.b32.xlu0 %v2390, 64
        %v3049 = vpop.permute.xlu0 %3048
        %3050 = vrot.lane.b32.xlu0 %v2391, 64
        %v3051 = vpop.permute.xlu0 %3050
        %3052 = vrot.lane.b32.xlu0 %v2392, 64
        %v3053 = vpop.permute.xlu0 %3052
        %3054 = vrot.lane.b32.xlu0 %v2393, 64
        %v3055 = vpop.permute.xlu0 %3054
        %3056 = vrot.lane.b32.xlu0 %v2394, 64
        %v3057 = vpop.permute.xlu0 %3056
        %3058 = vrot.lane.b32.xlu0 %v2395, 64
        %v3059 = vpop.permute.xlu0 %3058
        %3060 = vrot.lane.b32.xlu0 %v2396, 64
        %v3061 = vpop.permute.xlu0 %3060
        %3062 = vrot.lane.b32.xlu0 %v2397, 64
        %v3063 = vpop.permute.xlu0 %3062
        %3064 = vrot.lane.b32.xlu0 %v2398, 64
        %v3065 = vpop.permute.xlu0 %3064
        %3066 = vrot.lane.b32.xlu0 %v2399, 64
        %v3067 = vpop.permute.xlu0 %3066
        %3068 = vrot.lane.b32.xlu0 %v2400, 64
        %v3069 = vpop.permute.xlu0 %3068
        %3070 = vrot.lane.b32.xlu0 %v2401, 64
        %v3071 = vpop.permute.xlu0 %3070
        %3072 = vrot.lane.b32.xlu0 %v2402, 64
        %v3073 = vpop.permute.xlu0 %3072
        %3074 = vrot.lane.b32.xlu0 %v2403, 64
        %v3075 = vpop.permute.xlu0 %3074
        %3140 = vrot.lane.b32.xlu0 %v2404, 96
        %v3141 = vpop.permute.xlu0 %3140
        %3142 = vrot.lane.b32.xlu0 %v2405, 96
        %v3143 = vpop.permute.xlu0 %3142
        %3144 = vrot.lane.b32.xlu0 %v2406, 96
        %v3145 = vpop.permute.xlu0 %3144
        %3146 = vrot.lane.b32.xlu0 %v2407, 96
        %v3147 = vpop.permute.xlu0 %3146
        %3148 = vrot.lane.b32.xlu0 %v2408, 96
        %v3149 = vpop.permute.xlu0 %3148
        %3150 = vrot.lane.b32.xlu0 %v2409, 96
        %v3151 = vpop.permute.xlu0 %3150
        %3152 = vrot.lane.b32.xlu0 %v2410, 96
        %v3153 = vpop.permute.xlu0 %3152
        %3154 = vrot.lane.b32.xlu0 %v2411, 96
        %v3155 = vpop.permute.xlu0 %3154
        %3156 = vrot.lane.b32.xlu0 %v2412, 96
        %v3157 = vpop.permute.xlu0 %3156
        %3158 = vrot.lane.b32.xlu0 %v2413, 96
        %v3159 = vpop.permute.xlu0 %3158
        %3160 = vrot.lane.b32.xlu0 %v2414, 96
        %v3161 = vpop.permute.xlu0 %3160
        %3162 = vrot.lane.b32.xlu0 %v2415, 96
        %v3163 = vpop.permute.xlu0 %3162
        %3164 = vrot.lane.b32.xlu0 %v2416, 96
        %v3165 = vpop.permute.xlu0 %3164
        %3166 = vrot.lane.b32.xlu0 %v2417, 96
        %v3167 = vpop.permute.xlu0 %3166
        %3168 = vrot.lane.b32.xlu0 %v2418, 96
        %v3169 = vpop.permute.xlu0 %3168
        %3170 = vrot.lane.b32.xlu0 %v2419, 96
        %v3171 = vpop.permute.xlu0 %3170
        %3172 = vrot.lane.b32.xlu0 %v2420, 96
        %v3173 = vpop.permute.xlu0 %3172
        %3174 = vrot.lane.b32.xlu0 %v2421, 96
        %v3175 = vpop.permute.xlu0 %3174
        %3176 = vrot.lane.b32.xlu0 %v2422, 96
        %v3177 = vpop.permute.xlu0 %3176
        %3178 = vrot.lane.b32.xlu0 %v2423, 96
        %v3179 = vpop.permute.xlu0 %3178
        %3180 = vrot.lane.b32.xlu0 %v2424, 96
        %v3181 = vpop.permute.xlu0 %3180
        %3182 = vrot.lane.b32.xlu0 %v2425, 96
        %v3183 = vpop.permute.xlu0 %3182
        %3184 = vrot.lane.b32.xlu0 %v2426, 96
        %v3185 = vpop.permute.xlu0 %3184
        %3186 = vrot.lane.b32.xlu0 %v2427, 96
        %v3187 = vpop.permute.xlu0 %3186
        %3188 = vrot.lane.b32.xlu0 %v2428, 96
        %v3189 = vpop.permute.xlu0 %3188
        %3190 = vrot.lane.b32.xlu0 %v2429, 96
        %v3191 = vpop.permute.xlu0 %3190
        %3192 = vrot.lane.b32.xlu0 %v2430, 96
        %v3193 = vpop.permute.xlu0 %3192
        %3194 = vrot.lane.b32.xlu0 %v2431, 96
        %v3195 = vpop.permute.xlu0 %3194
        %3196 = vrot.lane.b32.xlu0 %v2432, 96
        %v3197 = vpop.permute.xlu0 %3196
        %3198 = vrot.lane.b32.xlu0 %v2433, 96
        %v3199 = vpop.permute.xlu0 %3198
        %3200 = vrot.lane.b32.xlu0 %v2434, 96
        %v3201 = vpop.permute.xlu0 %3200
        %3202 = vrot.lane.b32.xlu0 %v2435, 96
        %v3203 = vpop.permute.xlu0 %3202
        %v3236 = vsel %vm224, %v2179, %v2501
        %v3237 = vsel %vm224, %v2180, %v2503
        %v3238 = vsel %vm224, %v2181, %v2505
        %v3239 = vsel %vm224, %v2182, %v2507
        %v3240 = vsel %vm224, %v2183, %v2509
        %v3241 = vsel %vm224, %v2184, %v2511
        %v3242 = vsel %vm224, %v2185, %v2513
        %v3243 = vsel %vm224, %v2186, %v2515
        %v3244 = vsel %vm224, %v2187, %v2517
        %v3245 = vsel %vm224, %v2188, %v2519
        %v3246 = vsel %vm224, %v2189, %v2521
        %v3247 = vsel %vm224, %v2190, %v2523
        %v3248 = vsel %vm224, %v2191, %v2525
        %v3249 = vsel %vm224, %v2192, %v2527
        %v3250 = vsel %vm224, %v2193, %v2529
        %v3251 = vsel %vm224, %v2194, %v2531
        %v3252 = vsel %vm224, %v2195, %v2533
        %v3253 = vsel %vm224, %v2196, %v2535
        %v3254 = vsel %vm224, %v2197, %v2537
        %v3255 = vsel %vm224, %v2198, %v2539
        %v3256 = vsel %vm224, %v2199, %v2541
        %v3257 = vsel %vm224, %v2200, %v2543
        %v3258 = vsel %vm224, %v2201, %v2545
        %v3259 = vsel %vm224, %v2202, %v2547
        %v3260 = vsel %vm224, %v2203, %v2549
        %v3261 = vsel %vm224, %v2204, %v2551
        %v3262 = vsel %vm224, %v2205, %v2553
        %v3263 = vsel %vm224, %v2206, %v2555
        %v3264 = vsel %vm224, %v2207, %v2557
        %v3265 = vsel %vm224, %v2208, %v2559
        %v3266 = vsel %vm224, %v2209, %v2561
        %v3267 = vsel %vm224, %v2210, %v2563
        %vm3268 = vcmask 523264
        %v3269 = vsel %vm3268, %v3236, %v2629
        %v3270 = vsel %vm3268, %v3237, %v2631
        %v3271 = vsel %vm3268, %v3238, %v2633
        %v3272 = vsel %vm3268, %v3239, %v2635
        %v3273 = vsel %vm3268, %v3240, %v2637
        %v3274 = vsel %vm3268, %v3241, %v2639
        %v3275 = vsel %vm3268, %v3242, %v2641
        %v3276 = vsel %vm3268, %v3243, %v2643
        %v3277 = vsel %vm3268, %v3244, %v2645
        %v3278 = vsel %vm3268, %v3245, %v2647
        %v3279 = vsel %vm3268, %v3246, %v2649
        %v3280 = vsel %vm3268, %v3247, %v2651
        %v3281 = vsel %vm3268, %v3248, %v2653
        %v3282 = vsel %vm3268, %v3249, %v2655
        %v3283 = vsel %vm3268, %v3250, %v2657
        %v3284 = vsel %vm3268, %v3251, %v2659
        %v3285 = vsel %vm3268, %v3252, %v2661
        %v3286 = vsel %vm3268, %v3253, %v2663
        %v3287 = vsel %vm3268, %v3254, %v2665
        %v3288 = vsel %vm3268, %v3255, %v2667
        %v3289 = vsel %vm3268, %v3256, %v2669
        %v3290 = vsel %vm3268, %v3257, %v2671
        %v3291 = vsel %vm3268, %v3258, %v2673
        %v3292 = vsel %vm3268, %v3259, %v2675
        %v3293 = vsel %vm3268, %v3260, %v2677
        %v3294 = vsel %vm3268, %v3261, %v2679
        %v3295 = vsel %vm3268, %v3262, %v2681
        %v3296 = vsel %vm3268, %v3263, %v2683
        %v3297 = vsel %vm3268, %v3264, %v2685
        %v3298 = vsel %vm3268, %v3265, %v2687
        %v3299 = vsel %vm3268, %v3266, %v2689
        %v3300 = vsel %vm3268, %v3267, %v2691
        %vm3301 = vcmask 785408
        %v3302 = vsel %vm3301, %v3269, %v2757
        %v3303 = vsel %vm3301, %v3270, %v2759
        %v3304 = vsel %vm3301, %v3271, %v2761
        %v3305 = vsel %vm3301, %v3272, %v2763
        %v3306 = vsel %vm3301, %v3273, %v2765
        %v3307 = vsel %vm3301, %v3274, %v2767
        %v3308 = vsel %vm3301, %v3275, %v2769
        %v3309 = vsel %vm3301, %v3276, %v2771
        %v3310 = vsel %vm3301, %v3277, %v2773
        %v3311 = vsel %vm3301, %v3278, %v2775
        %v3312 = vsel %vm3301, %v3279, %v2777
        %v3313 = vsel %vm3301, %v3280, %v2779
        %v3314 = vsel %vm3301, %v3281, %v2781
        %v3315 = vsel %vm3301, %v3282, %v2783
        %v3316 = vsel %vm3301, %v3283, %v2785
        %v3317 = vsel %vm3301, %v3284, %v2787
        %v3318 = vsel %vm3301, %v3285, %v2789
        %v3319 = vsel %vm3301, %v3286, %v2791
        %v3320 = vsel %vm3301, %v3287, %v2793
        %v3321 = vsel %vm3301, %v3288, %v2795
        %v3322 = vsel %vm3301, %v3289, %v2797
        %v3323 = vsel %vm3301, %v3290, %v2799
        %v3324 = vsel %vm3301, %v3291, %v2801
        %v3325 = vsel %vm3301, %v3292, %v2803
        %v3326 = vsel %vm3301, %v3293, %v2805
        %v3327 = vsel %vm3301, %v3294, %v2807
        %v3328 = vsel %vm3301, %v3295, %v2809
        %v3329 = vsel %vm3301, %v3296, %v2811
        %v3330 = vsel %vm3301, %v3297, %v2813
        %v3331 = vsel %vm3301, %v3298, %v2815
        %v3332 = vsel %vm3301, %v3299, %v2817
        %v3333 = vsel %vm3301, %v3300, %v2819
        %v3334 = vsel %vm224, %v2307, %v2885
        %v3335 = vsel %vm224, %v2308, %v2887
        %v3336 = vsel %vm224, %v2309, %v2889
        %v3337 = vsel %vm224, %v2310, %v2891
        %v3338 = vsel %vm224, %v2311, %v2893
        %v3339 = vsel %vm224, %v2312, %v2895
        %v3340 = vsel %vm224, %v2313, %v2897
        %v3341 = vsel %vm224, %v2314, %v2899
        %v3342 = vsel %vm224, %v2315, %v2901
        %v3343 = vsel %vm224, %v2316, %v2903
        %v3344 = vsel %vm224, %v2317, %v2905
        %v3345 = vsel %vm224, %v2318, %v2907
        %v3346 = vsel %vm224, %v2319, %v2909
        %v3347 = vsel %vm224, %v2320, %v2911
        %v3348 = vsel %vm224, %v2321, %v2913
        %v3349 = vsel %vm224, %v2322, %v2915
        %v3350 = vsel %vm224, %v2323, %v2917
        %v3351 = vsel %vm224, %v2324, %v2919
        %v3352 = vsel %vm224, %v2325, %v2921
        %v3353 = vsel %vm224, %v2326, %v2923
        %v3354 = vsel %vm224, %v2327, %v2925
        %v3355 = vsel %vm224, %v2328, %v2927
        %v3356 = vsel %vm224, %v2329, %v2929
        %v3357 = vsel %vm224, %v2330, %v2931
        %v3358 = vsel %vm224, %v2331, %v2933
        %v3359 = vsel %vm224, %v2332, %v2935
        %v3360 = vsel %vm224, %v2333, %v2937
        %v3361 = vsel %vm224, %v2334, %v2939
        %v3362 = vsel %vm224, %v2335, %v2941
        %v3363 = vsel %vm224, %v2336, %v2943
        %v3364 = vsel %vm224, %v2337, %v2945
        %v3365 = vsel %vm224, %v2338, %v2947
        %v3366 = vsel %vm3268, %v3334, %v3013
        %v3367 = vsel %vm3268, %v3335, %v3015
        %v3368 = vsel %vm3268, %v3336, %v3017
        %v3369 = vsel %vm3268, %v3337, %v3019
        %v3370 = vsel %vm3268, %v3338, %v3021
        %v3371 = vsel %vm3268, %v3339, %v3023
        %v3372 = vsel %vm3268, %v3340, %v3025
        %v3373 = vsel %vm3268, %v3341, %v3027
        %v3374 = vsel %vm3268, %v3342, %v3029
        %v3375 = vsel %vm3268, %v3343, %v3031
        %v3376 = vsel %vm3268, %v3344, %v3033
        %v3377 = vsel %vm3268, %v3345, %v3035
        %v3378 = vsel %vm3268, %v3346, %v3037
        %v3379 = vsel %vm3268, %v3347, %v3039
        %v3380 = vsel %vm3268, %v3348, %v3041
        %v3381 = vsel %vm3268, %v3349, %v3043
        %v3382 = vsel %vm3268, %v3350, %v3045
        %v3383 = vsel %vm3268, %v3351, %v3047
        %v3384 = vsel %vm3268, %v3352, %v3049
        %v3385 = vsel %vm3268, %v3353, %v3051
        %v3386 = vsel %vm3268, %v3354, %v3053
        %v3387 = vsel %vm3268, %v3355, %v3055
        %v3388 = vsel %vm3268, %v3356, %v3057
        %v3389 = vsel %vm3268, %v3357, %v3059
        %v3390 = vsel %vm3268, %v3358, %v3061
        %v3391 = vsel %vm3268, %v3359, %v3063
        %v3392 = vsel %vm3268, %v3360, %v3065
        %v3393 = vsel %vm3268, %v3361, %v3067
        %v3394 = vsel %vm3268, %v3362, %v3069
        %v3395 = vsel %vm3268, %v3363, %v3071
        %v3396 = vsel %vm3268, %v3364, %v3073
        %v3397 = vsel %vm3268, %v3365, %v3075
        %v3398 = vsel %vm3301, %v3366, %v3141
        %v3399 = vsel %vm3301, %v3367, %v3143
        %v3400 = vsel %vm3301, %v3368, %v3145
        %v3401 = vsel %vm3301, %v3369, %v3147
        %v3402 = vsel %vm3301, %v3370, %v3149
        %v3403 = vsel %vm3301, %v3371, %v3151
        %v3404 = vsel %vm3301, %v3372, %v3153
        %v3405 = vsel %vm3301, %v3373, %v3155
        %v3406 = vsel %vm3301, %v3374, %v3157
        %v3407 = vsel %vm3301, %v3375, %v3159
        %v3408 = vsel %vm3301, %v3376, %v3161
        %v3409 = vsel %vm3301, %v3377, %v3163
        %v3410 = vsel %vm3301, %v3378, %v3165
        %v3411 = vsel %vm3301, %v3379, %v3167
        %v3412 = vsel %vm3301, %v3380, %v3169
        %v3413 = vsel %vm3301, %v3381, %v3171
        %v3414 = vsel %vm3301, %v3382, %v3173
        %v3415 = vsel %vm3301, %v3383, %v3175
        %v3416 = vsel %vm3301, %v3384, %v3177
        %v3417 = vsel %vm3301, %v3385, %v3179
        %v3418 = vsel %vm3301, %v3386, %v3181
        %v3419 = vsel %vm3301, %v3387, %v3183
        %v3420 = vsel %vm3301, %v3388, %v3185
        %v3421 = vsel %vm3301, %v3389, %v3187
        %v3422 = vsel %vm3301, %v3390, %v3189
        %v3423 = vsel %vm3301, %v3391, %v3191
        %v3424 = vsel %vm3301, %v3392, %v3193
        %v3425 = vsel %vm3301, %v3393, %v3195
        %v3426 = vsel %vm3301, %v3394, %v3197
        %v3427 = vsel %vm3301, %v3395, %v3199
        %v3428 = vsel %vm3301, %v3396, %v3201
        %v3429 = vsel %vm3301, %v3397, %v3203
        %v3430 = vpack.c.bf16 %v3303, %v3302
        %v3431 = vpack.c.bf16 %v3399, %v3398
        %v3432 = vpack.c.bf16 %v2437, %v2436
        %v3433 = vpack.c.bf16 %v3305, %v3304
        %v3434 = vpack.c.bf16 %v3401, %v3400
        %v3435 = vpack.c.bf16 %v2439, %v2438
        %v3436 = vpack.c.bf16 %v3307, %v3306
        %v3437 = vpack.c.bf16 %v3403, %v3402
        %v3438 = vpack.c.bf16 %v2441, %v2440
        %v3439 = vpack.c.bf16 %v3309, %v3308
        %v3440 = vpack.c.bf16 %v3405, %v3404
        %v3441 = vpack.c.bf16 %v2443, %v2442
        %v3442 = vpack.c.bf16 %v3311, %v3310
        %v3443 = vpack.c.bf16 %v3407, %v3406
        %v3444 = vpack.c.bf16 %v2445, %v2444
        %v3445 = vpack.c.bf16 %v3313, %v3312
        %v3446 = vpack.c.bf16 %v3409, %v3408
        %v3447 = vpack.c.bf16 %v2447, %v2446
        %v3448 = vpack.c.bf16 %v3315, %v3314
        %v3449 = vpack.c.bf16 %v3411, %v3410
        %v3450 = vpack.c.bf16 %v2449, %v2448
        %v3451 = vpack.c.bf16 %v3317, %v3316
        %v3452 = vpack.c.bf16 %v3413, %v3412
        %v3453 = vpack.c.bf16 %v2451, %v2450
        %v3454 = vpack.c.bf16 %v3319, %v3318
        %v3455 = vpack.c.bf16 %v3415, %v3414
        %v3456 = vpack.c.bf16 %v2453, %v2452
        %v3457 = vpack.c.bf16 %v3321, %v3320
        %v3458 = vpack.c.bf16 %v3417, %v3416
        %v3459 = vpack.c.bf16 %v2455, %v2454
        %v3460 = vpack.c.bf16 %v3323, %v3322
        %v3461 = vpack.c.bf16 %v3419, %v3418
        %v3462 = vpack.c.bf16 %v2457, %v2456
        %v3463 = vpack.c.bf16 %v3325, %v3324
        %v3464 = vpack.c.bf16 %v3421, %v3420
        %v3465 = vpack.c.bf16 %v2459, %v2458
        %v3466 = vpack.c.bf16 %v3327, %v3326
        %v3467 = vpack.c.bf16 %v3423, %v3422
        %v3468 = vpack.c.bf16 %v2461, %v2460
        %v3469 = vpack.c.bf16 %v3329, %v3328
        %v3470 = vpack.c.bf16 %v3425, %v3424
        %v3471 = vpack.c.bf16 %v2463, %v2462
        %v3472 = vpack.c.bf16 %v3331, %v3330
        %v3473 = vpack.c.bf16 %v3427, %v3426
        %v3474 = vpack.c.bf16 %v2465, %v2464
        %v3475 = vpack.c.bf16 %v3333, %v3332
        %v3476 = vpack.c.bf16 %v3429, %v3428
        %v3477 = vpack.c.bf16 %v2467, %v2466
        %v3478 = vld [vmem:[%s3] sm:$0xf]
        %v3479 = vld [vmem:[%s3 + $0x4] sm:$0xf]
        %v3480 = vld [vmem:[%s3 + $0x8] sm:$0xf]
        %v3481 = vld [vmem:[%s3 + $0xc] sm:$0xf]
        %v3482 = vld [vmem:[%s3 + $0x10] sm:$0xf]
        %v3483 = vld [vmem:[%s3 + $0x14] sm:$0xf]
        %v3484 = vld [vmem:[%s3 + $0x18] sm:$0xf]
        %v3485 = vld [vmem:[%s3 + $0x1c] sm:$0xf]
        %v3486 = vld [vmem:[%s3 + $0x20] sm:$0xf]
        %v3487 = vld [vmem:[%s3 + $0x24] sm:$0xf]
        %v3488 = vld [vmem:[%s3 + $0x28] sm:$0xf]
        %v3489 = vld [vmem:[%s3 + $0x2c] sm:$0xf]
        %v3490 = vld [vmem:[%s3 + $0x30] sm:$0xf]
        %v3491 = vld [vmem:[%s3 + $0x34] sm:$0xf]
        %v3492 = vld [vmem:[%s3 + $0x38] sm:$0xf]
        %v3493 = vld [vmem:[%s3 + $0x3c] sm:$0xf]
        %v3494 = vld [vmem:[%s3 + $0x40] sm:$0xf]
        %v3495 = vld [vmem:[%s3 + $0x44] sm:$0xf]
        %v3496 = vld [vmem:[%s3 + $0x48] sm:$0xf]
        %v3497 = vld [vmem:[%s3 + $0x4c] sm:$0xf]
        %v3498 = vld [vmem:[%s3 + $0x50] sm:$0xf]
        %v3499 = vld [vmem:[%s3 + $0x54] sm:$0xf]
        %v3500 = vld [vmem:[%s3 + $0x58] sm:$0xf]
        %v3501 = vld [vmem:[%s3 + $0x5c] sm:$0xf]
        %v3502 = vld [vmem:[%s3 + $0x60] sm:$0xf]
        %v3503 = vld [vmem:[%s3 + $0x64] sm:$0xf]
        %v3504 = vld [vmem:[%s3 + $0x68] sm:$0xf]
        %v3505 = vld [vmem:[%s3 + $0x6c] sm:$0xf]
        %v3506 = vld [vmem:[%s3 + $0x70] sm:$0xf]
        %v3507 = vld [vmem:[%s3 + $0x74] sm:$0xf]
        %v3508 = vld [vmem:[%s3 + $0x78] sm:$0xf]
        %v3509 = vld [vmem:[%s3 + $0x7c] sm:$0xf]
        %v3510 = vld [vmem:[%s3 + $0x80] sm:$0xf]
        %v3511 = vld [vmem:[%s3 + $0x84] sm:$0xf]
        %v3512 = vld [vmem:[%s3 + $0x88] sm:$0xf]
        %v3513 = vld [vmem:[%s3 + $0x8c] sm:$0xf]
        %v3514 = vld [vmem:[%s4] sm:$0x1]
        %v3516 = vlaneseq
        %v3517 = vshrl.u32 %v3516, 7
        %v3518 = vsub.s32 0, %v3517
        %v3519 = vrot.slane %v3514, %v3518
        %v3557 = vunpack.c.l.b16 %v3478
        %v3558 = vunpack.c.l.b16 %v3479
        %v3559 = vunpack.c.l.b16 %v3480
        %v3560 = vunpack.c.l.b16 %v3481
        %v3561 = vunpack.c.l.b16 %v3482
        %v3562 = vunpack.c.l.b16 %v3483
        %v3563 = vunpack.c.l.b16 %v3484
        %v3564 = vunpack.c.l.b16 %v3485
        %v3565 = vunpack.c.l.b16 %v3486
        %v3566 = vunpack.c.l.b16 %v3487
        %v3567 = vunpack.c.l.b16 %v3488
        %v3568 = vunpack.c.l.b16 %v3489
        %v3569 = vunpack.c.l.b16 %v3490
        %v3570 = vunpack.c.l.b16 %v3491
        %v3571 = vunpack.c.l.b16 %v3492
        %v3572 = vunpack.c.l.b16 %v3493
        %v3573 = vunpack.c.l.b16 %v3494
        %v3574 = vunpack.c.l.b16 %v3495
        %v3575 = vunpack.c.l.b16 %v3496
        %v3576 = vunpack.c.l.b16 %v3497
        %v3577 = vunpack.c.l.b16 %v3498
        %v3578 = vunpack.c.l.b16 %v3499
        %v3579 = vunpack.c.l.b16 %v3500
        %v3580 = vunpack.c.l.b16 %v3501
        %v3581 = vunpack.c.l.b16 %v3502
        %v3582 = vunpack.c.l.b16 %v3503
        %v3583 = vunpack.c.l.b16 %v3504
        %v3584 = vunpack.c.l.b16 %v3505
        %v3585 = vunpack.c.l.b16 %v3506
        %v3586 = vunpack.c.l.b16 %v3507
        %v3587 = vunpack.c.l.b16 %v3508
        %v3588 = vunpack.c.l.b16 %v3509
        %v3589 = vunpack.c.l.b16 %v3510
        %v3590 = vunpack.c.l.b16 %v3511
        %v3591 = vunpack.c.l.b16 %v3512
        %v3592 = vunpack.c.l.b16 %v3513
        %v3593 = vpack.c.b16 %v3558, %v3557
        %v3594 = vpack.c.b16 %v3560, %v3559
        %v3595 = vpack.c.b16 %v3562, %v3561
        %v3596 = vpack.c.b16 %v3564, %v3563
        %v3597 = vpack.c.b16 %v3566, %v3565
        %v3598 = vpack.c.b16 %v3568, %v3567
        %v3599 = vpack.c.b16 %v3570, %v3569
        %v3600 = vpack.c.b16 %v3572, %v3571
        %v3601 = vpack.c.b16 %v3574, %v3573
        %v3602 = vpack.c.b16 %v3576, %v3575
        %v3603 = vpack.c.b16 %v3578, %v3577
        %v3604 = vpack.c.b16 %v3580, %v3579
        %v3605 = vpack.c.b16 %v3582, %v3581
        %v3606 = vpack.c.b16 %v3584, %v3583
        %v3607 = vpack.c.b16 %v3586, %v3585
        %v3608 = vpack.c.b16 %v3588, %v3587
        %v3609 = vpack.c.b16 %v3590, %v3589
        %v3610 = vpack.c.b16 %v3592, %v3591
        %v3630 = vsel %vm224, %v3432, 0
        %v3633 = vsel %vm224, %v3435, 0
        %v3636 = vsel %vm224, %v3438, 0
        %v3639 = vsel %vm224, %v3441, 0
        %v3642 = vsel %vm224, %v3444, 0
        %v3645 = vsel %vm224, %v3447, 0
        %v3648 = vsel %vm224, %v3450, 0
        %v3651 = vsel %vm224, %v3453, 0
        %v3654 = vsel %vm224, %v3456, 0
        %v3657 = vsel %vm224, %v3459, 0
        %v3660 = vsel %vm224, %v3462, 0
        %v3663 = vsel %vm224, %v3465, 0
        %v3666 = vsel %vm224, %v3468, 0
        %v3669 = vsel %vm224, %v3471, 0
        %v3672 = vsel %vm224, %v3474, 0
        %v3675 = vsel %vm224, %v3477, 0
        %3677 = vmatprep.subr.bf16.mxu0 0
        %3678 = vmatpush1.bf16.msra.mxu0 %v3600
        %3679 = vmatprep.subr.bf16.mxu0 0
        %3680 = vmatpush1.bf16.msra.mxu0 %v3599
        %3681 = vmatprep.subr.bf16.mxu0 0
        %3682 = vmatpush1.bf16.msra.mxu0 %v3598
        %3683 = vmatprep.subr.bf16.mxu0 0
        %3684 = vmatpush1.bf16.msra.mxu0 %v3597
        %3685 = vmatprep.subr.bf16.mxu0 0
        %3686 = vmatpush1.bf16.msra.mxu0 %v3596
        %3687 = vmatprep.subr.bf16.mxu0 0
        %3688 = vmatpush1.bf16.msra.mxu0 %v3595
        %3689 = vmatprep.subr.bf16.mxu0 0
        %3690 = vmatpush1.bf16.msra.mxu0 %v3594
        %3691 = vmatprep.subr.bf16.mxu0 0
        %3692 = vmatpush1.bf16.msra.mxu0 %v3593
        %3693 = vmatprep.subr.bf16.mxu0 0
        %3694 = vmatpush2.bf16.msra.mxu0 %v3608
        %3695 = vmatprep.subr.bf16.mxu0 0
        %3696 = vmatpush2.bf16.msra.mxu0 %v3607
        %3697 = vmatprep.subr.bf16.mxu0 0
        %3698 = vmatpush2.bf16.msra.mxu0 %v3606
        %3699 = vmatprep.subr.bf16.mxu0 0
        %3700 = vmatpush2.bf16.msra.mxu0 %v3605
        %3701 = vmatprep.subr.bf16.mxu0 0
        %3702 = vmatpush2.bf16.msra.mxu0 %v3604
        %3703 = vmatprep.subr.bf16.mxu0 0
        %3704 = vmatpush2.bf16.msra.mxu0 %v3603
        %3705 = vmatprep.subr.bf16.mxu0 0
        %3706 = vmatpush2.bf16.msra.mxu0 %v3602
        %3707 = vmatprep.subr.bf16.mxu0 0
        %3708 = vmatpush2.bf16.msra.mxu0 %v3601
        %3709 = vmatprep.mubr.bf16.mxu0 %v3431
        %3710 = vmatmul.mubr.bf16.gmra.mxu0 %v3430
        %v3711 = vpop.f32.mrf.mxu0
        %v3712 = vadd.f32 %v3519, %v3711
        %v3713 = vpop.f32.mrf.mxu0
        %v3714 = vpop.f32.mrf.mxu0
        %v3715 = vadd.f32 %v3519, %v3714
        %v3716 = vpop.f32.mrf.mxu0
        %3717 = vmatprep.mubr.bf16.mxu0 %v3434
        %3718 = vmatmul.mubr.bf16.gmra.mxu0 %v3433
        %v3719 = vpop.f32.mrf.mxu0
        %v3720 = vadd.f32 %v3519, %v3719
        %v3721 = vpop.f32.mrf.mxu0
        %v3722 = vpop.f32.mrf.mxu0
        %v3723 = vadd.f32 %v3519, %v3722
        %v3724 = vpop.f32.mrf.mxu0
        %3725 = vmatprep.mubr.bf16.mxu0 %v3437
        %3726 = vmatmul.mubr.bf16.gmra.mxu0 %v3436
        %v3727 = vpop.f32.mrf.mxu0
        %v3728 = vadd.f32 %v3519, %v3727
        %v3729 = vpop.f32.mrf.mxu0
        %v3730 = vpop.f32.mrf.mxu0
        %v3731 = vadd.f32 %v3519, %v3730
        %v3732 = vpop.f32.mrf.mxu0
        %3733 = vmatprep.mubr.bf16.mxu0 %v3440
        %3734 = vmatmul.mubr.bf16.gmra.mxu0 %v3439
        %v3735 = vpop.f32.mrf.mxu0
        %v3736 = vadd.f32 %v3519, %v3735
        %v3737 = vpop.f32.mrf.mxu0
        %v3738 = vpop.f32.mrf.mxu0
        %v3739 = vadd.f32 %v3519, %v3738
        %v3740 = vpop.f32.mrf.mxu0
        %3741 = vmatprep.mubr.bf16.mxu0 %v3443
        %3742 = vmatmul.mubr.bf16.gmra.mxu0 %v3442
        %v3743 = vpop.f32.mrf.mxu0
        %v3744 = vadd.f32 %v3519, %v3743
        %v3745 = vpop.f32.mrf.mxu0
        %v3746 = vpop.f32.mrf.mxu0
        %v3747 = vadd.f32 %v3519, %v3746
        %v3748 = vpop.f32.mrf.mxu0
        %3749 = vmatprep.mubr.bf16.mxu0 %v3446
        %3750 = vmatmul.mubr.bf16.gmra.mxu0 %v3445
        %v3751 = vpop.f32.mrf.mxu0
        %v3752 = vadd.f32 %v3519, %v3751
        %v3753 = vpop.f32.mrf.mxu0
        %v3754 = vpop.f32.mrf.mxu0
        %v3755 = vadd.f32 %v3519, %v3754
        %v3756 = vpop.f32.mrf.mxu0
        %3757 = vmatprep.mubr.bf16.mxu0 %v3449
        %3758 = vmatmul.mubr.bf16.gmra.mxu0 %v3448
        %v3759 = vpop.f32.mrf.mxu0
        %v3760 = vadd.f32 %v3519, %v3759
        %v3761 = vpop.f32.mrf.mxu0
        %v3762 = vpop.f32.mrf.mxu0
        %v3763 = vadd.f32 %v3519, %v3762
        %v3764 = vpop.f32.mrf.mxu0
        %3765 = vmatprep.mubr.bf16.mxu0 %v3452
        %3766 = vmatmul.mubr.bf16.gmra.mxu0 %v3451
        %v3767 = vpop.f32.mrf.mxu0
        %v3768 = vadd.f32 %v3519, %v3767
        %v3769 = vpop.f32.mrf.mxu0
        %v3770 = vpop.f32.mrf.mxu0
        %v3771 = vadd.f32 %v3519, %v3770
        %v3772 = vpop.f32.mrf.mxu0
        %3773 = vmatprep.mubr.bf16.mxu0 %v3455
        %3774 = vmatmul.mubr.bf16.gmra.mxu0 %v3454
        %v3775 = vpop.f32.mrf.mxu0
        %v3776 = vadd.f32 %v3519, %v3775
        %v3777 = vpop.f32.mrf.mxu0
        %v3778 = vpop.f32.mrf.mxu0
        %v3779 = vadd.f32 %v3519, %v3778
        %v3780 = vpop.f32.mrf.mxu0
        %3781 = vmatprep.mubr.bf16.mxu0 %v3458
        %3782 = vmatmul.mubr.bf16.gmra.mxu0 %v3457
        %v3783 = vpop.f32.mrf.mxu0
        %v3784 = vadd.f32 %v3519, %v3783
        %v3785 = vpop.f32.mrf.mxu0
        %v3786 = vpop.f32.mrf.mxu0
        %v3787 = vadd.f32 %v3519, %v3786
        %v3788 = vpop.f32.mrf.mxu0
        %3789 = vmatprep.mubr.bf16.mxu0 %v3461
        %3790 = vmatmul.mubr.bf16.gmra.mxu0 %v3460
        %v3791 = vpop.f32.mrf.mxu0
        %v3792 = vadd.f32 %v3519, %v3791
        %v3793 = vpop.f32.mrf.mxu0
        %v3794 = vpop.f32.mrf.mxu0
        %v3795 = vadd.f32 %v3519, %v3794
        %v3796 = vpop.f32.mrf.mxu0
        %3797 = vmatprep.mubr.bf16.mxu0 %v3464
        %3798 = vmatmul.mubr.bf16.gmra.mxu0 %v3463
        %v3799 = vpop.f32.mrf.mxu0
        %v3800 = vadd.f32 %v3519, %v3799
        %v3801 = vpop.f32.mrf.mxu0
        %v3802 = vpop.f32.mrf.mxu0
        %v3803 = vadd.f32 %v3519, %v3802
        %v3804 = vpop.f32.mrf.mxu0
        %3805 = vmatprep.mubr.bf16.mxu0 %v3467
        %3806 = vmatmul.mubr.bf16.gmra.mxu0 %v3466
        %v3807 = vpop.f32.mrf.mxu0
        %v3808 = vadd.f32 %v3519, %v3807
        %v3809 = vpop.f32.mrf.mxu0
        %v3810 = vpop.f32.mrf.mxu0
        %v3811 = vadd.f32 %v3519, %v3810
        %v3812 = vpop.f32.mrf.mxu0
        %3813 = vmatprep.mubr.bf16.mxu0 %v3470
        %3814 = vmatmul.mubr.bf16.gmra.mxu0 %v3469
        %v3815 = vpop.f32.mrf.mxu0
        %v3816 = vadd.f32 %v3519, %v3815
        %v3817 = vpop.f32.mrf.mxu0
        %v3818 = vpop.f32.mrf.mxu0
        %v3819 = vadd.f32 %v3519, %v3818
        %v3820 = vpop.f32.mrf.mxu0
        %3821 = vmatprep.mubr.bf16.mxu0 %v3473
        %3822 = vmatmul.mubr.bf16.gmra.mxu0 %v3472
        %v3823 = vpop.f32.mrf.mxu0
        %v3824 = vadd.f32 %v3519, %v3823
        %v3825 = vpop.f32.mrf.mxu0
        %v3826 = vpop.f32.mrf.mxu0
        %v3827 = vadd.f32 %v3519, %v3826
        %v3828 = vpop.f32.mrf.mxu0
        %3829 = vmatprep.mubr.bf16.mxu0 %v3476
        %3830 = vmatmul.mubr.bf16.gmra.mxu0 %v3475
        %v3831 = vpop.f32.mrf.mxu0
        %v3832 = vadd.f32 %v3519, %v3831
        %v3833 = vpop.f32.mrf.mxu0
        %v3834 = vpop.f32.mrf.mxu0
        %v3835 = vadd.f32 %v3519, %v3834
        %v3836 = vpop.f32.mrf.mxu0
        %3837 = vdwg.mxu0
        %3838 = vmatprep.subr.bf16.mxu0 0
        %3839 = vmatpush1.bf16.msra.mxu0 0
        %3840 = vmatprep.subr.bf16.mxu0 0
        %3841 = vmatpush1.bf16.msra.mxu0 0
        %3842 = vmatprep.subr.bf16.mxu0 0
        %3843 = vmatpush1.bf16.msra.mxu0 0
        %3844 = vmatprep.subr.bf16.mxu0 0
        %3845 = vmatpush1.bf16.msra.mxu0 0
        %3846 = vmatprep.subr.bf16.mxu0 0
        %3847 = vmatpush1.bf16.msra.mxu0 0
        %3848 = vmatprep.subr.bf16.mxu0 0
        %3849 = vmatpush1.bf16.msra.mxu0 0
        %3850 = vmatprep.subr.bf16.mxu0 0
        %3851 = vmatpush1.bf16.msra.mxu0 %v3610
        %3852 = vmatprep.subr.bf16.mxu0 0
        %3853 = vmatpush1.bf16.msra.mxu0 %v3609
        %3854 = vmatprep.subr.bf16.mxu0 0
        %3855 = vmatpush2.bf16.msra.mxu0 0
        %3856 = vmatprep.subr.bf16.mxu0 0
        %3857 = vmatpush2.bf16.msra.mxu0 0
        %3858 = vmatprep.subr.bf16.mxu0 0
        %3859 = vmatpush2.bf16.msra.mxu0 0
        %3860 = vmatprep.subr.bf16.mxu0 0
        %3861 = vmatpush2.bf16.msra.mxu0 0
        %3862 = vmatprep.subr.bf16.mxu0 0
        %3863 = vmatpush2.bf16.msra.mxu0 0
        %3864 = vmatprep.subr.bf16.mxu0 0
        %3865 = vmatpush2.bf16.msra.mxu0 0
        %3866 = vmatprep.subr.bf16.mxu0 0
        %3867 = vmatpush2.bf16.msra.mxu0 0
        %3868 = vmatprep.subr.bf16.mxu0 0
        %3869 = vmatpush2.bf16.msra.mxu0 0
        %3870 = vmatprep.mubr.bf16.mxu0 0
        %3871 = vmatmul.mubr.bf16.gmra.mxu0 %v3630
        %v3872 = vpop.f32.mrf.mxu0
        %v3873 = vadd.f32 %v3712, %v3872
        %v3874 = vpop.f32.mrf.mxu0
        %v3875 = vpop.f32.mrf.mxu0
        %v3876 = vadd.f32 %v3715, %v3875
        %v3877 = vpop.f32.mrf.mxu0
        %3878 = vmatprep.mubr.bf16.mxu0 0
        %3879 = vmatmul.mubr.bf16.gmra.mxu0 %v3633
        %v3880 = vpop.f32.mrf.mxu0
        %v3881 = vadd.f32 %v3720, %v3880
        %v3882 = vpop.f32.mrf.mxu0
        %v3883 = vpop.f32.mrf.mxu0
        %v3884 = vadd.f32 %v3723, %v3883
        %v3885 = vpop.f32.mrf.mxu0
        %3886 = vmatprep.mubr.bf16.mxu0 0
        %3887 = vmatmul.mubr.bf16.gmra.mxu0 %v3636
        %v3888 = vpop.f32.mrf.mxu0
        %v3889 = vadd.f32 %v3728, %v3888
        %v3890 = vpop.f32.mrf.mxu0
        %v3891 = vpop.f32.mrf.mxu0
        %v3892 = vadd.f32 %v3731, %v3891
        %v3893 = vpop.f32.mrf.mxu0
        %3894 = vmatprep.mubr.bf16.mxu0 0
        %3895 = vmatmul.mubr.bf16.gmra.mxu0 %v3639
        %v3896 = vpop.f32.mrf.mxu0
        %v3897 = vadd.f32 %v3736, %v3896
        %v3898 = vpop.f32.mrf.mxu0
        %v3899 = vpop.f32.mrf.mxu0
        %v3900 = vadd.f32 %v3739, %v3899
        %v3901 = vpop.f32.mrf.mxu0
        %3902 = vmatprep.mubr.bf16.mxu0 0
        %3903 = vmatmul.mubr.bf16.gmra.mxu0 %v3642
        %v3904 = vpop.f32.mrf.mxu0
        %v3905 = vadd.f32 %v3744, %v3904
        %v3906 = vpop.f32.mrf.mxu0
        %v3907 = vpop.f32.mrf.mxu0
        %v3908 = vadd.f32 %v3747, %v3907
        %v3909 = vpop.f32.mrf.mxu0
        %3910 = vmatprep.mubr.bf16.mxu0 0
        %3911 = vmatmul.mubr.bf16.gmra.mxu0 %v3645
        %v3912 = vpop.f32.mrf.mxu0
        %v3913 = vadd.f32 %v3752, %v3912
        %v3914 = vpop.f32.mrf.mxu0
        %v3915 = vpop.f32.mrf.mxu0
        %v3916 = vadd.f32 %v3755, %v3915
        %v3917 = vpop.f32.mrf.mxu0
        %3918 = vmatprep.mubr.bf16.mxu0 0
        %3919 = vmatmul.mubr.bf16.gmra.mxu0 %v3648
        %v3920 = vpop.f32.mrf.mxu0
        %v3921 = vadd.f32 %v3760, %v3920
        %v3922 = vpop.f32.mrf.mxu0
        %v3923 = vpop.f32.mrf.mxu0
        %v3924 = vadd.f32 %v3763, %v3923
        %v3925 = vpop.f32.mrf.mxu0
        %3926 = vmatprep.mubr.bf16.mxu0 0
        %3927 = vmatmul.mubr.bf16.gmra.mxu0 %v3651
        %v3928 = vpop.f32.mrf.mxu0
        %v3929 = vadd.f32 %v3768, %v3928
        %v3930 = vpop.f32.mrf.mxu0
        %v3931 = vpop.f32.mrf.mxu0
        %v3932 = vadd.f32 %v3771, %v3931
        %v3933 = vpop.f32.mrf.mxu0
        %3934 = vmatprep.mubr.bf16.mxu0 0
        %3935 = vmatmul.mubr.bf16.gmra.mxu0 %v3654
        %v3936 = vpop.f32.mrf.mxu0
        %v3937 = vadd.f32 %v3776, %v3936
        %v3938 = vpop.f32.mrf.mxu0
        %v3939 = vpop.f32.mrf.mxu0
        %v3940 = vadd.f32 %v3779, %v3939
        %v3941 = vpop.f32.mrf.mxu0
        %3942 = vmatprep.mubr.bf16.mxu0 0
        %3943 = vmatmul.mubr.bf16.gmra.mxu0 %v3657
        %v3944 = vpop.f32.mrf.mxu0
        %v3945 = vadd.f32 %v3784, %v3944
        %v3946 = vpop.f32.mrf.mxu0
        %v3947 = vpop.f32.mrf.mxu0
        %v3948 = vadd.f32 %v3787, %v3947
        %v3949 = vpop.f32.mrf.mxu0
        %3950 = vmatprep.mubr.bf16.mxu0 0
        %3951 = vmatmul.mubr.bf16.gmra.mxu0 %v3660
        %v3952 = vpop.f32.mrf.mxu0
        %v3953 = vadd.f32 %v3792, %v3952
        %v3954 = vpop.f32.mrf.mxu0
        %v3955 = vpop.f32.mrf.mxu0
        %v3956 = vadd.f32 %v3795, %v3955
        %v3957 = vpop.f32.mrf.mxu0
        %3958 = vmatprep.mubr.bf16.mxu0 0
        %3959 = vmatmul.mubr.bf16.gmra.mxu0 %v3663
        %v3960 = vpop.f32.mrf.mxu0
        %v3961 = vadd.f32 %v3800, %v3960
        %v3962 = vpop.f32.mrf.mxu0
        %v3963 = vpop.f32.mrf.mxu0
        %v3964 = vadd.f32 %v3803, %v3963
        %v3965 = vpop.f32.mrf.mxu0
        %3966 = vmatprep.mubr.bf16.mxu0 0
        %3967 = vmatmul.mubr.bf16.gmra.mxu0 %v3666
        %v3968 = vpop.f32.mrf.mxu0
        %v3969 = vadd.f32 %v3808, %v3968
        %v3970 = vpop.f32.mrf.mxu0
        %v3971 = vpop.f32.mrf.mxu0
        %v3972 = vadd.f32 %v3811, %v3971
        %v3973 = vpop.f32.mrf.mxu0
        %3974 = vmatprep.mubr.bf16.mxu0 0
        %3975 = vmatmul.mubr.bf16.gmra.mxu0 %v3669
        %v3976 = vpop.f32.mrf.mxu0
        %v3977 = vadd.f32 %v3816, %v3976
        %v3978 = vpop.f32.mrf.mxu0
        %v3979 = vpop.f32.mrf.mxu0
        %v3980 = vadd.f32 %v3819, %v3979
        %v3981 = vpop.f32.mrf.mxu0
        %3982 = vmatprep.mubr.bf16.mxu0 0
        %3983 = vmatmul.mubr.bf16.gmra.mxu0 %v3672
        %v3984 = vpop.f32.mrf.mxu0
        %v3985 = vadd.f32 %v3824, %v3984
        %v3986 = vpop.f32.mrf.mxu0
        %v3987 = vpop.f32.mrf.mxu0
        %v3988 = vadd.f32 %v3827, %v3987
        %v3989 = vpop.f32.mrf.mxu0
        %3990 = vmatprep.mubr.bf16.mxu0 0
        %3991 = vmatmul.mubr.bf16.gmra.mxu0 %v3675
        %v3992 = vpop.f32.mrf.mxu0
        %v3993 = vadd.f32 %v3832, %v3992
        %v3994 = vpop.f32.mrf.mxu0
        %v3995 = vpop.f32.mrf.mxu0
        %v3996 = vadd.f32 %v3835, %v3995
        %v3997 = vpop.f32.mrf.mxu0
        %3998 = vdwg.mxu0
        %v3999 = vmax.f32 %v3873, 0.0
        %v4000 = vmax.f32 %v3876, 0.0
        %v4001 = vmax.f32 %v3881, 0.0
        %v4002 = vmax.f32 %v3884, 0.0
        %v4003 = vmax.f32 %v3889, 0.0
        %v4004 = vmax.f32 %v3892, 0.0
        %v4005 = vmax.f32 %v3897, 0.0
        %v4006 = vmax.f32 %v3900, 0.0
        %v4007 = vmax.f32 %v3905, 0.0
        %v4008 = vmax.f32 %v3908, 0.0
        %v4009 = vmax.f32 %v3913, 0.0
        %v4010 = vmax.f32 %v3916, 0.0
        %v4011 = vmax.f32 %v3921, 0.0
        %v4012 = vmax.f32 %v3924, 0.0
        %v4013 = vmax.f32 %v3929, 0.0
        %v4014 = vmax.f32 %v3932, 0.0
        %v4015 = vmax.f32 %v3937, 0.0
        %v4016 = vmax.f32 %v3940, 0.0
        %v4017 = vmax.f32 %v3945, 0.0
        %v4018 = vmax.f32 %v3948, 0.0
        %v4019 = vmax.f32 %v3953, 0.0
        %v4020 = vmax.f32 %v3956, 0.0
        %v4021 = vmax.f32 %v3961, 0.0
        %v4022 = vmax.f32 %v3964, 0.0
        %v4023 = vmax.f32 %v3969, 0.0
        %v4024 = vmax.f32 %v3972, 0.0
        %v4025 = vmax.f32 %v3977, 0.0
        %v4026 = vmax.f32 %v3980, 0.0
        %v4027 = vmax.f32 %v3985, 0.0
        %v4028 = vmax.f32 %v3988, 0.0
        %v4029 = vmax.f32 %v3993, 0.0
        %v4030 = vmax.f32 %v3996, 0.0
        %4031 = vst.msk [vmem:[%s217] sm:$0xff] %vm224, %v3999
        %4032 = vst.msk [vmem:[%s217 + $0x8] sm:$0xff] %vm224, %v4000
        %4033 = vst.msk [vmem:[%s217 + $0x10] sm:$0xff] %vm224, %v4001
        %4034 = vst.msk [vmem:[%s217 + $0x18] sm:$0xff] %vm224, %v4002
        %4035 = vst.msk [vmem:[%s217 + $0x20] sm:$0xff] %vm224, %v4003
        %4036 = vst.msk [vmem:[%s217 + $0x28] sm:$0xff] %vm224, %v4004
        %4037 = vst.msk [vmem:[%s217 + $0x30] sm:$0xff] %vm224, %v4005
        %4038 = vst.msk [vmem:[%s217 + $0x38] sm:$0xff] %vm224, %v4006
        %4039 = vst.msk [vmem:[%s217 + $0x40] sm:$0xff] %vm224, %v4007
        %4040 = vst.msk [vmem:[%s217 + $0x48] sm:$0xff] %vm224, %v4008
        %4041 = vst.msk [vmem:[%s217 + $0x50] sm:$0xff] %vm224, %v4009
        %4042 = vst.msk [vmem:[%s217 + $0x58] sm:$0xff] %vm224, %v4010
        %4043 = vst.msk [vmem:[%s217 + $0x60] sm:$0xff] %vm224, %v4011
        %4044 = vst.msk [vmem:[%s217 + $0x68] sm:$0xff] %vm224, %v4012
        %4045 = vst.msk [vmem:[%s217 + $0x70] sm:$0xff] %vm224, %v4013
        %4046 = vst.msk [vmem:[%s217 + $0x78] sm:$0xff] %vm224, %v4014
        %4047 = vst.msk [vmem:[%s217 + $0x80] sm:$0xff] %vm224, %v4015
        %4048 = vst.msk [vmem:[%s217 + $0x88] sm:$0xff] %vm224, %v4016
        %4049 = vst.msk [vmem:[%s217 + $0x90] sm:$0xff] %vm224, %v4017
        %4050 = vst.msk [vmem:[%s217 + $0x98] sm:$0xff] %vm224, %v4018
        %4051 = vst.msk [vmem:[%s217 + $0xa0] sm:$0xff] %vm224, %v4019
        %4052 = vst.msk [vmem:[%s217 + $0xa8] sm:$0xff] %vm224, %v4020
        %4053 = vst.msk [vmem:[%s217 + $0xb0] sm:$0xff] %vm224, %v4021
        %4054 = vst.msk [vmem:[%s217 + $0xb8] sm:$0xff] %vm224, %v4022
        %4055 = vst.msk [vmem:[%s217 + $0xc0] sm:$0xff] %vm224, %v4023
        %4056 = vst.msk [vmem:[%s217 + $0xc8] sm:$0xff] %vm224, %v4024
        %4057 = vst.msk [vmem:[%s217 + $0xd0] sm:$0xff] %vm224, %v4025
        %4058 = vst.msk [vmem:[%s217 + $0xd8] sm:$0xff] %vm224, %v4026
        %4059 = vst.msk [vmem:[%s217 + $0xe0] sm:$0xff] %vm224, %v4027
        %4060 = vst.msk [vmem:[%s217 + $0xe8] sm:$0xff] %vm224, %v4028
        %4061 = vst.msk [vmem:[%s217 + $0xf0] sm:$0xff] %vm224, %v4029
        %4062 = vst.msk [vmem:[%s217 + $0xf8] sm:$0xff] %vm224, %v4030
        %s4063 = sand.u32 %s137, 1
        %s4064 = scalar_lea.sflag [#allocation4], %s4063
        %s4065 = sand.u32 %s137, 1
        %s4066 = smul.addr %s4065, 256
        %s4067 = scalar_lea.vmem [#allocation3], %s4066
        // Predicated region
        $region41: #{conv_block.1} parent=39 // pred_check
          %p4068 = pneg %p147
        $region42: #{conv_block.1} parent=39 // pred_check_branch
          %4070 = sbr.rel (%p4068) target = $region44
        $region43: #{conv_block.1} parent=39 // pred_region
          %s4072 = ssub.s32 4096, 4096
          %4073 = vsyncadd %s4064, %s4072
          %s4074 = smul.addr %s19, 32
          %s4075 = smul.addr %s4074, 128
          %s4076 = scalar_lea.hbm %s5, %s4075
          %s4077 = sshll.u32 %s4067, 4
          %s4078 = int_to_ptr.vmem [resolvable:$true] %s4077
          %4083 = dma.vmem_to_hbm [thread:$0]  %s4078, 4096, %s4076, %s4064, 128, 128, 8
        $region44: #{conv_block.1} parent=39 // pred_fallthru
          _
      $region40: #{conv_block.1} parent=5 // pred_fallthru
        _
      %p4084 = scmp.le.s32.totalorder 2, %s14
      // Predicated region
      $region45: #{conv_block.1} parent=5 // pred_check
        %p4085 = pneg %p4084
      $region46: #{conv_block.1} parent=5 // pred_check_branch
        %4087 = sbr.rel (%p4085) target = $region48
      $region47: #{conv_block.1} parent=5 // pred_region
        %s4088 = ssub.s32 %s14, 2
        // Predicated region
        $region49: #{conv_block.1} parent=47 // pred_check
          %p4089 = pneg %p153
        $region50: #{conv_block.1} parent=47 // pred_check_branch
          %4091 = sbr.rel (%p4089) target = $region52
        $region51: #{conv_block.1} parent=47 // pred_region
          %s4092 = sand.u32 %s138, 1
          %s4093 = scalar_lea.sflag [#allocation4], %s4092
          %s4094 = sand.u32 %s138, 1
          %s4095 = smul.addr %s4094, 256
          %s4096 = scalar_lea.vmem [#allocation3], %s4095
          %4097 = dma.done %s4093, 4096
        $region52: #{conv_block.1} parent=47 // pred_fallthru
          _
      $region48: #{conv_block.1} parent=5 // pred_fallthru
        _
    $region6: #{conv_block.1} parent=1 // loop_footer
      %s18 = sadd.s32 1, %s14
    $region7: #{conv_block.1} parent=1 // loop_footer_branch
      %13 = sbr.rel target = $region3
    $region8: #{conv_block.1} parent=1 // loop_exit
      _
    %4098 = vsyncpa [#allocation4], 1
    %s4099 = scalar_lea.sflag [#allocation4], 1
    %4100 = vsyncpa %s4099, 1

</llo_original>
